<compile_context>
chip_gen: v7x
topology: tpu7x:2x2x1
jax: 0.10.0
libtpu: 0.0.40
codegen_flags: <defaults>
</compile_context>

<pallas_src>
import functools

import jax
import jax.numpy as jnp
from jax.experimental import pallas as pl
from jax.experimental.pallas import tpu as pltpu


def _late_fusion_kernel(inv_ns, inv_nv,
                        fs_ref, fv_ref, ws_ref, wv_ref, b_ref,
                        out_ref, acc_ref):
    """One grid step processes a chunk of channels from each branch.

    fs_ref: (B, ts, Ns)  skeleton features, channels chunk, full pooling window
    fv_ref: (B, tv, Nv)  visual   features, channels chunk, full pooling window
    ws_ref: (ts, C)      fused skeleton weights  (w_skel @ Wf[:C]) chunk
    wv_ref: (tv, C)      fused visual   weights  (w_vis  @ Wf[C:]) chunk
    b_ref : (1, C)       fused bias
    """
    k = pl.program_id(0)

    @pl.when(k == 0)
    def _():
        acc_ref[...] = jnp.zeros_like(acc_ref)

    # AvgPool3d over the whole (T, W, H) window == mean over the last (lane)
    # axis. Divide by the TRUE window size (Ns / Nv), never by padded lanes.
    pooled_s = jnp.sum(fs_ref[...], axis=-1) * inv_ns          # (B, ts)
    pooled_v = jnp.sum(fv_ref[...], axis=-1) * inv_nv          # (B, tv)

    # Partial contribution of this channel chunk to the fused prediction.
    acc_ref[...] += (
        jnp.dot(pooled_s, ws_ref[...], preferred_element_type=jnp.float32)
        + jnp.dot(pooled_v, wv_ref[...], preferred_element_type=jnp.float32))

    @pl.when(k == pl.num_programs(0) - 1)
    def _():
        out_ref[...] = (acc_ref[...] + b_ref[...]).astype(out_ref.dtype)


def late_fusion_head(feat_skel, feat_vis, params, *, num_k=4):
    """feat_skel: (B, 512, Ts, Ws, Hs) NCDHW, feat_vis: (B, 2048, Tv, Wv, Hv) NCDHW."""
    B, Ds, Ts, Ws_, Hs = feat_skel.shape
    _, Dv, Tv, Wv_, Hv = feat_vis.shape
    C = params["b_final"].shape[-1]
    Ns, Nv = Ts * Ws_ * Hs, Tv * Wv_ * Hv

    # FREE reshape of NCDHW (no transpose, no HBM copy): channels stay on the
    # sublane axis, the pooled window lands on the lane axis.
    fs = feat_skel.reshape(B, Ds, Ns)
    fv = feat_vis.reshape(B, Dv, Nv)

    # Fold classifier + final_pred into one matmul per branch (exact: all linear).
    wf = params["w_final"]                                   # (2C, C)
    wfs, wfv = wf[:C], wf[C:]                                # concat folded away
    ws_fused = params["w_skel"] @ wfs                        # (Ds, C)
    wv_fused = params["w_vis"] @ wfv                         # (Dv, C)
    b_fused = (params["b_skel"] @ wfs + params["b_vis"] @ wfv
               + params["b_final"]).reshape(1, C)

    # Split the channel (contraction) axis of both branches into num_k chunks;
    # fall back to a single step if the shapes don't divide cleanly.
    if (Ds % num_k) or (Dv % num_k) or ((Ds // num_k) % 8) or ((Dv // num_k) % 8):
        num_k = 1
    ts, tv = Ds // num_k, Dv // num_k

    kernel = functools.partial(_late_fusion_kernel, 1.0 / Ns, 1.0 / Nv)

    bytes_accessed = 4 * (fs.size + fv.size + ws_fused.size + wv_fused.size
                          + b_fused.size + B * C)
    flops = B * (Ds * Ns + Dv * Nv) + 2 * B * C * (Ds + Dv)

    out = pl.pallas_call(
        kernel,
        out_shape=jax.ShapeDtypeStruct((B, C), jnp.float32),
        grid=(num_k,),
        in_specs=[
            pl.BlockSpec((B, ts, Ns), lambda k: (0, k, 0)),
            pl.BlockSpec((B, tv, Nv), lambda k: (0, k, 0)),
            pl.BlockSpec((ts, C), lambda k: (k, 0)),
            pl.BlockSpec((tv, C), lambda k: (k, 0)),
            pl.BlockSpec((1, C), lambda k: (0, 0)),
        ],
        out_specs=pl.BlockSpec((B, C), lambda k: (0, 0)),
        scratch_shapes=[pltpu.VMEM((B, C), jnp.float32)],
        compiler_params=pltpu.CompilerParams(
            dimension_semantics=("arbitrary",)),
        cost_estimate=pl.CostEstimate(flops=flops, transcendentals=0,
                                      bytes_accessed=bytes_accessed),
    )(fs, fv, ws_fused, wv_fused, b_fused)
    return out


def reference(feat_skel, feat_vis, params):
    """Pure-JAX reference reproducing the PyTorch semantics."""
    pooled_s = jnp.mean(feat_skel, axis=(2, 3, 4))           # AvgPool3d((8,8,8)) -> (B,512)
    pooled_v = jnp.mean(feat_vis, axis=(2, 3, 4))            # AvgPool3d((8,7,7)) -> (B,2048)
    logit_s = pooled_s @ params["w_skel"] + params["b_skel"]
    logit_v = pooled_v @ params["w_vis"] + params["b_vis"]
    cat = jnp.concatenate([logit_s, logit_v], axis=-1)
    return cat @ params["w_final"] + params["b_final"]


def init_params(key, num_classes, d_skel=512, d_vis=2048):
    """Deterministic PyTorch-style Linear init: U(-1/sqrt(fan_in), 1/sqrt(fan_in))."""
    def linear(k, fan_in, fan_out):
        kw, kb = jax.random.split(k)
        bound = 1.0 / (fan_in ** 0.5)
        w = jax.random.uniform(kw, (fan_in, fan_out), jnp.float32, -bound, bound)
        b = jax.random.uniform(kb, (fan_out,), jnp.float32, -bound, bound)
        return w, b

    k0, k1, k2 = jax.random.split(key, 3)
    w_skel, b_skel = linear(k0, d_skel, num_classes)              # Spectrum.classifier
    w_vis, b_vis = linear(k1, d_vis, num_classes)                 # Visual.classifier
    w_final, b_final = linear(k2, 2 * num_classes, num_classes)   # LateFusion.final_pred
    return dict(w_skel=w_skel, b_skel=b_skel, w_vis=w_vis, b_vis=b_vis,
                w_final=w_final, b_final=b_final)


if __name__ == "__main__":
    key = jax.random.PRNGKey(0)
    k_fs, k_fv, k_p = jax.random.split(key, 3)

    B, C = 2, 16  # num_classes == args.num_outputs == 16
    # out_4 feature maps as produced by the (external) backbones, NCDHW:
    feat_skel = jax.random.normal(k_fs, (B, 512, 8, 8, 8), jnp.float32)    # Spectrum out_4
    feat_vis = jax.random.normal(k_fv, (B, 2048, 8, 7, 7), jnp.float32)    # Visual out_4
    params = init_params(k_p, C)

    pred = late_fusion_head(feat_skel, feat_vis, params)
    pred = jax.block_until_ready(pred)

    ref = reference(feat_skel, feat_vis, params)
    assert pred.shape == (B, C)
    assert jnp.allclose(pred, ref, atol=1e-4, rtol=1e-4), "Pallas kernel mismatch vs reference"
    print("KERNEL_OK")
</pallas_src>

<mosaic_0001>
module attributes {stable_mosaic.version = 11 : i64} {
  func.func @_late_fusion_kernel(%arg0: i32, %arg1: memref<2x128x512xf32, #tpu.memory_space<vmem>>, %arg2: memref<2x512x392xf32, #tpu.memory_space<vmem>>, %arg3: memref<128x16xf32, #tpu.memory_space<vmem>>, %arg4: memref<512x16xf32, #tpu.memory_space<vmem>>, %arg5: memref<1x16xf32, #tpu.memory_space<vmem>>, %arg6: memref<2x16xf32, #tpu.memory_space<vmem>>, %arg7: memref<2x16xf32, #tpu.memory_space<vmem>>) attributes {dimension_semantics = [#tpu.dimension_semantics<arbitrary>], iteration_bounds = array<i64: 4>, scalar_prefetch = 0 : i64, scratch_operands = 1 : i64, tpu.core_type = #tpu.core_type<tc>, window_params = [{transform_indices = @transform_0, window_bounds = array<i64: 2, 128, 512>}, {transform_indices = @transform_1, window_bounds = array<i64: 2, 512, 392>}, {transform_indices = @transform_2, window_bounds = array<i64: 128, 16>}, {transform_indices = @transform_3, window_bounds = array<i64: 512, 16>}, {pipeline_mode = #tpu.pipeline_mode<synchronous>, transform_indices = @transform_4, window_bounds = array<i64: 1, 16>}, {pipeline_mode = #tpu.pipeline_mode<synchronous>, transform_indices = @transform_5, window_bounds = array<i64: 2, 16>}]} {
    %c0_i32 = arith.constant 0 : i32
    %0 = arith.cmpi eq, %arg0, %c0_i32 : i32
    %1 = arith.extui %0 : i1 to i32
    %c0_i32_0 = arith.constant 0 : i32
    %2 = arith.cmpi ne, %1, %c0_i32_0 : i32
    scf.if %2 {
      %cst_20 = arith.constant 0.000000e+00 : f32
      %22 = vector.broadcast %cst_20 : f32 to vector<2x16xf32>
      %c0_21 = arith.constant 0 : index
      %c0_22 = arith.constant 0 : index
      %23 = vector.load %arg7[%c0_21, %c0_22] : memref<2x16xf32, #tpu.memory_space<vmem>>, vector<2x16xf32>
      tpu.vector_store %arg7[%c0_21, %c0_22], %22 {strides = array<i32>} : memref<2x16xf32, #tpu.memory_space<vmem>>, vector<2x16xf32>,
    } else {
    }
    %c0 = arith.constant 0 : index
    %c0_1 = arith.constant 0 : index
    %c0_2 = arith.constant 0 : index
    %3 = vector.load %arg1[%c0, %c0_1, %c0_2] : memref<2x128x512xf32, #tpu.memory_space<vmem>>, vector<2x128x512xf32>
    %cst = arith.constant dense<0.000000e+00> : vector<2x128xf32>
    %4 = vector.multi_reduction <add>, %3, %cst [2] : vector<2x128x512xf32> to vector<2x128xf32>
    %cst_3 = arith.constant 0.001953125 : f32
    %5 = vector.broadcast %cst_3 : f32 to vector<2x128xf32>
    %6 = arith.mulf %4, %5 : vector<2x128xf32>
    %c0_4 = arith.constant 0 : index
    %c0_5 = arith.constant 0 : index
    %c0_6 = arith.constant 0 : index
    %7 = vector.load %arg2[%c0_4, %c0_5, %c0_6] : memref<2x512x392xf32, #tpu.memory_space<vmem>>, vector<2x512x392xf32>
    %cst_7 = arith.constant dense<0.000000e+00> : vector<2x512xf32>
    %8 = vector.multi_reduction <add>, %7, %cst_7 [2] : vector<2x512x392xf32> to vector<2x512xf32>
    %cst_8 = arith.constant 0.00255102036 : f32
    %9 = vector.broadcast %cst_8 : f32 to vector<2x512xf32>
    %10 = arith.mulf %8, %9 : vector<2x512xf32>
    %c0_9 = arith.constant 0 : index
    %c0_10 = arith.constant 0 : index
    %11 = vector.load %arg7[%c0_9, %c0_10] : memref<2x16xf32, #tpu.memory_space<vmem>>, vector<2x16xf32>
    %c0_11 = arith.constant 0 : index
    %c0_12 = arith.constant 0 : index
    %12 = vector.load %arg3[%c0_11, %c0_12] : memref<128x16xf32, #tpu.memory_space<vmem>>, vector<128x16xf32>
    %cst_13 = arith.constant dense<0.000000e+00> : vector<2x16xf32>
    %13 = tpu.matmul %6, %12, %cst_13 {dimension_numbers = #tpu.dot_dimension_numbers<[1], [0], [0], [1], [0, 0, 1, 1], [], []>} : vector<2x128xf32>, vector<128x16xf32>, vector<2x16xf32> -> vector<2x16xf32>
    %c0_14 = arith.constant 0 : index
    %c0_15 = arith.constant 0 : index
    %14 = vector.load %arg4[%c0_14, %c0_15] : memref<512x16xf32, #tpu.memory_space<vmem>>, vector<512x16xf32>
    %cst_16 = arith.constant dense<0.000000e+00> : vector<2x16xf32>
    %15 = tpu.matmul %10, %14, %cst_16 {dimension_numbers = #tpu.dot_dimension_numbers<[1], [0], [0], [1], [0, 0, 1, 1], [], []>} : vector<2x512xf32>, vector<512x16xf32>, vector<2x16xf32> -> vector<2x16xf32>
    %16 = arith.addf %13, %15 : vector<2x16xf32>
    %17 = arith.addf %11, %16 : vector<2x16xf32>
    %c0_17 = arith.constant 0 : index
    %c0_18 = arith.constant 0 : index
    %18 = vector.load %arg7[%c0_17, %c0_18] : memref<2x16xf32, #tpu.memory_space<vmem>>, vector<2x16xf32>
    tpu.vector_store %arg7[%c0_17, %c0_18], %17 {strides = array<i32>} : memref<2x16xf32, #tpu.memory_space<vmem>>, vector<2x16xf32>,
    %c3_i32 = arith.constant 3 : i32
    %19 = arith.cmpi eq, %arg0, %c3_i32 : i32
    %20 = arith.extui %19 : i1 to i32
    %c0_i32_19 = arith.constant 0 : i32
    %21 = arith.cmpi ne, %20, %c0_i32_19 : i32
    scf.if %21 {
      %c0_20 = arith.constant 0 : index
      %c0_21 = arith.constant 0 : index
      %22 = vector.load %arg7[%c0_20, %c0_21] : memref<2x16xf32, #tpu.memory_space<vmem>>, vector<2x16xf32>
      %c0_22 = arith.constant 0 : index
      %c0_23 = arith.constant 0 : index
      %23 = vector.load %arg5[%c0_22, %c0_23] : memref<1x16xf32, #tpu.memory_space<vmem>>, vector<1x16xf32>
      %24 = vector.broadcast %23 : vector<1x16xf32> to vector<2x16xf32>
      %25 = arith.addf %22, %24 : vector<2x16xf32>
      %c0_24 = arith.constant 0 : index
      %c0_25 = arith.constant 0 : index
      %26 = vector.load %arg6[%c0_24, %c0_25] : memref<2x16xf32, #tpu.memory_space<vmem>>, vector<2x16xf32>
      tpu.vector_store %arg6[%c0_24, %c0_25], %25 {strides = array<i32>} : memref<2x16xf32, #tpu.memory_space<vmem>>, vector<2x16xf32>,
    } else {
    }
    return
  }
  func.func @transform_0(%arg0: i32) -> (i32, i32, i32) {
    %c0_i32 = arith.constant 0 : i32
    %c0_i32_0 = arith.constant 0 : i32
    %c0_i32_1 = arith.constant 0 : i32
    return %c0_i32, %arg0, %c0_i32_0 : i32, i32, i32
  }
  func.func @transform_1(%arg0: i32) -> (i32, i32, i32) {
    %c0_i32 = arith.constant 0 : i32
    %c0_i32_0 = arith.constant 0 : i32
    %c0_i32_1 = arith.constant 0 : i32
    return %c0_i32, %arg0, %c0_i32_0 : i32, i32, i32
  }
  func.func @transform_2(%arg0: i32) -> (i32, i32) {
    %c0_i32 = arith.constant 0 : i32
    %c0_i32_0 = arith.constant 0 : i32
    return %arg0, %c0_i32 : i32, i32
  }
  func.func @transform_3(%arg0: i32) -> (i32, i32) {
    %c0_i32 = arith.constant 0 : i32
    %c0_i32_0 = arith.constant 0 : i32
    return %arg0, %c0_i32 : i32, i32
  }
  func.func @transform_4(%arg0: i32) -> (i32, i32) {
    %c0_i32 = arith.constant 0 : i32
    %c0_i32_0 = arith.constant 0 : i32
    %c0_i32_1 = arith.constant 0 : i32
    return %c0_i32, %c0_i32_0 : i32, i32
  }
  func.func @transform_5(%arg0: i32) -> (i32, i32) {
    %c0_i32 = arith.constant 0 : i32
    %c0_i32_0 = arith.constant 0 : i32
    %c0_i32_1 = arith.constant 0 : i32
    return %c0_i32, %c0_i32_0 : i32, i32
  }
}

</mosaic_0001>

<llo_original>
// kernel: tpu_custom_call.1
$region0: #{tpu_custom_call.1}
  #allocation0 [shape = 'u32[]', space=smem, size = 0x4, offset = 0x4, fixed_abs, tag = 'smem constant byte address 0x4 - core index']
  #allocation1 [shape = 'u32[144,128]{1,0:T(1,128)}', space=vmem, size = 0x12000, scoped, tag = 'internal scratch']
  #allocation2 [shape = 'f32[2,16]{1,0:T(2,128)}', space=vmem, size = 0x400, scoped, tag = 'scratch operand']
  %s0 = inlined_call_operand.vmem [shape: f32[2,512,512], index: 0, kind: input, shape index: {}]
  %s1 = inlined_call_operand.vmem [shape: f32[2,2048,392], index: 1, kind: input, shape index: {}]
  %s2 = inlined_call_operand.vmem [shape: f32[512,16], index: 2, kind: input, shape index: {}]
  %s3 = inlined_call_operand.vmem [shape: f32[2048,16], index: 3, kind: input, shape index: {}]
  %s4 = inlined_call_operand.vmem [shape: f32[1,16], index: 4, kind: input, shape index: {}]
  %s5 = inlined_call_operand.hbm [shape: f32[2,16], index: 5, kind: output, shape index: {}]
  %s6 = sld [smem:[#allocation0]]
  $region107: #{tpu_custom_call.1} parent=0
    _
  %s8 = ssub.s32 1, %s6
  %s9 = scalar_select 0, %s8, %s6
  $region1: #{tpu_custom_call.1} parent=0
    #allocation3 [shape = 'u8[1048576]{0}', space=vmem, size = 0x100000, scoped, tag = 'input window, operand 0']
    #allocation4 [shape = 'u8[4194304]{0}', space=vmem, size = 0x400000, scoped, tag = 'input window, operand 1']
    #allocation5 [shape = 'u8[1024]{0}', space=vmem, size = 0x400, scoped, tag = 'output window, operand 0, single buffered']
    #allocation6 [shape = 's32[2]{0}', space=sflag, size = 0x8, scoped, tag = 'scoped memory for tpu_custom_call.1']
    %10 = vsyncpa [#allocation6], 0
    loop: start=0, step=1, limit=6
    $region2: #{tpu_custom_call.1} parent=1 // loop_pre_header
      _
    $region3: #{tpu_custom_call.1} parent=1 // loop_header
      %s12 = sphi 0, %s16
      %p13 = scmp.ge.s32.totalorder %s12, 6
      %s22 = sphi 0, %s24
      %s25 = sphi 0, %s22
      %s26 = sphi 0, %s25
      %s42 = sphi 0, %s26
      %s48 = sphi 0, %s50
      %s51 = sphi 0, %s48
      %s52 = sphi 0, %s51
      %s68 = sphi 0, %s52
      %s74 = sphi 0, %s76
      %s77 = sphi 0, %s74
      %s78 = sphi 0, %s77
      %s94 = sphi 0, %s78
      %s100 = sphi 0, %s102
      %s103 = sphi 0, %s100
      %s104 = sphi 0, %s103
      %s120 = sphi 0, %s104
      %s124 = sphi 0, %s124
      %s126 = sphi 0, %s124
      %s127 = sphi 0, %s126
      %s141 = sphi 0, %s127
      %s145 = sphi 0, %s145
      %s147 = sphi 0, %s145
      %s148 = sphi 0, %s147
      %s162 = sphi 0, %s148
    $region4: #{tpu_custom_call.1} parent=1 // loop_header_branch
      %15 = sbr.rel (%p13) target = $region8
    $region5: #{tpu_custom_call.1} parent=1 // loop_body
      %s17 = ssub.s32 %s12, 1
      %s18 = ssub.s32 %s12, 2
      %s19 = sadd.s32 %s12, 1
      %s20 = ssub.s32 %s12, %s19
      %p21 = scmp.eq.s32.totalorder %s20, 0
      %s23 = sadd.s32 %s22, 1
      %s24 = scalar_select %p21, %s22, %s23
      %p27 = pneg %p21
      %p28 = scmp.eq.s32.totalorder %s12, 3
      %p29 = por %p27, %p28
      %p30 = scmp.ne.s32.totalorder %s22, %s25
      %p31 = scmp.eq.s32.totalorder %s12, 0
      %p32 = por %p30, %p31
      %p33 = scmp.ne.s32.totalorder %s22, %s25
      %p34 = scmp.eq.s32.totalorder %s17, 3
      %p35 = por %p33, %p34
      %p36 = scmp.ne.s32.totalorder %s25, %s26
      %p37 = scmp.eq.s32.totalorder %s17, 0
      %p38 = por %p36, %p37
      %p39 = scmp.ne.s32.totalorder %s25, %s26
      %p40 = scmp.eq.s32.totalorder %s18, 3
      %p41 = por %p39, %p40
      %p43 = scmp.ne.s32.totalorder %s26, %s42
      %p44 = scmp.eq.s32.totalorder %s18, 0
      %p45 = por %p43, %p44
      %s46 = ssub.s32 %s12, %s19
      %p47 = scmp.eq.s32.totalorder %s46, 0
      %s49 = sadd.s32 %s48, 1
      %s50 = scalar_select %p47, %s48, %s49
      %p53 = pneg %p47
      %p54 = scmp.eq.s32.totalorder %s12, 3
      %p55 = por %p53, %p54
      %p56 = scmp.ne.s32.totalorder %s48, %s51
      %p57 = scmp.eq.s32.totalorder %s12, 0
      %p58 = por %p56, %p57
      %p59 = scmp.ne.s32.totalorder %s48, %s51
      %p60 = scmp.eq.s32.totalorder %s17, 3
      %p61 = por %p59, %p60
      %p62 = scmp.ne.s32.totalorder %s51, %s52
      %p63 = scmp.eq.s32.totalorder %s17, 0
      %p64 = por %p62, %p63
      %p65 = scmp.ne.s32.totalorder %s51, %s52
      %p66 = scmp.eq.s32.totalorder %s18, 3
      %p67 = por %p65, %p66
      %p69 = scmp.ne.s32.totalorder %s52, %s68
      %p70 = scmp.eq.s32.totalorder %s18, 0
      %p71 = por %p69, %p70
      %s72 = ssub.s32 %s12, %s19
      %p73 = scmp.eq.s32.totalorder %s72, 0
      %s75 = sadd.s32 %s74, 1
      %s76 = scalar_select %p73, %s74, %s75
      %p79 = pneg %p73
      %p80 = scmp.eq.s32.totalorder %s12, 3
      %p81 = por %p79, %p80
      %p82 = scmp.ne.s32.totalorder %s74, %s77
      %p83 = scmp.eq.s32.totalorder %s12, 0
      %p84 = por %p82, %p83
      %p85 = scmp.ne.s32.totalorder %s74, %s77
      %p86 = scmp.eq.s32.totalorder %s17, 3
      %p87 = por %p85, %p86
      %p88 = scmp.ne.s32.totalorder %s77, %s78
      %p89 = scmp.eq.s32.totalorder %s17, 0
      %p90 = por %p88, %p89
      %p91 = scmp.ne.s32.totalorder %s77, %s78
      %p92 = scmp.eq.s32.totalorder %s18, 3
      %p93 = por %p91, %p92
      %p95 = scmp.ne.s32.totalorder %s78, %s94
      %p96 = scmp.eq.s32.totalorder %s18, 0
      %p97 = por %p95, %p96
      %s98 = ssub.s32 %s12, %s19
      %p99 = scmp.eq.s32.totalorder %s98, 0
      %s101 = sadd.s32 %s100, 1
      %s102 = scalar_select %p99, %s100, %s101
      %p105 = pneg %p99
      %p106 = scmp.eq.s32.totalorder %s12, 3
      %p107 = por %p105, %p106
      %p108 = scmp.ne.s32.totalorder %s100, %s103
      %p109 = scmp.eq.s32.totalorder %s12, 0
      %p110 = por %p108, %p109
      %p111 = scmp.ne.s32.totalorder %s100, %s103
      %p112 = scmp.eq.s32.totalorder %s17, 3
      %p113 = por %p111, %p112
      %p114 = scmp.ne.s32.totalorder %s103, %s104
      %p115 = scmp.eq.s32.totalorder %s17, 0
      %p116 = por %p114, %p115
      %p117 = scmp.ne.s32.totalorder %s103, %s104
      %p118 = scmp.eq.s32.totalorder %s18, 3
      %p119 = por %p117, %p118
      %p121 = scmp.ne.s32.totalorder %s104, %s120
      %p122 = scmp.eq.s32.totalorder %s18, 0
      %p123 = por %p121, %p122
      %s125 = sadd.s32 %s124, 1
      %p128 = scmp.eq.s32.totalorder %s12, 3
      %p129 = scmp.ne.s32.totalorder %s124, %s126
      %p130 = scmp.eq.s32.totalorder %s12, 0
      %p131 = por %p129, %p130
      %p132 = scmp.ne.s32.totalorder %s124, %s126
      %p133 = scmp.eq.s32.totalorder %s17, 3
      %p134 = por %p132, %p133
      %p135 = scmp.ne.s32.totalorder %s126, %s127
      %p136 = scmp.eq.s32.totalorder %s17, 0
      %p137 = por %p135, %p136
      %p138 = scmp.ne.s32.totalorder %s126, %s127
      %p139 = scmp.eq.s32.totalorder %s18, 3
      %p140 = por %p138, %p139
      %p142 = scmp.ne.s32.totalorder %s127, %s141
      %p143 = scmp.eq.s32.totalorder %s18, 0
      %p144 = por %p142, %p143
      %s146 = sadd.s32 %s145, 1
      %p149 = scmp.eq.s32.totalorder %s12, 3
      %p150 = scmp.ne.s32.totalorder %s145, %s147
      %p151 = scmp.eq.s32.totalorder %s12, 0
      %p152 = por %p150, %p151
      %p153 = scmp.ne.s32.totalorder %s145, %s147
      %p154 = scmp.eq.s32.totalorder %s17, 3
      %p155 = por %p153, %p154
      %p156 = scmp.ne.s32.totalorder %s147, %s148
      %p157 = scmp.eq.s32.totalorder %s17, 0
      %p158 = por %p156, %p157
      %p159 = scmp.ne.s32.totalorder %s147, %s148
      %p160 = scmp.eq.s32.totalorder %s18, 3
      %p161 = por %p159, %p160
      %p163 = scmp.ne.s32.totalorder %s148, %s162
      %p164 = scmp.eq.s32.totalorder %s18, 0
      %p165 = por %p163, %p164
      %p166 = scmp.le.s32.totalorder 1, %s12
      %p167 = scmp.lt.s32.totalorder %s12, 5
      %p168 = pnand %p166, %p167
      %p169 = pneg %p168
      // Predicated region
      $region9: #{tpu_custom_call.1} parent=5 // pred_check
        _
      $region10: #{tpu_custom_call.1} parent=5 // pred_check_branch
        %171 = sbr.rel (%p168) target = $region12
      $region11: #{tpu_custom_call.1} parent=5 // pred_region
        %s172 = ssub.s32 %s12, 1
        // Predicated region
        $region13: #{tpu_custom_call.1} parent=11 // pred_check
          %p173 = pneg %p137
        $region14: #{tpu_custom_call.1} parent=11 // pred_check_branch
          %175 = sbr.rel (%p173) target = $region16
        $region15: #{tpu_custom_call.1} parent=11 // pred_region
          _
        $region16: #{tpu_custom_call.1} parent=11 // pred_fallthru
          _
      $region12: #{tpu_custom_call.1} parent=5 // pred_fallthru
        _
      %p176 = scmp.lt.s32.totalorder %s12, 4
      // Predicated region
      $region17: #{tpu_custom_call.1} parent=5 // pred_check
        %p177 = pneg %p176
      $region18: #{tpu_custom_call.1} parent=5 // pred_check_branch
        %179 = sbr.rel (%p177) target = $region20
      $region19: #{tpu_custom_call.1} parent=5 // pred_region
        // Predicated region
        $region21: #{tpu_custom_call.1} parent=19 // pred_check
          %p180 = pneg %p32
        $region22: #{tpu_custom_call.1} parent=19 // pred_check_branch
          %182 = sbr.rel (%p180) target = $region24
        $region23: #{tpu_custom_call.1} parent=19 // pred_region
          %s183 = sand.u32 %s22, 1
          %s184 = sand.u32 %s22, 1
          %s185 = smul.addr %s184, 1024
          %s186 = scalar_lea.vmem [#allocation3], %s185
          %s187 = smul.u32 16, %s12
          %s188 = smul.addr %s187, 4
          %s189 = smul.addr %s188, 8
          %s190 = scalar_lea.vmem %s0, %s189
          // Predicated region
          $region25: #{tpu_custom_call.1} parent=23 // pred_check
            _
          $region26: #{tpu_custom_call.1} parent=23 // pred_check_branch
            %192 = sbr.rel (0) target = $region28
          $region27: #{tpu_custom_call.1} parent=23 // pred_region
            // Predicated region
            $region29: #{tpu_custom_call.1} parent=27 // pred_check
              _
            $region30: #{tpu_custom_call.1} parent=27 // pred_check_branch
              %194 = sbr.rel (0) target = $region32
            $region31: #{tpu_custom_call.1} parent=27 // pred_region
              loop: start=0, step=1, limit=1
              $region33: #{tpu_custom_call.1} parent=31 // loop_pre_header
                _
              $region34: #{tpu_custom_call.1} parent=31 // loop_header
                %s196 = sphi 0, %s200
                %p197 = scmp.ge.s32.totalorder %s196, 1
                %s201 = sphi %s190, %s190
                %s202 = sphi %s186, %s186
              $region35: #{tpu_custom_call.1} parent=31 // loop_header_branch
                %199 = sbr.rel (%p197) target = $region39
              $region36: #{tpu_custom_call.1} parent=31 // loop_body
                %v203 = vld [vmem:[%s201] sm:$0xff]
                %204 = vst [vmem:[%s202] sm:$0xff] %v203
                %v205 = vld [vmem:[%s201 + $0x8] sm:$0xff]
                %206 = vst [vmem:[%s202 + $0x8] sm:$0xff] %v205
                %v207 = vld [vmem:[%s201 + $0x10] sm:$0xff]
                %208 = vst [vmem:[%s202 + $0x10] sm:$0xff] %v207
                %v209 = vld [vmem:[%s201 + $0x18] sm:$0xff]
                %210 = vst [vmem:[%s202 + $0x18] sm:$0xff] %v209
                %v211 = vld [vmem:[%s201 + $0x20] sm:$0xff]
                %212 = vst [vmem:[%s202 + $0x20] sm:$0xff] %v211
                %v213 = vld [vmem:[%s201 + $0x28] sm:$0xff]
                %214 = vst [vmem:[%s202 + $0x28] sm:$0xff] %v213
                %v215 = vld [vmem:[%s201 + $0x30] sm:$0xff]
                %216 = vst [vmem:[%s202 + $0x30] sm:$0xff] %v215
                %v217 = vld [vmem:[%s201 + $0x38] sm:$0xff]
                %218 = vst [vmem:[%s202 + $0x38] sm:$0xff] %v217
                %v219 = vld [vmem:[%s201 + $0x40] sm:$0xff]
                %220 = vst [vmem:[%s202 + $0x40] sm:$0xff] %v219
                %v221 = vld [vmem:[%s201 + $0x48] sm:$0xff]
                %222 = vst [vmem:[%s202 + $0x48] sm:$0xff] %v221
                %v223 = vld [vmem:[%s201 + $0x50] sm:$0xff]
                %224 = vst [vmem:[%s202 + $0x50] sm:$0xff] %v223
                %v225 = vld [vmem:[%s201 + $0x58] sm:$0xff]
                %226 = vst [vmem:[%s202 + $0x58] sm:$0xff] %v225
                %v227 = vld [vmem:[%s201 + $0x60] sm:$0xff]
                %228 = vst [vmem:[%s202 + $0x60] sm:$0xff] %v227
                %v229 = vld [vmem:[%s201 + $0x68] sm:$0xff]
                %230 = vst [vmem:[%s202 + $0x68] sm:$0xff] %v229
                %v231 = vld [vmem:[%s201 + $0x70] sm:$0xff]
                %232 = vst [vmem:[%s202 + $0x70] sm:$0xff] %v231
                %v233 = vld [vmem:[%s201 + $0x78] sm:$0xff]
                %234 = vst [vmem:[%s202 + $0x78] sm:$0xff] %v233
                %v235 = vld [vmem:[%s201 + $0x80] sm:$0xff]
                %236 = vst [vmem:[%s202 + $0x80] sm:$0xff] %v235
                %v237 = vld [vmem:[%s201 + $0x88] sm:$0xff]
                %238 = vst [vmem:[%s202 + $0x88] sm:$0xff] %v237
                %v239 = vld [vmem:[%s201 + $0x90] sm:$0xff]
                %240 = vst [vmem:[%s202 + $0x90] sm:$0xff] %v239
                %v241 = vld [vmem:[%s201 + $0x98] sm:$0xff]
                %242 = vst [vmem:[%s202 + $0x98] sm:$0xff] %v241
                %v243 = vld [vmem:[%s201 + $0xa0] sm:$0xff]
                %244 = vst [vmem:[%s202 + $0xa0] sm:$0xff] %v243
                %v245 = vld [vmem:[%s201 + $0xa8] sm:$0xff]
                %246 = vst [vmem:[%s202 + $0xa8] sm:$0xff] %v245
                %v247 = vld [vmem:[%s201 + $0xb0] sm:$0xff]
                %248 = vst [vmem:[%s202 + $0xb0] sm:$0xff] %v247
                %v249 = vld [vmem:[%s201 + $0xb8] sm:$0xff]
                %250 = vst [vmem:[%s202 + $0xb8] sm:$0xff] %v249
                %v251 = vld [vmem:[%s201 + $0xc0] sm:$0xff]
                %252 = vst [vmem:[%s202 + $0xc0] sm:$0xff] %v251
                %v253 = vld [vmem:[%s201 + $0xc8] sm:$0xff]
                %254 = vst [vmem:[%s202 + $0xc8] sm:$0xff] %v253
                %v255 = vld [vmem:[%s201 + $0xd0] sm:$0xff]
                %256 = vst [vmem:[%s202 + $0xd0] sm:$0xff] %v255
                %v257 = vld [vmem:[%s201 + $0xd8] sm:$0xff]
                %258 = vst [vmem:[%s202 + $0xd8] sm:$0xff] %v257
                %v259 = vld [vmem:[%s201 + $0xe0] sm:$0xff]
                %260 = vst [vmem:[%s202 + $0xe0] sm:$0xff] %v259
                %v261 = vld [vmem:[%s201 + $0xe8] sm:$0xff]
                %262 = vst [vmem:[%s202 + $0xe8] sm:$0xff] %v261
                %v263 = vld [vmem:[%s201 + $0xf0] sm:$0xff]
                %264 = vst [vmem:[%s202 + $0xf0] sm:$0xff] %v263
                %v265 = vld [vmem:[%s201 + $0xf8] sm:$0xff]
                %266 = vst [vmem:[%s202 + $0xf8] sm:$0xff] %v265
                %v267 = vld [vmem:[%s201 + $0x100] sm:$0xff]
                %268 = vst [vmem:[%s202 + $0x100] sm:$0xff] %v267
                %v269 = vld [vmem:[%s201 + $0x108] sm:$0xff]
                %270 = vst [vmem:[%s202 + $0x108] sm:$0xff] %v269
                %v271 = vld [vmem:[%s201 + $0x110] sm:$0xff]
                %272 = vst [vmem:[%s202 + $0x110] sm:$0xff] %v271
                %v273 = vld [vmem:[%s201 + $0x118] sm:$0xff]
                %274 = vst [vmem:[%s202 + $0x118] sm:$0xff] %v273
                %v275 = vld [vmem:[%s201 + $0x120] sm:$0xff]
                %276 = vst [vmem:[%s202 + $0x120] sm:$0xff] %v275
                %v277 = vld [vmem:[%s201 + $0x128] sm:$0xff]
                %278 = vst [vmem:[%s202 + $0x128] sm:$0xff] %v277
                %v279 = vld [vmem:[%s201 + $0x130] sm:$0xff]
                %280 = vst [vmem:[%s202 + $0x130] sm:$0xff] %v279
                %v281 = vld [vmem:[%s201 + $0x138] sm:$0xff]
                %282 = vst [vmem:[%s202 + $0x138] sm:$0xff] %v281
                %v283 = vld [vmem:[%s201 + $0x140] sm:$0xff]
                %284 = vst [vmem:[%s202 + $0x140] sm:$0xff] %v283
                %v285 = vld [vmem:[%s201 + $0x148] sm:$0xff]
                %286 = vst [vmem:[%s202 + $0x148] sm:$0xff] %v285
                %v287 = vld [vmem:[%s201 + $0x150] sm:$0xff]
                %288 = vst [vmem:[%s202 + $0x150] sm:$0xff] %v287
                %v289 = vld [vmem:[%s201 + $0x158] sm:$0xff]
                %290 = vst [vmem:[%s202 + $0x158] sm:$0xff] %v289
                %v291 = vld [vmem:[%s201 + $0x160] sm:$0xff]
                %292 = vst [vmem:[%s202 + $0x160] sm:$0xff] %v291
                %v293 = vld [vmem:[%s201 + $0x168] sm:$0xff]
                %294 = vst [vmem:[%s202 + $0x168] sm:$0xff] %v293
                %v295 = vld [vmem:[%s201 + $0x170] sm:$0xff]
                %296 = vst [vmem:[%s202 + $0x170] sm:$0xff] %v295
                %v297 = vld [vmem:[%s201 + $0x178] sm:$0xff]
                %298 = vst [vmem:[%s202 + $0x178] sm:$0xff] %v297
                %v299 = vld [vmem:[%s201 + $0x180] sm:$0xff]
                %300 = vst [vmem:[%s202 + $0x180] sm:$0xff] %v299
                %v301 = vld [vmem:[%s201 + $0x188] sm:$0xff]
                %302 = vst [vmem:[%s202 + $0x188] sm:$0xff] %v301
                %v303 = vld [vmem:[%s201 + $0x190] sm:$0xff]
                %304 = vst [vmem:[%s202 + $0x190] sm:$0xff] %v303
                %v305 = vld [vmem:[%s201 + $0x198] sm:$0xff]
                %306 = vst [vmem:[%s202 + $0x198] sm:$0xff] %v305
                %v307 = vld [vmem:[%s201 + $0x1a0] sm:$0xff]
                %308 = vst [vmem:[%s202 + $0x1a0] sm:$0xff] %v307
                %v309 = vld [vmem:[%s201 + $0x1a8] sm:$0xff]
                %310 = vst [vmem:[%s202 + $0x1a8] sm:$0xff] %v309
                %v311 = vld [vmem:[%s201 + $0x1b0] sm:$0xff]
                %312 = vst [vmem:[%s202 + $0x1b0] sm:$0xff] %v311
                %v313 = vld [vmem:[%s201 + $0x1b8] sm:$0xff]
                %314 = vst [vmem:[%s202 + $0x1b8] sm:$0xff] %v313
                %v315 = vld [vmem:[%s201 + $0x1c0] sm:$0xff]
                %316 = vst [vmem:[%s202 + $0x1c0] sm:$0xff] %v315
                %v317 = vld [vmem:[%s201 + $0x1c8] sm:$0xff]
                %318 = vst [vmem:[%s202 + $0x1c8] sm:$0xff] %v317
                %v319 = vld [vmem:[%s201 + $0x1d0] sm:$0xff]
                %320 = vst [vmem:[%s202 + $0x1d0] sm:$0xff] %v319
                %v321 = vld [vmem:[%s201 + $0x1d8] sm:$0xff]
                %322 = vst [vmem:[%s202 + $0x1d8] sm:$0xff] %v321
                %v323 = vld [vmem:[%s201 + $0x1e0] sm:$0xff]
                %324 = vst [vmem:[%s202 + $0x1e0] sm:$0xff] %v323
                %v325 = vld [vmem:[%s201 + $0x1e8] sm:$0xff]
                %326 = vst [vmem:[%s202 + $0x1e8] sm:$0xff] %v325
                %v327 = vld [vmem:[%s201 + $0x1f0] sm:$0xff]
                %328 = vst [vmem:[%s202 + $0x1f0] sm:$0xff] %v327
                %v329 = vld [vmem:[%s201 + $0x1f8] sm:$0xff]
                %330 = vst [vmem:[%s202 + $0x1f8] sm:$0xff] %v329
                %v331 = vld [vmem:[%s201 + $0x800] sm:$0xff]
                %332 = vst [vmem:[%s202 + $0x200] sm:$0xff] %v331
                %v333 = vld [vmem:[%s201 + $0x808] sm:$0xff]
                %334 = vst [vmem:[%s202 + $0x208] sm:$0xff] %v333
                %v335 = vld [vmem:[%s201 + $0x810] sm:$0xff]
                %336 = vst [vmem:[%s202 + $0x210] sm:$0xff] %v335
                %v337 = vld [vmem:[%s201 + $0x818] sm:$0xff]
                %338 = vst [vmem:[%s202 + $0x218] sm:$0xff] %v337
                %v339 = vld [vmem:[%s201 + $0x820] sm:$0xff]
                %340 = vst [vmem:[%s202 + $0x220] sm:$0xff] %v339
                %v341 = vld [vmem:[%s201 + $0x828] sm:$0xff]
                %342 = vst [vmem:[%s202 + $0x228] sm:$0xff] %v341
                %v343 = vld [vmem:[%s201 + $0x830] sm:$0xff]
                %344 = vst [vmem:[%s202 + $0x230] sm:$0xff] %v343
                %v345 = vld [vmem:[%s201 + $0x838] sm:$0xff]
                %346 = vst [vmem:[%s202 + $0x238] sm:$0xff] %v345
                %v347 = vld [vmem:[%s201 + $0x840] sm:$0xff]
                %348 = vst [vmem:[%s202 + $0x240] sm:$0xff] %v347
                %v349 = vld [vmem:[%s201 + $0x848] sm:$0xff]
                %350 = vst [vmem:[%s202 + $0x248] sm:$0xff] %v349
                %v351 = vld [vmem:[%s201 + $0x850] sm:$0xff]
                %352 = vst [vmem:[%s202 + $0x250] sm:$0xff] %v351
                %v353 = vld [vmem:[%s201 + $0x858] sm:$0xff]
                %354 = vst [vmem:[%s202 + $0x258] sm:$0xff] %v353
                %v355 = vld [vmem:[%s201 + $0x860] sm:$0xff]
                %356 = vst [vmem:[%s202 + $0x260] sm:$0xff] %v355
                %v357 = vld [vmem:[%s201 + $0x868] sm:$0xff]
                %358 = vst [vmem:[%s202 + $0x268] sm:$0xff] %v357
                %v359 = vld [vmem:[%s201 + $0x870] sm:$0xff]
                %360 = vst [vmem:[%s202 + $0x270] sm:$0xff] %v359
                %v361 = vld [vmem:[%s201 + $0x878] sm:$0xff]
                %362 = vst [vmem:[%s202 + $0x278] sm:$0xff] %v361
                %v363 = vld [vmem:[%s201 + $0x880] sm:$0xff]
                %364 = vst [vmem:[%s202 + $0x280] sm:$0xff] %v363
                %v365 = vld [vmem:[%s201 + $0x888] sm:$0xff]
                %366 = vst [vmem:[%s202 + $0x288] sm:$0xff] %v365
                %v367 = vld [vmem:[%s201 + $0x890] sm:$0xff]
                %368 = vst [vmem:[%s202 + $0x290] sm:$0xff] %v367
                %v369 = vld [vmem:[%s201 + $0x898] sm:$0xff]
                %370 = vst [vmem:[%s202 + $0x298] sm:$0xff] %v369
                %v371 = vld [vmem:[%s201 + $0x8a0] sm:$0xff]
                %372 = vst [vmem:[%s202 + $0x2a0] sm:$0xff] %v371
                %v373 = vld [vmem:[%s201 + $0x8a8] sm:$0xff]
                %374 = vst [vmem:[%s202 + $0x2a8] sm:$0xff] %v373
                %v375 = vld [vmem:[%s201 + $0x8b0] sm:$0xff]
                %376 = vst [vmem:[%s202 + $0x2b0] sm:$0xff] %v375
                %v377 = vld [vmem:[%s201 + $0x8b8] sm:$0xff]
                %378 = vst [vmem:[%s202 + $0x2b8] sm:$0xff] %v377
                %v379 = vld [vmem:[%s201 + $0x8c0] sm:$0xff]
                %380 = vst [vmem:[%s202 + $0x2c0] sm:$0xff] %v379
                %v381 = vld [vmem:[%s201 + $0x8c8] sm:$0xff]
                %382 = vst [vmem:[%s202 + $0x2c8] sm:$0xff] %v381
                %v383 = vld [vmem:[%s201 + $0x8d0] sm:$0xff]
                %384 = vst [vmem:[%s202 + $0x2d0] sm:$0xff] %v383
                %v385 = vld [vmem:[%s201 + $0x8d8] sm:$0xff]
                %386 = vst [vmem:[%s202 + $0x2d8] sm:$0xff] %v385
                %v387 = vld [vmem:[%s201 + $0x8e0] sm:$0xff]
                %388 = vst [vmem:[%s202 + $0x2e0] sm:$0xff] %v387
                %v389 = vld [vmem:[%s201 + $0x8e8] sm:$0xff]
                %390 = vst [vmem:[%s202 + $0x2e8] sm:$0xff] %v389
                %v391 = vld [vmem:[%s201 + $0x8f0] sm:$0xff]
                %392 = vst [vmem:[%s202 + $0x2f0] sm:$0xff] %v391
                %v393 = vld [vmem:[%s201 + $0x8f8] sm:$0xff]
                %394 = vst [vmem:[%s202 + $0x2f8] sm:$0xff] %v393
                %v395 = vld [vmem:[%s201 + $0x900] sm:$0xff]
                %396 = vst [vmem:[%s202 + $0x300] sm:$0xff] %v395
                %v397 = vld [vmem:[%s201 + $0x908] sm:$0xff]
                %398 = vst [vmem:[%s202 + $0x308] sm:$0xff] %v397
                %v399 = vld [vmem:[%s201 + $0x910] sm:$0xff]
                %400 = vst [vmem:[%s202 + $0x310] sm:$0xff] %v399
                %v401 = vld [vmem:[%s201 + $0x918] sm:$0xff]
                %402 = vst [vmem:[%s202 + $0x318] sm:$0xff] %v401
                %v403 = vld [vmem:[%s201 + $0x920] sm:$0xff]
                %404 = vst [vmem:[%s202 + $0x320] sm:$0xff] %v403
                %v405 = vld [vmem:[%s201 + $0x928] sm:$0xff]
                %406 = vst [vmem:[%s202 + $0x328] sm:$0xff] %v405
                %v407 = vld [vmem:[%s201 + $0x930] sm:$0xff]
                %408 = vst [vmem:[%s202 + $0x330] sm:$0xff] %v407
                %v409 = vld [vmem:[%s201 + $0x938] sm:$0xff]
                %410 = vst [vmem:[%s202 + $0x338] sm:$0xff] %v409
                %v411 = vld [vmem:[%s201 + $0x940] sm:$0xff]
                %412 = vst [vmem:[%s202 + $0x340] sm:$0xff] %v411
                %v413 = vld [vmem:[%s201 + $0x948] sm:$0xff]
                %414 = vst [vmem:[%s202 + $0x348] sm:$0xff] %v413
                %v415 = vld [vmem:[%s201 + $0x950] sm:$0xff]
                %416 = vst [vmem:[%s202 + $0x350] sm:$0xff] %v415
                %v417 = vld [vmem:[%s201 + $0x958] sm:$0xff]
                %418 = vst [vmem:[%s202 + $0x358] sm:$0xff] %v417
                %v419 = vld [vmem:[%s201 + $0x960] sm:$0xff]
                %420 = vst [vmem:[%s202 + $0x360] sm:$0xff] %v419
                %v421 = vld [vmem:[%s201 + $0x968] sm:$0xff]
                %422 = vst [vmem:[%s202 + $0x368] sm:$0xff] %v421
                %v423 = vld [vmem:[%s201 + $0x970] sm:$0xff]
                %424 = vst [vmem:[%s202 + $0x370] sm:$0xff] %v423
                %v425 = vld [vmem:[%s201 + $0x978] sm:$0xff]
                %426 = vst [vmem:[%s202 + $0x378] sm:$0xff] %v425
                %v427 = vld [vmem:[%s201 + $0x980] sm:$0xff]
                %428 = vst [vmem:[%s202 + $0x380] sm:$0xff] %v427
                %v429 = vld [vmem:[%s201 + $0x988] sm:$0xff]
                %430 = vst [vmem:[%s202 + $0x388] sm:$0xff] %v429
                %v431 = vld [vmem:[%s201 + $0x990] sm:$0xff]
                %432 = vst [vmem:[%s202 + $0x390] sm:$0xff] %v431
                %v433 = vld [vmem:[%s201 + $0x998] sm:$0xff]
                %434 = vst [vmem:[%s202 + $0x398] sm:$0xff] %v433
                %v435 = vld [vmem:[%s201 + $0x9a0] sm:$0xff]
                %436 = vst [vmem:[%s202 + $0x3a0] sm:$0xff] %v435
                %v437 = vld [vmem:[%s201 + $0x9a8] sm:$0xff]
                %438 = vst [vmem:[%s202 + $0x3a8] sm:$0xff] %v437
                %v439 = vld [vmem:[%s201 + $0x9b0] sm:$0xff]
                %440 = vst [vmem:[%s202 + $0x3b0] sm:$0xff] %v439
                %v441 = vld [vmem:[%s201 + $0x9b8] sm:$0xff]
                %442 = vst [vmem:[%s202 + $0x3b8] sm:$0xff] %v441
                %v443 = vld [vmem:[%s201 + $0x9c0] sm:$0xff]
                %444 = vst [vmem:[%s202 + $0x3c0] sm:$0xff] %v443
                %v445 = vld [vmem:[%s201 + $0x9c8] sm:$0xff]
                %446 = vst [vmem:[%s202 + $0x3c8] sm:$0xff] %v445
                %v447 = vld [vmem:[%s201 + $0x9d0] sm:$0xff]
                %448 = vst [vmem:[%s202 + $0x3d0] sm:$0xff] %v447
                %v449 = vld [vmem:[%s201 + $0x9d8] sm:$0xff]
                %450 = vst [vmem:[%s202 + $0x3d8] sm:$0xff] %v449
                %v451 = vld [vmem:[%s201 + $0x9e0] sm:$0xff]
                %452 = vst [vmem:[%s202 + $0x3e0] sm:$0xff] %v451
                %v453 = vld [vmem:[%s201 + $0x9e8] sm:$0xff]
                %454 = vst [vmem:[%s202 + $0x3e8] sm:$0xff] %v453
                %v455 = vld [vmem:[%s201 + $0x9f0] sm:$0xff]
                %456 = vst [vmem:[%s202 + $0x3f0] sm:$0xff] %v455
                %v457 = vld [vmem:[%s201 + $0x9f8] sm:$0xff]
                %458 = vst [vmem:[%s202 + $0x3f8] sm:$0xff] %v457
              $region37: #{tpu_custom_call.1} parent=31 // loop_footer
                %s200 = sadd.s32 1, %s196
              $region38: #{tpu_custom_call.1} parent=31 // loop_footer_branch
                %195 = sbr.rel target = $region34
              $region39: #{tpu_custom_call.1} parent=31 // loop_exit
                _
            $region32: #{tpu_custom_call.1} parent=27 // pred_fallthru
              _
            // Predicated region
            $region40: #{tpu_custom_call.1} parent=27 // pred_check
              _
            $region41: #{tpu_custom_call.1} parent=27 // pred_check_branch
              %460 = sbr.rel target = $region43
            $region42: #{tpu_custom_call.1} parent=27 // pred_region
              _
            $region43: #{tpu_custom_call.1} parent=27 // pred_fallthru
              _
          $region28: #{tpu_custom_call.1} parent=23 // pred_fallthru
            _
          %461 = vnop
        $region24: #{tpu_custom_call.1} parent=19 // pred_fallthru
          _
        // Predicated region
        $region44: #{tpu_custom_call.1} parent=19 // pred_check
          %p462 = pneg %p58
        $region45: #{tpu_custom_call.1} parent=19 // pred_check_branch
          %464 = sbr.rel (%p462) target = $region47
        $region46: #{tpu_custom_call.1} parent=19 // pred_region
          %s465 = sand.u32 %s48, 1
          %s466 = sand.u32 %s48, 1
          %s467 = smul.addr %s466, 4096
          %s468 = scalar_lea.vmem [#allocation4], %s467
          %s469 = smul.u32 64, %s12
          %s470 = smul.addr %s469, 4
          %s471 = smul.addr %s470, 8
          %s472 = scalar_lea.vmem %s1, %s471
          // Predicated region
          $region48: #{tpu_custom_call.1} parent=46 // pred_check
            _
          $region49: #{tpu_custom_call.1} parent=46 // pred_check_branch
            %474 = sbr.rel (0) target = $region51
          $region50: #{tpu_custom_call.1} parent=46 // pred_region
            // Predicated region
            $region52: #{tpu_custom_call.1} parent=50 // pred_check
              _
            $region53: #{tpu_custom_call.1} parent=50 // pred_check_branch
              %476 = sbr.rel (0) target = $region55
            $region54: #{tpu_custom_call.1} parent=50 // pred_region
              loop: start=0, step=1, limit=1
              $region56: #{tpu_custom_call.1} parent=54 // loop_pre_header
                _
              $region57: #{tpu_custom_call.1} parent=54 // loop_header
                %s478 = sphi 0, %s482
                %p479 = scmp.ge.s32.totalorder %s478, 1
                %s483 = sphi %s472, %s472
                %s484 = sphi %s468, %s468
              $region58: #{tpu_custom_call.1} parent=54 // loop_header_branch
                %481 = sbr.rel (%p479) target = $region62
              $region59: #{tpu_custom_call.1} parent=54 // loop_body
                %v485 = vld [vmem:[%s483] sm:$0xff]
                %486 = vst [vmem:[%s484] sm:$0xff] %v485
                %v487 = vld [vmem:[%s483 + $0x8] sm:$0xff]
                %488 = vst [vmem:[%s484 + $0x8] sm:$0xff] %v487
                %v489 = vld [vmem:[%s483 + $0x10] sm:$0xff]
                %490 = vst [vmem:[%s484 + $0x10] sm:$0xff] %v489
                %v491 = vld [vmem:[%s483 + $0x18] sm:$0xff]
                %492 = vst [vmem:[%s484 + $0x18] sm:$0xff] %v491
                %v493 = vld [vmem:[%s483 + $0x20] sm:$0xff]
                %494 = vst [vmem:[%s484 + $0x20] sm:$0xff] %v493
                %v495 = vld [vmem:[%s483 + $0x28] sm:$0xff]
                %496 = vst [vmem:[%s484 + $0x28] sm:$0xff] %v495
                %v497 = vld [vmem:[%s483 + $0x30] sm:$0xff]
                %498 = vst [vmem:[%s484 + $0x30] sm:$0xff] %v497
                %v499 = vld [vmem:[%s483 + $0x38] sm:$0xff]
                %500 = vst [vmem:[%s484 + $0x38] sm:$0xff] %v499
                %v501 = vld [vmem:[%s483 + $0x40] sm:$0xff]
                %502 = vst [vmem:[%s484 + $0x40] sm:$0xff] %v501
                %v503 = vld [vmem:[%s483 + $0x48] sm:$0xff]
                %504 = vst [vmem:[%s484 + $0x48] sm:$0xff] %v503
                %v505 = vld [vmem:[%s483 + $0x50] sm:$0xff]
                %506 = vst [vmem:[%s484 + $0x50] sm:$0xff] %v505
                %v507 = vld [vmem:[%s483 + $0x58] sm:$0xff]
                %508 = vst [vmem:[%s484 + $0x58] sm:$0xff] %v507
                %v509 = vld [vmem:[%s483 + $0x60] sm:$0xff]
                %510 = vst [vmem:[%s484 + $0x60] sm:$0xff] %v509
                %v511 = vld [vmem:[%s483 + $0x68] sm:$0xff]
                %512 = vst [vmem:[%s484 + $0x68] sm:$0xff] %v511
                %v513 = vld [vmem:[%s483 + $0x70] sm:$0xff]
                %514 = vst [vmem:[%s484 + $0x70] sm:$0xff] %v513
                %v515 = vld [vmem:[%s483 + $0x78] sm:$0xff]
                %516 = vst [vmem:[%s484 + $0x78] sm:$0xff] %v515
                %v517 = vld [vmem:[%s483 + $0x80] sm:$0xff]
                %518 = vst [vmem:[%s484 + $0x80] sm:$0xff] %v517
                %v519 = vld [vmem:[%s483 + $0x88] sm:$0xff]
                %520 = vst [vmem:[%s484 + $0x88] sm:$0xff] %v519
                %v521 = vld [vmem:[%s483 + $0x90] sm:$0xff]
                %522 = vst [vmem:[%s484 + $0x90] sm:$0xff] %v521
                %v523 = vld [vmem:[%s483 + $0x98] sm:$0xff]
                %524 = vst [vmem:[%s484 + $0x98] sm:$0xff] %v523
                %v525 = vld [vmem:[%s483 + $0xa0] sm:$0xff]
                %526 = vst [vmem:[%s484 + $0xa0] sm:$0xff] %v525
                %v527 = vld [vmem:[%s483 + $0xa8] sm:$0xff]
                %528 = vst [vmem:[%s484 + $0xa8] sm:$0xff] %v527
                %v529 = vld [vmem:[%s483 + $0xb0] sm:$0xff]
                %530 = vst [vmem:[%s484 + $0xb0] sm:$0xff] %v529
                %v531 = vld [vmem:[%s483 + $0xb8] sm:$0xff]
                %532 = vst [vmem:[%s484 + $0xb8] sm:$0xff] %v531
                %v533 = vld [vmem:[%s483 + $0xc0] sm:$0xff]
                %534 = vst [vmem:[%s484 + $0xc0] sm:$0xff] %v533
                %v535 = vld [vmem:[%s483 + $0xc8] sm:$0xff]
                %536 = vst [vmem:[%s484 + $0xc8] sm:$0xff] %v535
                %v537 = vld [vmem:[%s483 + $0xd0] sm:$0xff]
                %538 = vst [vmem:[%s484 + $0xd0] sm:$0xff] %v537
                %v539 = vld [vmem:[%s483 + $0xd8] sm:$0xff]
                %540 = vst [vmem:[%s484 + $0xd8] sm:$0xff] %v539
                %v541 = vld [vmem:[%s483 + $0xe0] sm:$0xff]
                %542 = vst [vmem:[%s484 + $0xe0] sm:$0xff] %v541
                %v543 = vld [vmem:[%s483 + $0xe8] sm:$0xff]
                %544 = vst [vmem:[%s484 + $0xe8] sm:$0xff] %v543
                %v545 = vld [vmem:[%s483 + $0xf0] sm:$0xff]
                %546 = vst [vmem:[%s484 + $0xf0] sm:$0xff] %v545
                %v547 = vld [vmem:[%s483 + $0xf8] sm:$0xff]
                %548 = vst [vmem:[%s484 + $0xf8] sm:$0xff] %v547
                %v549 = vld [vmem:[%s483 + $0x100] sm:$0xff]
                %550 = vst [vmem:[%s484 + $0x100] sm:$0xff] %v549
                %v551 = vld [vmem:[%s483 + $0x108] sm:$0xff]
                %552 = vst [vmem:[%s484 + $0x108] sm:$0xff] %v551
                %v553 = vld [vmem:[%s483 + $0x110] sm:$0xff]
                %554 = vst [vmem:[%s484 + $0x110] sm:$0xff] %v553
                %v555 = vld [vmem:[%s483 + $0x118] sm:$0xff]
                %556 = vst [vmem:[%s484 + $0x118] sm:$0xff] %v555
                %v557 = vld [vmem:[%s483 + $0x120] sm:$0xff]
                %558 = vst [vmem:[%s484 + $0x120] sm:$0xff] %v557
                %v559 = vld [vmem:[%s483 + $0x128] sm:$0xff]
                %560 = vst [vmem:[%s484 + $0x128] sm:$0xff] %v559
                %v561 = vld [vmem:[%s483 + $0x130] sm:$0xff]
                %562 = vst [vmem:[%s484 + $0x130] sm:$0xff] %v561
                %v563 = vld [vmem:[%s483 + $0x138] sm:$0xff]
                %564 = vst [vmem:[%s484 + $0x138] sm:$0xff] %v563
                %v565 = vld [vmem:[%s483 + $0x140] sm:$0xff]
                %566 = vst [vmem:[%s484 + $0x140] sm:$0xff] %v565
                %v567 = vld [vmem:[%s483 + $0x148] sm:$0xff]
                %568 = vst [vmem:[%s484 + $0x148] sm:$0xff] %v567
                %v569 = vld [vmem:[%s483 + $0x150] sm:$0xff]
                %570 = vst [vmem:[%s484 + $0x150] sm:$0xff] %v569
                %v571 = vld [vmem:[%s483 + $0x158] sm:$0xff]
                %572 = vst [vmem:[%s484 + $0x158] sm:$0xff] %v571
                %v573 = vld [vmem:[%s483 + $0x160] sm:$0xff]
                %574 = vst [vmem:[%s484 + $0x160] sm:$0xff] %v573
                %v575 = vld [vmem:[%s483 + $0x168] sm:$0xff]
                %576 = vst [vmem:[%s484 + $0x168] sm:$0xff] %v575
                %v577 = vld [vmem:[%s483 + $0x170] sm:$0xff]
                %578 = vst [vmem:[%s484 + $0x170] sm:$0xff] %v577
                %v579 = vld [vmem:[%s483 + $0x178] sm:$0xff]
                %580 = vst [vmem:[%s484 + $0x178] sm:$0xff] %v579
                %v581 = vld [vmem:[%s483 + $0x180] sm:$0xff]
                %582 = vst [vmem:[%s484 + $0x180] sm:$0xff] %v581
                %v583 = vld [vmem:[%s483 + $0x188] sm:$0xff]
                %584 = vst [vmem:[%s484 + $0x188] sm:$0xff] %v583
                %v585 = vld [vmem:[%s483 + $0x190] sm:$0xff]
                %586 = vst [vmem:[%s484 + $0x190] sm:$0xff] %v585
                %v587 = vld [vmem:[%s483 + $0x198] sm:$0xff]
                %588 = vst [vmem:[%s484 + $0x198] sm:$0xff] %v587
                %v589 = vld [vmem:[%s483 + $0x1a0] sm:$0xff]
                %590 = vst [vmem:[%s484 + $0x1a0] sm:$0xff] %v589
                %v591 = vld [vmem:[%s483 + $0x1a8] sm:$0xff]
                %592 = vst [vmem:[%s484 + $0x1a8] sm:$0xff] %v591
                %v593 = vld [vmem:[%s483 + $0x1b0] sm:$0xff]
                %594 = vst [vmem:[%s484 + $0x1b0] sm:$0xff] %v593
                %v595 = vld [vmem:[%s483 + $0x1b8] sm:$0xff]
                %596 = vst [vmem:[%s484 + $0x1b8] sm:$0xff] %v595
                %v597 = vld [vmem:[%s483 + $0x1c0] sm:$0xff]
                %598 = vst [vmem:[%s484 + $0x1c0] sm:$0xff] %v597
                %v599 = vld [vmem:[%s483 + $0x1c8] sm:$0xff]
                %600 = vst [vmem:[%s484 + $0x1c8] sm:$0xff] %v599
                %v601 = vld [vmem:[%s483 + $0x1d0] sm:$0xff]
                %602 = vst [vmem:[%s484 + $0x1d0] sm:$0xff] %v601
                %v603 = vld [vmem:[%s483 + $0x1d8] sm:$0xff]
                %604 = vst [vmem:[%s484 + $0x1d8] sm:$0xff] %v603
                %v605 = vld [vmem:[%s483 + $0x1e0] sm:$0xff]
                %606 = vst [vmem:[%s484 + $0x1e0] sm:$0xff] %v605
                %v607 = vld [vmem:[%s483 + $0x1e8] sm:$0xff]
                %608 = vst [vmem:[%s484 + $0x1e8] sm:$0xff] %v607
                %v609 = vld [vmem:[%s483 + $0x1f0] sm:$0xff]
                %610 = vst [vmem:[%s484 + $0x1f0] sm:$0xff] %v609
                %v611 = vld [vmem:[%s483 + $0x1f8] sm:$0xff]
                %612 = vst [vmem:[%s484 + $0x1f8] sm:$0xff] %v611
                %v613 = vld [vmem:[%s483 + $0x200] sm:$0xff]
                %614 = vst [vmem:[%s484 + $0x200] sm:$0xff] %v613
                %v615 = vld [vmem:[%s483 + $0x208] sm:$0xff]
                %616 = vst [vmem:[%s484 + $0x208] sm:$0xff] %v615
                %v617 = vld [vmem:[%s483 + $0x210] sm:$0xff]
                %618 = vst [vmem:[%s484 + $0x210] sm:$0xff] %v617
                %v619 = vld [vmem:[%s483 + $0x218] sm:$0xff]
                %620 = vst [vmem:[%s484 + $0x218] sm:$0xff] %v619
                %v621 = vld [vmem:[%s483 + $0x220] sm:$0xff]
                %622 = vst [vmem:[%s484 + $0x220] sm:$0xff] %v621
                %v623 = vld [vmem:[%s483 + $0x228] sm:$0xff]
                %624 = vst [vmem:[%s484 + $0x228] sm:$0xff] %v623
                %v625 = vld [vmem:[%s483 + $0x230] sm:$0xff]
                %626 = vst [vmem:[%s484 + $0x230] sm:$0xff] %v625
                %v627 = vld [vmem:[%s483 + $0x238] sm:$0xff]
                %628 = vst [vmem:[%s484 + $0x238] sm:$0xff] %v627
                %v629 = vld [vmem:[%s483 + $0x240] sm:$0xff]
                %630 = vst [vmem:[%s484 + $0x240] sm:$0xff] %v629
                %v631 = vld [vmem:[%s483 + $0x248] sm:$0xff]
                %632 = vst [vmem:[%s484 + $0x248] sm:$0xff] %v631
                %v633 = vld [vmem:[%s483 + $0x250] sm:$0xff]
                %634 = vst [vmem:[%s484 + $0x250] sm:$0xff] %v633
                %v635 = vld [vmem:[%s483 + $0x258] sm:$0xff]
                %636 = vst [vmem:[%s484 + $0x258] sm:$0xff] %v635
                %v637 = vld [vmem:[%s483 + $0x260] sm:$0xff]
                %638 = vst [vmem:[%s484 + $0x260] sm:$0xff] %v637
                %v639 = vld [vmem:[%s483 + $0x268] sm:$0xff]
                %640 = vst [vmem:[%s484 + $0x268] sm:$0xff] %v639
                %v641 = vld [vmem:[%s483 + $0x270] sm:$0xff]
                %642 = vst [vmem:[%s484 + $0x270] sm:$0xff] %v641
                %v643 = vld [vmem:[%s483 + $0x278] sm:$0xff]
                %644 = vst [vmem:[%s484 + $0x278] sm:$0xff] %v643
                %v645 = vld [vmem:[%s483 + $0x280] sm:$0xff]
                %646 = vst [vmem:[%s484 + $0x280] sm:$0xff] %v645
                %v647 = vld [vmem:[%s483 + $0x288] sm:$0xff]
                %648 = vst [vmem:[%s484 + $0x288] sm:$0xff] %v647
                %v649 = vld [vmem:[%s483 + $0x290] sm:$0xff]
                %650 = vst [vmem:[%s484 + $0x290] sm:$0xff] %v649
                %v651 = vld [vmem:[%s483 + $0x298] sm:$0xff]
                %652 = vst [vmem:[%s484 + $0x298] sm:$0xff] %v651
                %v653 = vld [vmem:[%s483 + $0x2a0] sm:$0xff]
                %654 = vst [vmem:[%s484 + $0x2a0] sm:$0xff] %v653
                %v655 = vld [vmem:[%s483 + $0x2a8] sm:$0xff]
                %656 = vst [vmem:[%s484 + $0x2a8] sm:$0xff] %v655
                %v657 = vld [vmem:[%s483 + $0x2b0] sm:$0xff]
                %658 = vst [vmem:[%s484 + $0x2b0] sm:$0xff] %v657
                %v659 = vld [vmem:[%s483 + $0x2b8] sm:$0xff]
                %660 = vst [vmem:[%s484 + $0x2b8] sm:$0xff] %v659
                %v661 = vld [vmem:[%s483 + $0x2c0] sm:$0xff]
                %662 = vst [vmem:[%s484 + $0x2c0] sm:$0xff] %v661
                %v663 = vld [vmem:[%s483 + $0x2c8] sm:$0xff]
                %664 = vst [vmem:[%s484 + $0x2c8] sm:$0xff] %v663
                %v665 = vld [vmem:[%s483 + $0x2d0] sm:$0xff]
                %666 = vst [vmem:[%s484 + $0x2d0] sm:$0xff] %v665
                %v667 = vld [vmem:[%s483 + $0x2d8] sm:$0xff]
                %668 = vst [vmem:[%s484 + $0x2d8] sm:$0xff] %v667
                %v669 = vld [vmem:[%s483 + $0x2e0] sm:$0xff]
                %670 = vst [vmem:[%s484 + $0x2e0] sm:$0xff] %v669
                %v671 = vld [vmem:[%s483 + $0x2e8] sm:$0xff]
                %672 = vst [vmem:[%s484 + $0x2e8] sm:$0xff] %v671
                %v673 = vld [vmem:[%s483 + $0x2f0] sm:$0xff]
                %674 = vst [vmem:[%s484 + $0x2f0] sm:$0xff] %v673
                %v675 = vld [vmem:[%s483 + $0x2f8] sm:$0xff]
                %676 = vst [vmem:[%s484 + $0x2f8] sm:$0xff] %v675
                %v677 = vld [vmem:[%s483 + $0x300] sm:$0xff]
                %678 = vst [vmem:[%s484 + $0x300] sm:$0xff] %v677
                %v679 = vld [vmem:[%s483 + $0x308] sm:$0xff]
                %680 = vst [vmem:[%s484 + $0x308] sm:$0xff] %v679
                %v681 = vld [vmem:[%s483 + $0x310] sm:$0xff]
                %682 = vst [vmem:[%s484 + $0x310] sm:$0xff] %v681
                %v683 = vld [vmem:[%s483 + $0x318] sm:$0xff]
                %684 = vst [vmem:[%s484 + $0x318] sm:$0xff] %v683
                %v685 = vld [vmem:[%s483 + $0x320] sm:$0xff]
                %686 = vst [vmem:[%s484 + $0x320] sm:$0xff] %v685
                %v687 = vld [vmem:[%s483 + $0x328] sm:$0xff]
                %688 = vst [vmem:[%s484 + $0x328] sm:$0xff] %v687
                %v689 = vld [vmem:[%s483 + $0x330] sm:$0xff]
                %690 = vst [vmem:[%s484 + $0x330] sm:$0xff] %v689
                %v691 = vld [vmem:[%s483 + $0x338] sm:$0xff]
                %692 = vst [vmem:[%s484 + $0x338] sm:$0xff] %v691
                %v693 = vld [vmem:[%s483 + $0x340] sm:$0xff]
                %694 = vst [vmem:[%s484 + $0x340] sm:$0xff] %v693
                %v695 = vld [vmem:[%s483 + $0x348] sm:$0xff]
                %696 = vst [vmem:[%s484 + $0x348] sm:$0xff] %v695
                %v697 = vld [vmem:[%s483 + $0x350] sm:$0xff]
                %698 = vst [vmem:[%s484 + $0x350] sm:$0xff] %v697
                %v699 = vld [vmem:[%s483 + $0x358] sm:$0xff]
                %700 = vst [vmem:[%s484 + $0x358] sm:$0xff] %v699
                %v701 = vld [vmem:[%s483 + $0x360] sm:$0xff]
                %702 = vst [vmem:[%s484 + $0x360] sm:$0xff] %v701
                %v703 = vld [vmem:[%s483 + $0x368] sm:$0xff]
                %704 = vst [vmem:[%s484 + $0x368] sm:$0xff] %v703
                %v705 = vld [vmem:[%s483 + $0x370] sm:$0xff]
                %706 = vst [vmem:[%s484 + $0x370] sm:$0xff] %v705
                %v707 = vld [vmem:[%s483 + $0x378] sm:$0xff]
                %708 = vst [vmem:[%s484 + $0x378] sm:$0xff] %v707
                %v709 = vld [vmem:[%s483 + $0x380] sm:$0xff]
                %710 = vst [vmem:[%s484 + $0x380] sm:$0xff] %v709
                %v711 = vld [vmem:[%s483 + $0x388] sm:$0xff]
                %712 = vst [vmem:[%s484 + $0x388] sm:$0xff] %v711
                %v713 = vld [vmem:[%s483 + $0x390] sm:$0xff]
                %714 = vst [vmem:[%s484 + $0x390] sm:$0xff] %v713
                %v715 = vld [vmem:[%s483 + $0x398] sm:$0xff]
                %716 = vst [vmem:[%s484 + $0x398] sm:$0xff] %v715
                %v717 = vld [vmem:[%s483 + $0x3a0] sm:$0xff]
                %718 = vst [vmem:[%s484 + $0x3a0] sm:$0xff] %v717
                %v719 = vld [vmem:[%s483 + $0x3a8] sm:$0xff]
                %720 = vst [vmem:[%s484 + $0x3a8] sm:$0xff] %v719
                %v721 = vld [vmem:[%s483 + $0x3b0] sm:$0xff]
                %722 = vst [vmem:[%s484 + $0x3b0] sm:$0xff] %v721
                %v723 = vld [vmem:[%s483 + $0x3b8] sm:$0xff]
                %724 = vst [vmem:[%s484 + $0x3b8] sm:$0xff] %v723
                %v725 = vld [vmem:[%s483 + $0x3c0] sm:$0xff]
                %726 = vst [vmem:[%s484 + $0x3c0] sm:$0xff] %v725
                %v727 = vld [vmem:[%s483 + $0x3c8] sm:$0xff]
                %728 = vst [vmem:[%s484 + $0x3c8] sm:$0xff] %v727
                %v729 = vld [vmem:[%s483 + $0x3d0] sm:$0xff]
                %730 = vst [vmem:[%s484 + $0x3d0] sm:$0xff] %v729
                %v731 = vld [vmem:[%s483 + $0x3d8] sm:$0xff]
                %732 = vst [vmem:[%s484 + $0x3d8] sm:$0xff] %v731
                %v733 = vld [vmem:[%s483 + $0x3e0] sm:$0xff]
                %734 = vst [vmem:[%s484 + $0x3e0] sm:$0xff] %v733
                %v735 = vld [vmem:[%s483 + $0x3e8] sm:$0xff]
                %736 = vst [vmem:[%s484 + $0x3e8] sm:$0xff] %v735
                %v737 = vld [vmem:[%s483 + $0x3f0] sm:$0xff]
                %738 = vst [vmem:[%s484 + $0x3f0] sm:$0xff] %v737
                %v739 = vld [vmem:[%s483 + $0x3f8] sm:$0xff]
                %740 = vst [vmem:[%s484 + $0x3f8] sm:$0xff] %v739
                %v741 = vld [vmem:[%s483 + $0x400] sm:$0xff]
                %742 = vst [vmem:[%s484 + $0x400] sm:$0xff] %v741
                %v743 = vld [vmem:[%s483 + $0x408] sm:$0xff]
                %744 = vst [vmem:[%s484 + $0x408] sm:$0xff] %v743
                %v745 = vld [vmem:[%s483 + $0x410] sm:$0xff]
                %746 = vst [vmem:[%s484 + $0x410] sm:$0xff] %v745
                %v747 = vld [vmem:[%s483 + $0x418] sm:$0xff]
                %748 = vst [vmem:[%s484 + $0x418] sm:$0xff] %v747
                %v749 = vld [vmem:[%s483 + $0x420] sm:$0xff]
                %750 = vst [vmem:[%s484 + $0x420] sm:$0xff] %v749
                %v751 = vld [vmem:[%s483 + $0x428] sm:$0xff]
                %752 = vst [vmem:[%s484 + $0x428] sm:$0xff] %v751
                %v753 = vld [vmem:[%s483 + $0x430] sm:$0xff]
                %754 = vst [vmem:[%s484 + $0x430] sm:$0xff] %v753
                %v755 = vld [vmem:[%s483 + $0x438] sm:$0xff]
                %756 = vst [vmem:[%s484 + $0x438] sm:$0xff] %v755
                %v757 = vld [vmem:[%s483 + $0x440] sm:$0xff]
                %758 = vst [vmem:[%s484 + $0x440] sm:$0xff] %v757
                %v759 = vld [vmem:[%s483 + $0x448] sm:$0xff]
                %760 = vst [vmem:[%s484 + $0x448] sm:$0xff] %v759
                %v761 = vld [vmem:[%s483 + $0x450] sm:$0xff]
                %762 = vst [vmem:[%s484 + $0x450] sm:$0xff] %v761
                %v763 = vld [vmem:[%s483 + $0x458] sm:$0xff]
                %764 = vst [vmem:[%s484 + $0x458] sm:$0xff] %v763
                %v765 = vld [vmem:[%s483 + $0x460] sm:$0xff]
                %766 = vst [vmem:[%s484 + $0x460] sm:$0xff] %v765
                %v767 = vld [vmem:[%s483 + $0x468] sm:$0xff]
                %768 = vst [vmem:[%s484 + $0x468] sm:$0xff] %v767
                %v769 = vld [vmem:[%s483 + $0x470] sm:$0xff]
                %770 = vst [vmem:[%s484 + $0x470] sm:$0xff] %v769
                %v771 = vld [vmem:[%s483 + $0x478] sm:$0xff]
                %772 = vst [vmem:[%s484 + $0x478] sm:$0xff] %v771
                %v773 = vld [vmem:[%s483 + $0x480] sm:$0xff]
                %774 = vst [vmem:[%s484 + $0x480] sm:$0xff] %v773
                %v775 = vld [vmem:[%s483 + $0x488] sm:$0xff]
                %776 = vst [vmem:[%s484 + $0x488] sm:$0xff] %v775
                %v777 = vld [vmem:[%s483 + $0x490] sm:$0xff]
                %778 = vst [vmem:[%s484 + $0x490] sm:$0xff] %v777
                %v779 = vld [vmem:[%s483 + $0x498] sm:$0xff]
                %780 = vst [vmem:[%s484 + $0x498] sm:$0xff] %v779
                %v781 = vld [vmem:[%s483 + $0x4a0] sm:$0xff]
                %782 = vst [vmem:[%s484 + $0x4a0] sm:$0xff] %v781
                %v783 = vld [vmem:[%s483 + $0x4a8] sm:$0xff]
                %784 = vst [vmem:[%s484 + $0x4a8] sm:$0xff] %v783
                %v785 = vld [vmem:[%s483 + $0x4b0] sm:$0xff]
                %786 = vst [vmem:[%s484 + $0x4b0] sm:$0xff] %v785
                %v787 = vld [vmem:[%s483 + $0x4b8] sm:$0xff]
                %788 = vst [vmem:[%s484 + $0x4b8] sm:$0xff] %v787
                %v789 = vld [vmem:[%s483 + $0x4c0] sm:$0xff]
                %790 = vst [vmem:[%s484 + $0x4c0] sm:$0xff] %v789
                %v791 = vld [vmem:[%s483 + $0x4c8] sm:$0xff]
                %792 = vst [vmem:[%s484 + $0x4c8] sm:$0xff] %v791
                %v793 = vld [vmem:[%s483 + $0x4d0] sm:$0xff]
                %794 = vst [vmem:[%s484 + $0x4d0] sm:$0xff] %v793
                %v795 = vld [vmem:[%s483 + $0x4d8] sm:$0xff]
                %796 = vst [vmem:[%s484 + $0x4d8] sm:$0xff] %v795
                %v797 = vld [vmem:[%s483 + $0x4e0] sm:$0xff]
                %798 = vst [vmem:[%s484 + $0x4e0] sm:$0xff] %v797
                %v799 = vld [vmem:[%s483 + $0x4e8] sm:$0xff]
                %800 = vst [vmem:[%s484 + $0x4e8] sm:$0xff] %v799
                %v801 = vld [vmem:[%s483 + $0x4f0] sm:$0xff]
                %802 = vst [vmem:[%s484 + $0x4f0] sm:$0xff] %v801
                %v803 = vld [vmem:[%s483 + $0x4f8] sm:$0xff]
                %804 = vst [vmem:[%s484 + $0x4f8] sm:$0xff] %v803
                %v805 = vld [vmem:[%s483 + $0x500] sm:$0xff]
                %806 = vst [vmem:[%s484 + $0x500] sm:$0xff] %v805
                %v807 = vld [vmem:[%s483 + $0x508] sm:$0xff]
                %808 = vst [vmem:[%s484 + $0x508] sm:$0xff] %v807
                %v809 = vld [vmem:[%s483 + $0x510] sm:$0xff]
                %810 = vst [vmem:[%s484 + $0x510] sm:$0xff] %v809
                %v811 = vld [vmem:[%s483 + $0x518] sm:$0xff]
                %812 = vst [vmem:[%s484 + $0x518] sm:$0xff] %v811
                %v813 = vld [vmem:[%s483 + $0x520] sm:$0xff]
                %814 = vst [vmem:[%s484 + $0x520] sm:$0xff] %v813
                %v815 = vld [vmem:[%s483 + $0x528] sm:$0xff]
                %816 = vst [vmem:[%s484 + $0x528] sm:$0xff] %v815
                %v817 = vld [vmem:[%s483 + $0x530] sm:$0xff]
                %818 = vst [vmem:[%s484 + $0x530] sm:$0xff] %v817
                %v819 = vld [vmem:[%s483 + $0x538] sm:$0xff]
                %820 = vst [vmem:[%s484 + $0x538] sm:$0xff] %v819
                %v821 = vld [vmem:[%s483 + $0x540] sm:$0xff]
                %822 = vst [vmem:[%s484 + $0x540] sm:$0xff] %v821
                %v823 = vld [vmem:[%s483 + $0x548] sm:$0xff]
                %824 = vst [vmem:[%s484 + $0x548] sm:$0xff] %v823
                %v825 = vld [vmem:[%s483 + $0x550] sm:$0xff]
                %826 = vst [vmem:[%s484 + $0x550] sm:$0xff] %v825
                %v827 = vld [vmem:[%s483 + $0x558] sm:$0xff]
                %828 = vst [vmem:[%s484 + $0x558] sm:$0xff] %v827
                %v829 = vld [vmem:[%s483 + $0x560] sm:$0xff]
                %830 = vst [vmem:[%s484 + $0x560] sm:$0xff] %v829
                %v831 = vld [vmem:[%s483 + $0x568] sm:$0xff]
                %832 = vst [vmem:[%s484 + $0x568] sm:$0xff] %v831
                %v833 = vld [vmem:[%s483 + $0x570] sm:$0xff]
                %834 = vst [vmem:[%s484 + $0x570] sm:$0xff] %v833
                %v835 = vld [vmem:[%s483 + $0x578] sm:$0xff]
                %836 = vst [vmem:[%s484 + $0x578] sm:$0xff] %v835
                %v837 = vld [vmem:[%s483 + $0x580] sm:$0xff]
                %838 = vst [vmem:[%s484 + $0x580] sm:$0xff] %v837
                %v839 = vld [vmem:[%s483 + $0x588] sm:$0xff]
                %840 = vst [vmem:[%s484 + $0x588] sm:$0xff] %v839
                %v841 = vld [vmem:[%s483 + $0x590] sm:$0xff]
                %842 = vst [vmem:[%s484 + $0x590] sm:$0xff] %v841
                %v843 = vld [vmem:[%s483 + $0x598] sm:$0xff]
                %844 = vst [vmem:[%s484 + $0x598] sm:$0xff] %v843
                %v845 = vld [vmem:[%s483 + $0x5a0] sm:$0xff]
                %846 = vst [vmem:[%s484 + $0x5a0] sm:$0xff] %v845
                %v847 = vld [vmem:[%s483 + $0x5a8] sm:$0xff]
                %848 = vst [vmem:[%s484 + $0x5a8] sm:$0xff] %v847
                %v849 = vld [vmem:[%s483 + $0x5b0] sm:$0xff]
                %850 = vst [vmem:[%s484 + $0x5b0] sm:$0xff] %v849
                %v851 = vld [vmem:[%s483 + $0x5b8] sm:$0xff]
                %852 = vst [vmem:[%s484 + $0x5b8] sm:$0xff] %v851
                %v853 = vld [vmem:[%s483 + $0x5c0] sm:$0xff]
                %854 = vst [vmem:[%s484 + $0x5c0] sm:$0xff] %v853
                %v855 = vld [vmem:[%s483 + $0x5c8] sm:$0xff]
                %856 = vst [vmem:[%s484 + $0x5c8] sm:$0xff] %v855
                %v857 = vld [vmem:[%s483 + $0x5d0] sm:$0xff]
                %858 = vst [vmem:[%s484 + $0x5d0] sm:$0xff] %v857
                %v859 = vld [vmem:[%s483 + $0x5d8] sm:$0xff]
                %860 = vst [vmem:[%s484 + $0x5d8] sm:$0xff] %v859
                %v861 = vld [vmem:[%s483 + $0x5e0] sm:$0xff]
                %862 = vst [vmem:[%s484 + $0x5e0] sm:$0xff] %v861
                %v863 = vld [vmem:[%s483 + $0x5e8] sm:$0xff]
                %864 = vst [vmem:[%s484 + $0x5e8] sm:$0xff] %v863
                %v865 = vld [vmem:[%s483 + $0x5f0] sm:$0xff]
                %866 = vst [vmem:[%s484 + $0x5f0] sm:$0xff] %v865
                %v867 = vld [vmem:[%s483 + $0x5f8] sm:$0xff]
                %868 = vst [vmem:[%s484 + $0x5f8] sm:$0xff] %v867
                %v869 = vld [vmem:[%s483 + $0x600] sm:$0xff]
                %870 = vst [vmem:[%s484 + $0x600] sm:$0xff] %v869
                %v871 = vld [vmem:[%s483 + $0x608] sm:$0xff]
                %872 = vst [vmem:[%s484 + $0x608] sm:$0xff] %v871
                %v873 = vld [vmem:[%s483 + $0x610] sm:$0xff]
                %874 = vst [vmem:[%s484 + $0x610] sm:$0xff] %v873
                %v875 = vld [vmem:[%s483 + $0x618] sm:$0xff]
                %876 = vst [vmem:[%s484 + $0x618] sm:$0xff] %v875
                %v877 = vld [vmem:[%s483 + $0x620] sm:$0xff]
                %878 = vst [vmem:[%s484 + $0x620] sm:$0xff] %v877
                %v879 = vld [vmem:[%s483 + $0x628] sm:$0xff]
                %880 = vst [vmem:[%s484 + $0x628] sm:$0xff] %v879
                %v881 = vld [vmem:[%s483 + $0x630] sm:$0xff]
                %882 = vst [vmem:[%s484 + $0x630] sm:$0xff] %v881
                %v883 = vld [vmem:[%s483 + $0x638] sm:$0xff]
                %884 = vst [vmem:[%s484 + $0x638] sm:$0xff] %v883
                %v885 = vld [vmem:[%s483 + $0x640] sm:$0xff]
                %886 = vst [vmem:[%s484 + $0x640] sm:$0xff] %v885
                %v887 = vld [vmem:[%s483 + $0x648] sm:$0xff]
                %888 = vst [vmem:[%s484 + $0x648] sm:$0xff] %v887
                %v889 = vld [vmem:[%s483 + $0x650] sm:$0xff]
                %890 = vst [vmem:[%s484 + $0x650] sm:$0xff] %v889
                %v891 = vld [vmem:[%s483 + $0x658] sm:$0xff]
                %892 = vst [vmem:[%s484 + $0x658] sm:$0xff] %v891
                %v893 = vld [vmem:[%s483 + $0x660] sm:$0xff]
                %894 = vst [vmem:[%s484 + $0x660] sm:$0xff] %v893
                %v895 = vld [vmem:[%s483 + $0x668] sm:$0xff]
                %896 = vst [vmem:[%s484 + $0x668] sm:$0xff] %v895
                %v897 = vld [vmem:[%s483 + $0x670] sm:$0xff]
                %898 = vst [vmem:[%s484 + $0x670] sm:$0xff] %v897
                %v899 = vld [vmem:[%s483 + $0x678] sm:$0xff]
                %900 = vst [vmem:[%s484 + $0x678] sm:$0xff] %v899
                %v901 = vld [vmem:[%s483 + $0x680] sm:$0xff]
                %902 = vst [vmem:[%s484 + $0x680] sm:$0xff] %v901
                %v903 = vld [vmem:[%s483 + $0x688] sm:$0xff]
                %904 = vst [vmem:[%s484 + $0x688] sm:$0xff] %v903
                %v905 = vld [vmem:[%s483 + $0x690] sm:$0xff]
                %906 = vst [vmem:[%s484 + $0x690] sm:$0xff] %v905
                %v907 = vld [vmem:[%s483 + $0x698] sm:$0xff]
                %908 = vst [vmem:[%s484 + $0x698] sm:$0xff] %v907
                %v909 = vld [vmem:[%s483 + $0x6a0] sm:$0xff]
                %910 = vst [vmem:[%s484 + $0x6a0] sm:$0xff] %v909
                %v911 = vld [vmem:[%s483 + $0x6a8] sm:$0xff]
                %912 = vst [vmem:[%s484 + $0x6a8] sm:$0xff] %v911
                %v913 = vld [vmem:[%s483 + $0x6b0] sm:$0xff]
                %914 = vst [vmem:[%s484 + $0x6b0] sm:$0xff] %v913
                %v915 = vld [vmem:[%s483 + $0x6b8] sm:$0xff]
                %916 = vst [vmem:[%s484 + $0x6b8] sm:$0xff] %v915
                %v917 = vld [vmem:[%s483 + $0x6c0] sm:$0xff]
                %918 = vst [vmem:[%s484 + $0x6c0] sm:$0xff] %v917
                %v919 = vld [vmem:[%s483 + $0x6c8] sm:$0xff]
                %920 = vst [vmem:[%s484 + $0x6c8] sm:$0xff] %v919
                %v921 = vld [vmem:[%s483 + $0x6d0] sm:$0xff]
                %922 = vst [vmem:[%s484 + $0x6d0] sm:$0xff] %v921
                %v923 = vld [vmem:[%s483 + $0x6d8] sm:$0xff]
                %924 = vst [vmem:[%s484 + $0x6d8] sm:$0xff] %v923
                %v925 = vld [vmem:[%s483 + $0x6e0] sm:$0xff]
                %926 = vst [vmem:[%s484 + $0x6e0] sm:$0xff] %v925
                %v927 = vld [vmem:[%s483 + $0x6e8] sm:$0xff]
                %928 = vst [vmem:[%s484 + $0x6e8] sm:$0xff] %v927
                %v929 = vld [vmem:[%s483 + $0x6f0] sm:$0xff]
                %930 = vst [vmem:[%s484 + $0x6f0] sm:$0xff] %v929
                %v931 = vld [vmem:[%s483 + $0x6f8] sm:$0xff]
                %932 = vst [vmem:[%s484 + $0x6f8] sm:$0xff] %v931
                %v933 = vld [vmem:[%s483 + $0x700] sm:$0xff]
                %934 = vst [vmem:[%s484 + $0x700] sm:$0xff] %v933
                %v935 = vld [vmem:[%s483 + $0x708] sm:$0xff]
                %936 = vst [vmem:[%s484 + $0x708] sm:$0xff] %v935
                %v937 = vld [vmem:[%s483 + $0x710] sm:$0xff]
                %938 = vst [vmem:[%s484 + $0x710] sm:$0xff] %v937
                %v939 = vld [vmem:[%s483 + $0x718] sm:$0xff]
                %940 = vst [vmem:[%s484 + $0x718] sm:$0xff] %v939
                %v941 = vld [vmem:[%s483 + $0x720] sm:$0xff]
                %942 = vst [vmem:[%s484 + $0x720] sm:$0xff] %v941
                %v943 = vld [vmem:[%s483 + $0x728] sm:$0xff]
                %944 = vst [vmem:[%s484 + $0x728] sm:$0xff] %v943
                %v945 = vld [vmem:[%s483 + $0x730] sm:$0xff]
                %946 = vst [vmem:[%s484 + $0x730] sm:$0xff] %v945
                %v947 = vld [vmem:[%s483 + $0x738] sm:$0xff]
                %948 = vst [vmem:[%s484 + $0x738] sm:$0xff] %v947
                %v949 = vld [vmem:[%s483 + $0x740] sm:$0xff]
                %950 = vst [vmem:[%s484 + $0x740] sm:$0xff] %v949
                %v951 = vld [vmem:[%s483 + $0x748] sm:$0xff]
                %952 = vst [vmem:[%s484 + $0x748] sm:$0xff] %v951
                %v953 = vld [vmem:[%s483 + $0x750] sm:$0xff]
                %954 = vst [vmem:[%s484 + $0x750] sm:$0xff] %v953
                %v955 = vld [vmem:[%s483 + $0x758] sm:$0xff]
                %956 = vst [vmem:[%s484 + $0x758] sm:$0xff] %v955
                %v957 = vld [vmem:[%s483 + $0x760] sm:$0xff]
                %958 = vst [vmem:[%s484 + $0x760] sm:$0xff] %v957
                %v959 = vld [vmem:[%s483 + $0x768] sm:$0xff]
                %960 = vst [vmem:[%s484 + $0x768] sm:$0xff] %v959
                %v961 = vld [vmem:[%s483 + $0x770] sm:$0xff]
                %962 = vst [vmem:[%s484 + $0x770] sm:$0xff] %v961
                %v963 = vld [vmem:[%s483 + $0x778] sm:$0xff]
                %964 = vst [vmem:[%s484 + $0x778] sm:$0xff] %v963
                %v965 = vld [vmem:[%s483 + $0x780] sm:$0xff]
                %966 = vst [vmem:[%s484 + $0x780] sm:$0xff] %v965
                %v967 = vld [vmem:[%s483 + $0x788] sm:$0xff]
                %968 = vst [vmem:[%s484 + $0x788] sm:$0xff] %v967
                %v969 = vld [vmem:[%s483 + $0x790] sm:$0xff]
                %970 = vst [vmem:[%s484 + $0x790] sm:$0xff] %v969
                %v971 = vld [vmem:[%s483 + $0x798] sm:$0xff]
                %972 = vst [vmem:[%s484 + $0x798] sm:$0xff] %v971
                %v973 = vld [vmem:[%s483 + $0x7a0] sm:$0xff]
                %974 = vst [vmem:[%s484 + $0x7a0] sm:$0xff] %v973
                %v975 = vld [vmem:[%s483 + $0x7a8] sm:$0xff]
                %976 = vst [vmem:[%s484 + $0x7a8] sm:$0xff] %v975
                %v977 = vld [vmem:[%s483 + $0x7b0] sm:$0xff]
                %978 = vst [vmem:[%s484 + $0x7b0] sm:$0xff] %v977
                %v979 = vld [vmem:[%s483 + $0x7b8] sm:$0xff]
                %980 = vst [vmem:[%s484 + $0x7b8] sm:$0xff] %v979
                %v981 = vld [vmem:[%s483 + $0x7c0] sm:$0xff]
                %982 = vst [vmem:[%s484 + $0x7c0] sm:$0xff] %v981
                %v983 = vld [vmem:[%s483 + $0x7c8] sm:$0xff]
                %984 = vst [vmem:[%s484 + $0x7c8] sm:$0xff] %v983
                %v985 = vld [vmem:[%s483 + $0x7d0] sm:$0xff]
                %986 = vst [vmem:[%s484 + $0x7d0] sm:$0xff] %v985
                %v987 = vld [vmem:[%s483 + $0x7d8] sm:$0xff]
                %988 = vst [vmem:[%s484 + $0x7d8] sm:$0xff] %v987
                %v989 = vld [vmem:[%s483 + $0x7e0] sm:$0xff]
                %990 = vst [vmem:[%s484 + $0x7e0] sm:$0xff] %v989
                %v991 = vld [vmem:[%s483 + $0x7e8] sm:$0xff]
                %992 = vst [vmem:[%s484 + $0x7e8] sm:$0xff] %v991
                %v993 = vld [vmem:[%s483 + $0x7f0] sm:$0xff]
                %994 = vst [vmem:[%s484 + $0x7f0] sm:$0xff] %v993
                %v995 = vld [vmem:[%s483 + $0x7f8] sm:$0xff]
                %996 = vst [vmem:[%s484 + $0x7f8] sm:$0xff] %v995
                %v997 = vld [vmem:[%s483 + $0x2000] sm:$0xff]
                %998 = vst [vmem:[%s484 + $0x800] sm:$0xff] %v997
                %v999 = vld [vmem:[%s483 + $0x2008] sm:$0xff]
                %1000 = vst [vmem:[%s484 + $0x808] sm:$0xff] %v999
                %v1001 = vld [vmem:[%s483 + $0x2010] sm:$0xff]
                %1002 = vst [vmem:[%s484 + $0x810] sm:$0xff] %v1001
                %v1003 = vld [vmem:[%s483 + $0x2018] sm:$0xff]
                %1004 = vst [vmem:[%s484 + $0x818] sm:$0xff] %v1003
                %v1005 = vld [vmem:[%s483 + $0x2020] sm:$0xff]
                %1006 = vst [vmem:[%s484 + $0x820] sm:$0xff] %v1005
                %v1007 = vld [vmem:[%s483 + $0x2028] sm:$0xff]
                %1008 = vst [vmem:[%s484 + $0x828] sm:$0xff] %v1007
                %v1009 = vld [vmem:[%s483 + $0x2030] sm:$0xff]
                %1010 = vst [vmem:[%s484 + $0x830] sm:$0xff] %v1009
                %v1011 = vld [vmem:[%s483 + $0x2038] sm:$0xff]
                %1012 = vst [vmem:[%s484 + $0x838] sm:$0xff] %v1011
                %v1013 = vld [vmem:[%s483 + $0x2040] sm:$0xff]
                %1014 = vst [vmem:[%s484 + $0x840] sm:$0xff] %v1013
                %v1015 = vld [vmem:[%s483 + $0x2048] sm:$0xff]
                %1016 = vst [vmem:[%s484 + $0x848] sm:$0xff] %v1015
                %v1017 = vld [vmem:[%s483 + $0x2050] sm:$0xff]
                %1018 = vst [vmem:[%s484 + $0x850] sm:$0xff] %v1017
                %v1019 = vld [vmem:[%s483 + $0x2058] sm:$0xff]
                %1020 = vst [vmem:[%s484 + $0x858] sm:$0xff] %v1019
                %v1021 = vld [vmem:[%s483 + $0x2060] sm:$0xff]
                %1022 = vst [vmem:[%s484 + $0x860] sm:$0xff] %v1021
                %v1023 = vld [vmem:[%s483 + $0x2068] sm:$0xff]
                %1024 = vst [vmem:[%s484 + $0x868] sm:$0xff] %v1023
                %v1025 = vld [vmem:[%s483 + $0x2070] sm:$0xff]
                %1026 = vst [vmem:[%s484 + $0x870] sm:$0xff] %v1025
                %v1027 = vld [vmem:[%s483 + $0x2078] sm:$0xff]
                %1028 = vst [vmem:[%s484 + $0x878] sm:$0xff] %v1027
                %v1029 = vld [vmem:[%s483 + $0x2080] sm:$0xff]
                %1030 = vst [vmem:[%s484 + $0x880] sm:$0xff] %v1029
                %v1031 = vld [vmem:[%s483 + $0x2088] sm:$0xff]
                %1032 = vst [vmem:[%s484 + $0x888] sm:$0xff] %v1031
                %v1033 = vld [vmem:[%s483 + $0x2090] sm:$0xff]
                %1034 = vst [vmem:[%s484 + $0x890] sm:$0xff] %v1033
                %v1035 = vld [vmem:[%s483 + $0x2098] sm:$0xff]
                %1036 = vst [vmem:[%s484 + $0x898] sm:$0xff] %v1035
                %v1037 = vld [vmem:[%s483 + $0x20a0] sm:$0xff]
                %1038 = vst [vmem:[%s484 + $0x8a0] sm:$0xff] %v1037
                %v1039 = vld [vmem:[%s483 + $0x20a8] sm:$0xff]
                %1040 = vst [vmem:[%s484 + $0x8a8] sm:$0xff] %v1039
                %v1041 = vld [vmem:[%s483 + $0x20b0] sm:$0xff]
                %1042 = vst [vmem:[%s484 + $0x8b0] sm:$0xff] %v1041
                %v1043 = vld [vmem:[%s483 + $0x20b8] sm:$0xff]
                %1044 = vst [vmem:[%s484 + $0x8b8] sm:$0xff] %v1043
                %v1045 = vld [vmem:[%s483 + $0x20c0] sm:$0xff]
                %1046 = vst [vmem:[%s484 + $0x8c0] sm:$0xff] %v1045
                %v1047 = vld [vmem:[%s483 + $0x20c8] sm:$0xff]
                %1048 = vst [vmem:[%s484 + $0x8c8] sm:$0xff] %v1047
                %v1049 = vld [vmem:[%s483 + $0x20d0] sm:$0xff]
                %1050 = vst [vmem:[%s484 + $0x8d0] sm:$0xff] %v1049
                %v1051 = vld [vmem:[%s483 + $0x20d8] sm:$0xff]
                %1052 = vst [vmem:[%s484 + $0x8d8] sm:$0xff] %v1051
                %v1053 = vld [vmem:[%s483 + $0x20e0] sm:$0xff]
                %1054 = vst [vmem:[%s484 + $0x8e0] sm:$0xff] %v1053
                %v1055 = vld [vmem:[%s483 + $0x20e8] sm:$0xff]
                %1056 = vst [vmem:[%s484 + $0x8e8] sm:$0xff] %v1055
                %v1057 = vld [vmem:[%s483 + $0x20f0] sm:$0xff]
                %1058 = vst [vmem:[%s484 + $0x8f0] sm:$0xff] %v1057
                %v1059 = vld [vmem:[%s483 + $0x20f8] sm:$0xff]
                %1060 = vst [vmem:[%s484 + $0x8f8] sm:$0xff] %v1059
                %v1061 = vld [vmem:[%s483 + $0x2100] sm:$0xff]
                %1062 = vst [vmem:[%s484 + $0x900] sm:$0xff] %v1061
                %v1063 = vld [vmem:[%s483 + $0x2108] sm:$0xff]
                %1064 = vst [vmem:[%s484 + $0x908] sm:$0xff] %v1063
                %v1065 = vld [vmem:[%s483 + $0x2110] sm:$0xff]
                %1066 = vst [vmem:[%s484 + $0x910] sm:$0xff] %v1065
                %v1067 = vld [vmem:[%s483 + $0x2118] sm:$0xff]
                %1068 = vst [vmem:[%s484 + $0x918] sm:$0xff] %v1067
                %v1069 = vld [vmem:[%s483 + $0x2120] sm:$0xff]
                %1070 = vst [vmem:[%s484 + $0x920] sm:$0xff] %v1069
                %v1071 = vld [vmem:[%s483 + $0x2128] sm:$0xff]
                %1072 = vst [vmem:[%s484 + $0x928] sm:$0xff] %v1071
                %v1073 = vld [vmem:[%s483 + $0x2130] sm:$0xff]
                %1074 = vst [vmem:[%s484 + $0x930] sm:$0xff] %v1073
                %v1075 = vld [vmem:[%s483 + $0x2138] sm:$0xff]
                %1076 = vst [vmem:[%s484 + $0x938] sm:$0xff] %v1075
                %v1077 = vld [vmem:[%s483 + $0x2140] sm:$0xff]
                %1078 = vst [vmem:[%s484 + $0x940] sm:$0xff] %v1077
                %v1079 = vld [vmem:[%s483 + $0x2148] sm:$0xff]
                %1080 = vst [vmem:[%s484 + $0x948] sm:$0xff] %v1079
                %v1081 = vld [vmem:[%s483 + $0x2150] sm:$0xff]
                %1082 = vst [vmem:[%s484 + $0x950] sm:$0xff] %v1081
                %v1083 = vld [vmem:[%s483 + $0x2158] sm:$0xff]
                %1084 = vst [vmem:[%s484 + $0x958] sm:$0xff] %v1083
                %v1085 = vld [vmem:[%s483 + $0x2160] sm:$0xff]
                %1086 = vst [vmem:[%s484 + $0x960] sm:$0xff] %v1085
                %v1087 = vld [vmem:[%s483 + $0x2168] sm:$0xff]
                %1088 = vst [vmem:[%s484 + $0x968] sm:$0xff] %v1087
                %v1089 = vld [vmem:[%s483 + $0x2170] sm:$0xff]
                %1090 = vst [vmem:[%s484 + $0x970] sm:$0xff] %v1089
                %v1091 = vld [vmem:[%s483 + $0x2178] sm:$0xff]
                %1092 = vst [vmem:[%s484 + $0x978] sm:$0xff] %v1091
                %v1093 = vld [vmem:[%s483 + $0x2180] sm:$0xff]
                %1094 = vst [vmem:[%s484 + $0x980] sm:$0xff] %v1093
                %v1095 = vld [vmem:[%s483 + $0x2188] sm:$0xff]
                %1096 = vst [vmem:[%s484 + $0x988] sm:$0xff] %v1095
                %v1097 = vld [vmem:[%s483 + $0x2190] sm:$0xff]
                %1098 = vst [vmem:[%s484 + $0x990] sm:$0xff] %v1097
                %v1099 = vld [vmem:[%s483 + $0x2198] sm:$0xff]
                %1100 = vst [vmem:[%s484 + $0x998] sm:$0xff] %v1099
                %v1101 = vld [vmem:[%s483 + $0x21a0] sm:$0xff]
                %1102 = vst [vmem:[%s484 + $0x9a0] sm:$0xff] %v1101
                %v1103 = vld [vmem:[%s483 + $0x21a8] sm:$0xff]
                %1104 = vst [vmem:[%s484 + $0x9a8] sm:$0xff] %v1103
                %v1105 = vld [vmem:[%s483 + $0x21b0] sm:$0xff]
                %1106 = vst [vmem:[%s484 + $0x9b0] sm:$0xff] %v1105
                %v1107 = vld [vmem:[%s483 + $0x21b8] sm:$0xff]
                %1108 = vst [vmem:[%s484 + $0x9b8] sm:$0xff] %v1107
                %v1109 = vld [vmem:[%s483 + $0x21c0] sm:$0xff]
                %1110 = vst [vmem:[%s484 + $0x9c0] sm:$0xff] %v1109
                %v1111 = vld [vmem:[%s483 + $0x21c8] sm:$0xff]
                %1112 = vst [vmem:[%s484 + $0x9c8] sm:$0xff] %v1111
                %v1113 = vld [vmem:[%s483 + $0x21d0] sm:$0xff]
                %1114 = vst [vmem:[%s484 + $0x9d0] sm:$0xff] %v1113
                %v1115 = vld [vmem:[%s483 + $0x21d8] sm:$0xff]
                %1116 = vst [vmem:[%s484 + $0x9d8] sm:$0xff] %v1115
                %v1117 = vld [vmem:[%s483 + $0x21e0] sm:$0xff]
                %1118 = vst [vmem:[%s484 + $0x9e0] sm:$0xff] %v1117
                %v1119 = vld [vmem:[%s483 + $0x21e8] sm:$0xff]
                %1120 = vst [vmem:[%s484 + $0x9e8] sm:$0xff] %v1119
                %v1121 = vld [vmem:[%s483 + $0x21f0] sm:$0xff]
                %1122 = vst [vmem:[%s484 + $0x9f0] sm:$0xff] %v1121
                %v1123 = vld [vmem:[%s483 + $0x21f8] sm:$0xff]
                %1124 = vst [vmem:[%s484 + $0x9f8] sm:$0xff] %v1123
                %v1125 = vld [vmem:[%s483 + $0x2200] sm:$0xff]
                %1126 = vst [vmem:[%s484 + $0xa00] sm:$0xff] %v1125
                %v1127 = vld [vmem:[%s483 + $0x2208] sm:$0xff]
                %1128 = vst [vmem:[%s484 + $0xa08] sm:$0xff] %v1127
                %v1129 = vld [vmem:[%s483 + $0x2210] sm:$0xff]
                %1130 = vst [vmem:[%s484 + $0xa10] sm:$0xff] %v1129
                %v1131 = vld [vmem:[%s483 + $0x2218] sm:$0xff]
                %1132 = vst [vmem:[%s484 + $0xa18] sm:$0xff] %v1131
                %v1133 = vld [vmem:[%s483 + $0x2220] sm:$0xff]
                %1134 = vst [vmem:[%s484 + $0xa20] sm:$0xff] %v1133
                %v1135 = vld [vmem:[%s483 + $0x2228] sm:$0xff]
                %1136 = vst [vmem:[%s484 + $0xa28] sm:$0xff] %v1135
                %v1137 = vld [vmem:[%s483 + $0x2230] sm:$0xff]
                %1138 = vst [vmem:[%s484 + $0xa30] sm:$0xff] %v1137
                %v1139 = vld [vmem:[%s483 + $0x2238] sm:$0xff]
                %1140 = vst [vmem:[%s484 + $0xa38] sm:$0xff] %v1139
                %v1141 = vld [vmem:[%s483 + $0x2240] sm:$0xff]
                %1142 = vst [vmem:[%s484 + $0xa40] sm:$0xff] %v1141
                %v1143 = vld [vmem:[%s483 + $0x2248] sm:$0xff]
                %1144 = vst [vmem:[%s484 + $0xa48] sm:$0xff] %v1143
                %v1145 = vld [vmem:[%s483 + $0x2250] sm:$0xff]
                %1146 = vst [vmem:[%s484 + $0xa50] sm:$0xff] %v1145
                %v1147 = vld [vmem:[%s483 + $0x2258] sm:$0xff]
                %1148 = vst [vmem:[%s484 + $0xa58] sm:$0xff] %v1147
                %v1149 = vld [vmem:[%s483 + $0x2260] sm:$0xff]
                %1150 = vst [vmem:[%s484 + $0xa60] sm:$0xff] %v1149
                %v1151 = vld [vmem:[%s483 + $0x2268] sm:$0xff]
                %1152 = vst [vmem:[%s484 + $0xa68] sm:$0xff] %v1151
                %v1153 = vld [vmem:[%s483 + $0x2270] sm:$0xff]
                %1154 = vst [vmem:[%s484 + $0xa70] sm:$0xff] %v1153
                %v1155 = vld [vmem:[%s483 + $0x2278] sm:$0xff]
                %1156 = vst [vmem:[%s484 + $0xa78] sm:$0xff] %v1155
                %v1157 = vld [vmem:[%s483 + $0x2280] sm:$0xff]
                %1158 = vst [vmem:[%s484 + $0xa80] sm:$0xff] %v1157
                %v1159 = vld [vmem:[%s483 + $0x2288] sm:$0xff]
                %1160 = vst [vmem:[%s484 + $0xa88] sm:$0xff] %v1159
                %v1161 = vld [vmem:[%s483 + $0x2290] sm:$0xff]
                %1162 = vst [vmem:[%s484 + $0xa90] sm:$0xff] %v1161
                %v1163 = vld [vmem:[%s483 + $0x2298] sm:$0xff]
                %1164 = vst [vmem:[%s484 + $0xa98] sm:$0xff] %v1163
                %v1165 = vld [vmem:[%s483 + $0x22a0] sm:$0xff]
                %1166 = vst [vmem:[%s484 + $0xaa0] sm:$0xff] %v1165
                %v1167 = vld [vmem:[%s483 + $0x22a8] sm:$0xff]
                %1168 = vst [vmem:[%s484 + $0xaa8] sm:$0xff] %v1167
                %v1169 = vld [vmem:[%s483 + $0x22b0] sm:$0xff]
                %1170 = vst [vmem:[%s484 + $0xab0] sm:$0xff] %v1169
                %v1171 = vld [vmem:[%s483 + $0x22b8] sm:$0xff]
                %1172 = vst [vmem:[%s484 + $0xab8] sm:$0xff] %v1171
                %v1173 = vld [vmem:[%s483 + $0x22c0] sm:$0xff]
                %1174 = vst [vmem:[%s484 + $0xac0] sm:$0xff] %v1173
                %v1175 = vld [vmem:[%s483 + $0x22c8] sm:$0xff]
                %1176 = vst [vmem:[%s484 + $0xac8] sm:$0xff] %v1175
                %v1177 = vld [vmem:[%s483 + $0x22d0] sm:$0xff]
                %1178 = vst [vmem:[%s484 + $0xad0] sm:$0xff] %v1177
                %v1179 = vld [vmem:[%s483 + $0x22d8] sm:$0xff]
                %1180 = vst [vmem:[%s484 + $0xad8] sm:$0xff] %v1179
                %v1181 = vld [vmem:[%s483 + $0x22e0] sm:$0xff]
                %1182 = vst [vmem:[%s484 + $0xae0] sm:$0xff] %v1181
                %v1183 = vld [vmem:[%s483 + $0x22e8] sm:$0xff]
                %1184 = vst [vmem:[%s484 + $0xae8] sm:$0xff] %v1183
                %v1185 = vld [vmem:[%s483 + $0x22f0] sm:$0xff]
                %1186 = vst [vmem:[%s484 + $0xaf0] sm:$0xff] %v1185
                %v1187 = vld [vmem:[%s483 + $0x22f8] sm:$0xff]
                %1188 = vst [vmem:[%s484 + $0xaf8] sm:$0xff] %v1187
                %v1189 = vld [vmem:[%s483 + $0x2300] sm:$0xff]
                %1190 = vst [vmem:[%s484 + $0xb00] sm:$0xff] %v1189
                %v1191 = vld [vmem:[%s483 + $0x2308] sm:$0xff]
                %1192 = vst [vmem:[%s484 + $0xb08] sm:$0xff] %v1191
                %v1193 = vld [vmem:[%s483 + $0x2310] sm:$0xff]
                %1194 = vst [vmem:[%s484 + $0xb10] sm:$0xff] %v1193
                %v1195 = vld [vmem:[%s483 + $0x2318] sm:$0xff]
                %1196 = vst [vmem:[%s484 + $0xb18] sm:$0xff] %v1195
                %v1197 = vld [vmem:[%s483 + $0x2320] sm:$0xff]
                %1198 = vst [vmem:[%s484 + $0xb20] sm:$0xff] %v1197
                %v1199 = vld [vmem:[%s483 + $0x2328] sm:$0xff]
                %1200 = vst [vmem:[%s484 + $0xb28] sm:$0xff] %v1199
                %v1201 = vld [vmem:[%s483 + $0x2330] sm:$0xff]
                %1202 = vst [vmem:[%s484 + $0xb30] sm:$0xff] %v1201
                %v1203 = vld [vmem:[%s483 + $0x2338] sm:$0xff]
                %1204 = vst [vmem:[%s484 + $0xb38] sm:$0xff] %v1203
                %v1205 = vld [vmem:[%s483 + $0x2340] sm:$0xff]
                %1206 = vst [vmem:[%s484 + $0xb40] sm:$0xff] %v1205
                %v1207 = vld [vmem:[%s483 + $0x2348] sm:$0xff]
                %1208 = vst [vmem:[%s484 + $0xb48] sm:$0xff] %v1207
                %v1209 = vld [vmem:[%s483 + $0x2350] sm:$0xff]
                %1210 = vst [vmem:[%s484 + $0xb50] sm:$0xff] %v1209
                %v1211 = vld [vmem:[%s483 + $0x2358] sm:$0xff]
                %1212 = vst [vmem:[%s484 + $0xb58] sm:$0xff] %v1211
                %v1213 = vld [vmem:[%s483 + $0x2360] sm:$0xff]
                %1214 = vst [vmem:[%s484 + $0xb60] sm:$0xff] %v1213
                %v1215 = vld [vmem:[%s483 + $0x2368] sm:$0xff]
                %1216 = vst [vmem:[%s484 + $0xb68] sm:$0xff] %v1215
                %v1217 = vld [vmem:[%s483 + $0x2370] sm:$0xff]
                %1218 = vst [vmem:[%s484 + $0xb70] sm:$0xff] %v1217
                %v1219 = vld [vmem:[%s483 + $0x2378] sm:$0xff]
                %1220 = vst [vmem:[%s484 + $0xb78] sm:$0xff] %v1219
                %v1221 = vld [vmem:[%s483 + $0x2380] sm:$0xff]
                %1222 = vst [vmem:[%s484 + $0xb80] sm:$0xff] %v1221
                %v1223 = vld [vmem:[%s483 + $0x2388] sm:$0xff]
                %1224 = vst [vmem:[%s484 + $0xb88] sm:$0xff] %v1223
                %v1225 = vld [vmem:[%s483 + $0x2390] sm:$0xff]
                %1226 = vst [vmem:[%s484 + $0xb90] sm:$0xff] %v1225
                %v1227 = vld [vmem:[%s483 + $0x2398] sm:$0xff]
                %1228 = vst [vmem:[%s484 + $0xb98] sm:$0xff] %v1227
                %v1229 = vld [vmem:[%s483 + $0x23a0] sm:$0xff]
                %1230 = vst [vmem:[%s484 + $0xba0] sm:$0xff] %v1229
                %v1231 = vld [vmem:[%s483 + $0x23a8] sm:$0xff]
                %1232 = vst [vmem:[%s484 + $0xba8] sm:$0xff] %v1231
                %v1233 = vld [vmem:[%s483 + $0x23b0] sm:$0xff]
                %1234 = vst [vmem:[%s484 + $0xbb0] sm:$0xff] %v1233
                %v1235 = vld [vmem:[%s483 + $0x23b8] sm:$0xff]
                %1236 = vst [vmem:[%s484 + $0xbb8] sm:$0xff] %v1235
                %v1237 = vld [vmem:[%s483 + $0x23c0] sm:$0xff]
                %1238 = vst [vmem:[%s484 + $0xbc0] sm:$0xff] %v1237
                %v1239 = vld [vmem:[%s483 + $0x23c8] sm:$0xff]
                %1240 = vst [vmem:[%s484 + $0xbc8] sm:$0xff] %v1239
                %v1241 = vld [vmem:[%s483 + $0x23d0] sm:$0xff]
                %1242 = vst [vmem:[%s484 + $0xbd0] sm:$0xff] %v1241
                %v1243 = vld [vmem:[%s483 + $0x23d8] sm:$0xff]
                %1244 = vst [vmem:[%s484 + $0xbd8] sm:$0xff] %v1243
                %v1245 = vld [vmem:[%s483 + $0x23e0] sm:$0xff]
                %1246 = vst [vmem:[%s484 + $0xbe0] sm:$0xff] %v1245
                %v1247 = vld [vmem:[%s483 + $0x23e8] sm:$0xff]
                %1248 = vst [vmem:[%s484 + $0xbe8] sm:$0xff] %v1247
                %v1249 = vld [vmem:[%s483 + $0x23f0] sm:$0xff]
                %1250 = vst [vmem:[%s484 + $0xbf0] sm:$0xff] %v1249
                %v1251 = vld [vmem:[%s483 + $0x23f8] sm:$0xff]
                %1252 = vst [vmem:[%s484 + $0xbf8] sm:$0xff] %v1251
                %v1253 = vld [vmem:[%s483 + $0x2400] sm:$0xff]
                %1254 = vst [vmem:[%s484 + $0xc00] sm:$0xff] %v1253
                %v1255 = vld [vmem:[%s483 + $0x2408] sm:$0xff]
                %1256 = vst [vmem:[%s484 + $0xc08] sm:$0xff] %v1255
                %v1257 = vld [vmem:[%s483 + $0x2410] sm:$0xff]
                %1258 = vst [vmem:[%s484 + $0xc10] sm:$0xff] %v1257
                %v1259 = vld [vmem:[%s483 + $0x2418] sm:$0xff]
                %1260 = vst [vmem:[%s484 + $0xc18] sm:$0xff] %v1259
                %v1261 = vld [vmem:[%s483 + $0x2420] sm:$0xff]
                %1262 = vst [vmem:[%s484 + $0xc20] sm:$0xff] %v1261
                %v1263 = vld [vmem:[%s483 + $0x2428] sm:$0xff]
                %1264 = vst [vmem:[%s484 + $0xc28] sm:$0xff] %v1263
                %v1265 = vld [vmem:[%s483 + $0x2430] sm:$0xff]
                %1266 = vst [vmem:[%s484 + $0xc30] sm:$0xff] %v1265
                %v1267 = vld [vmem:[%s483 + $0x2438] sm:$0xff]
                %1268 = vst [vmem:[%s484 + $0xc38] sm:$0xff] %v1267
                %v1269 = vld [vmem:[%s483 + $0x2440] sm:$0xff]
                %1270 = vst [vmem:[%s484 + $0xc40] sm:$0xff] %v1269
                %v1271 = vld [vmem:[%s483 + $0x2448] sm:$0xff]
                %1272 = vst [vmem:[%s484 + $0xc48] sm:$0xff] %v1271
                %v1273 = vld [vmem:[%s483 + $0x2450] sm:$0xff]
                %1274 = vst [vmem:[%s484 + $0xc50] sm:$0xff] %v1273
                %v1275 = vld [vmem:[%s483 + $0x2458] sm:$0xff]
                %1276 = vst [vmem:[%s484 + $0xc58] sm:$0xff] %v1275
                %v1277 = vld [vmem:[%s483 + $0x2460] sm:$0xff]
                %1278 = vst [vmem:[%s484 + $0xc60] sm:$0xff] %v1277
                %v1279 = vld [vmem:[%s483 + $0x2468] sm:$0xff]
                %1280 = vst [vmem:[%s484 + $0xc68] sm:$0xff] %v1279
                %v1281 = vld [vmem:[%s483 + $0x2470] sm:$0xff]
                %1282 = vst [vmem:[%s484 + $0xc70] sm:$0xff] %v1281
                %v1283 = vld [vmem:[%s483 + $0x2478] sm:$0xff]
                %1284 = vst [vmem:[%s484 + $0xc78] sm:$0xff] %v1283
                %v1285 = vld [vmem:[%s483 + $0x2480] sm:$0xff]
                %1286 = vst [vmem:[%s484 + $0xc80] sm:$0xff] %v1285
                %v1287 = vld [vmem:[%s483 + $0x2488] sm:$0xff]
                %1288 = vst [vmem:[%s484 + $0xc88] sm:$0xff] %v1287
                %v1289 = vld [vmem:[%s483 + $0x2490] sm:$0xff]
                %1290 = vst [vmem:[%s484 + $0xc90] sm:$0xff] %v1289
                %v1291 = vld [vmem:[%s483 + $0x2498] sm:$0xff]
                %1292 = vst [vmem:[%s484 + $0xc98] sm:$0xff] %v1291
                %v1293 = vld [vmem:[%s483 + $0x24a0] sm:$0xff]
                %1294 = vst [vmem:[%s484 + $0xca0] sm:$0xff] %v1293
                %v1295 = vld [vmem:[%s483 + $0x24a8] sm:$0xff]
                %1296 = vst [vmem:[%s484 + $0xca8] sm:$0xff] %v1295
                %v1297 = vld [vmem:[%s483 + $0x24b0] sm:$0xff]
                %1298 = vst [vmem:[%s484 + $0xcb0] sm:$0xff] %v1297
                %v1299 = vld [vmem:[%s483 + $0x24b8] sm:$0xff]
                %1300 = vst [vmem:[%s484 + $0xcb8] sm:$0xff] %v1299
                %v1301 = vld [vmem:[%s483 + $0x24c0] sm:$0xff]
                %1302 = vst [vmem:[%s484 + $0xcc0] sm:$0xff] %v1301
                %v1303 = vld [vmem:[%s483 + $0x24c8] sm:$0xff]
                %1304 = vst [vmem:[%s484 + $0xcc8] sm:$0xff] %v1303
                %v1305 = vld [vmem:[%s483 + $0x24d0] sm:$0xff]
                %1306 = vst [vmem:[%s484 + $0xcd0] sm:$0xff] %v1305
                %v1307 = vld [vmem:[%s483 + $0x24d8] sm:$0xff]
                %1308 = vst [vmem:[%s484 + $0xcd8] sm:$0xff] %v1307
                %v1309 = vld [vmem:[%s483 + $0x24e0] sm:$0xff]
                %1310 = vst [vmem:[%s484 + $0xce0] sm:$0xff] %v1309
                %v1311 = vld [vmem:[%s483 + $0x24e8] sm:$0xff]
                %1312 = vst [vmem:[%s484 + $0xce8] sm:$0xff] %v1311
                %v1313 = vld [vmem:[%s483 + $0x24f0] sm:$0xff]
                %1314 = vst [vmem:[%s484 + $0xcf0] sm:$0xff] %v1313
                %v1315 = vld [vmem:[%s483 + $0x24f8] sm:$0xff]
                %1316 = vst [vmem:[%s484 + $0xcf8] sm:$0xff] %v1315
                %v1317 = vld [vmem:[%s483 + $0x2500] sm:$0xff]
                %1318 = vst [vmem:[%s484 + $0xd00] sm:$0xff] %v1317
                %v1319 = vld [vmem:[%s483 + $0x2508] sm:$0xff]
                %1320 = vst [vmem:[%s484 + $0xd08] sm:$0xff] %v1319
                %v1321 = vld [vmem:[%s483 + $0x2510] sm:$0xff]
                %1322 = vst [vmem:[%s484 + $0xd10] sm:$0xff] %v1321
                %v1323 = vld [vmem:[%s483 + $0x2518] sm:$0xff]
                %1324 = vst [vmem:[%s484 + $0xd18] sm:$0xff] %v1323
                %v1325 = vld [vmem:[%s483 + $0x2520] sm:$0xff]
                %1326 = vst [vmem:[%s484 + $0xd20] sm:$0xff] %v1325
                %v1327 = vld [vmem:[%s483 + $0x2528] sm:$0xff]
                %1328 = vst [vmem:[%s484 + $0xd28] sm:$0xff] %v1327
                %v1329 = vld [vmem:[%s483 + $0x2530] sm:$0xff]
                %1330 = vst [vmem:[%s484 + $0xd30] sm:$0xff] %v1329
                %v1331 = vld [vmem:[%s483 + $0x2538] sm:$0xff]
                %1332 = vst [vmem:[%s484 + $0xd38] sm:$0xff] %v1331
                %v1333 = vld [vmem:[%s483 + $0x2540] sm:$0xff]
                %1334 = vst [vmem:[%s484 + $0xd40] sm:$0xff] %v1333
                %v1335 = vld [vmem:[%s483 + $0x2548] sm:$0xff]
                %1336 = vst [vmem:[%s484 + $0xd48] sm:$0xff] %v1335
                %v1337 = vld [vmem:[%s483 + $0x2550] sm:$0xff]
                %1338 = vst [vmem:[%s484 + $0xd50] sm:$0xff] %v1337
                %v1339 = vld [vmem:[%s483 + $0x2558] sm:$0xff]
                %1340 = vst [vmem:[%s484 + $0xd58] sm:$0xff] %v1339
                %v1341 = vld [vmem:[%s483 + $0x2560] sm:$0xff]
                %1342 = vst [vmem:[%s484 + $0xd60] sm:$0xff] %v1341
                %v1343 = vld [vmem:[%s483 + $0x2568] sm:$0xff]
                %1344 = vst [vmem:[%s484 + $0xd68] sm:$0xff] %v1343
                %v1345 = vld [vmem:[%s483 + $0x2570] sm:$0xff]
                %1346 = vst [vmem:[%s484 + $0xd70] sm:$0xff] %v1345
                %v1347 = vld [vmem:[%s483 + $0x2578] sm:$0xff]
                %1348 = vst [vmem:[%s484 + $0xd78] sm:$0xff] %v1347
                %v1349 = vld [vmem:[%s483 + $0x2580] sm:$0xff]
                %1350 = vst [vmem:[%s484 + $0xd80] sm:$0xff] %v1349
                %v1351 = vld [vmem:[%s483 + $0x2588] sm:$0xff]
                %1352 = vst [vmem:[%s484 + $0xd88] sm:$0xff] %v1351
                %v1353 = vld [vmem:[%s483 + $0x2590] sm:$0xff]
                %1354 = vst [vmem:[%s484 + $0xd90] sm:$0xff] %v1353
                %v1355 = vld [vmem:[%s483 + $0x2598] sm:$0xff]
                %1356 = vst [vmem:[%s484 + $0xd98] sm:$0xff] %v1355
                %v1357 = vld [vmem:[%s483 + $0x25a0] sm:$0xff]
                %1358 = vst [vmem:[%s484 + $0xda0] sm:$0xff] %v1357
                %v1359 = vld [vmem:[%s483 + $0x25a8] sm:$0xff]
                %1360 = vst [vmem:[%s484 + $0xda8] sm:$0xff] %v1359
                %v1361 = vld [vmem:[%s483 + $0x25b0] sm:$0xff]
                %1362 = vst [vmem:[%s484 + $0xdb0] sm:$0xff] %v1361
                %v1363 = vld [vmem:[%s483 + $0x25b8] sm:$0xff]
                %1364 = vst [vmem:[%s484 + $0xdb8] sm:$0xff] %v1363
                %v1365 = vld [vmem:[%s483 + $0x25c0] sm:$0xff]
                %1366 = vst [vmem:[%s484 + $0xdc0] sm:$0xff] %v1365
                %v1367 = vld [vmem:[%s483 + $0x25c8] sm:$0xff]
                %1368 = vst [vmem:[%s484 + $0xdc8] sm:$0xff] %v1367
                %v1369 = vld [vmem:[%s483 + $0x25d0] sm:$0xff]
                %1370 = vst [vmem:[%s484 + $0xdd0] sm:$0xff] %v1369
                %v1371 = vld [vmem:[%s483 + $0x25d8] sm:$0xff]
                %1372 = vst [vmem:[%s484 + $0xdd8] sm:$0xff] %v1371
                %v1373 = vld [vmem:[%s483 + $0x25e0] sm:$0xff]
                %1374 = vst [vmem:[%s484 + $0xde0] sm:$0xff] %v1373
                %v1375 = vld [vmem:[%s483 + $0x25e8] sm:$0xff]
                %1376 = vst [vmem:[%s484 + $0xde8] sm:$0xff] %v1375
                %v1377 = vld [vmem:[%s483 + $0x25f0] sm:$0xff]
                %1378 = vst [vmem:[%s484 + $0xdf0] sm:$0xff] %v1377
                %v1379 = vld [vmem:[%s483 + $0x25f8] sm:$0xff]
                %1380 = vst [vmem:[%s484 + $0xdf8] sm:$0xff] %v1379
                %v1381 = vld [vmem:[%s483 + $0x2600] sm:$0xff]
                %1382 = vst [vmem:[%s484 + $0xe00] sm:$0xff] %v1381
                %v1383 = vld [vmem:[%s483 + $0x2608] sm:$0xff]
                %1384 = vst [vmem:[%s484 + $0xe08] sm:$0xff] %v1383
                %v1385 = vld [vmem:[%s483 + $0x2610] sm:$0xff]
                %1386 = vst [vmem:[%s484 + $0xe10] sm:$0xff] %v1385
                %v1387 = vld [vmem:[%s483 + $0x2618] sm:$0xff]
                %1388 = vst [vmem:[%s484 + $0xe18] sm:$0xff] %v1387
                %v1389 = vld [vmem:[%s483 + $0x2620] sm:$0xff]
                %1390 = vst [vmem:[%s484 + $0xe20] sm:$0xff] %v1389
                %v1391 = vld [vmem:[%s483 + $0x2628] sm:$0xff]
                %1392 = vst [vmem:[%s484 + $0xe28] sm:$0xff] %v1391
                %v1393 = vld [vmem:[%s483 + $0x2630] sm:$0xff]
                %1394 = vst [vmem:[%s484 + $0xe30] sm:$0xff] %v1393
                %v1395 = vld [vmem:[%s483 + $0x2638] sm:$0xff]
                %1396 = vst [vmem:[%s484 + $0xe38] sm:$0xff] %v1395
                %v1397 = vld [vmem:[%s483 + $0x2640] sm:$0xff]
                %1398 = vst [vmem:[%s484 + $0xe40] sm:$0xff] %v1397
                %v1399 = vld [vmem:[%s483 + $0x2648] sm:$0xff]
                %1400 = vst [vmem:[%s484 + $0xe48] sm:$0xff] %v1399
                %v1401 = vld [vmem:[%s483 + $0x2650] sm:$0xff]
                %1402 = vst [vmem:[%s484 + $0xe50] sm:$0xff] %v1401
                %v1403 = vld [vmem:[%s483 + $0x2658] sm:$0xff]
                %1404 = vst [vmem:[%s484 + $0xe58] sm:$0xff] %v1403
                %v1405 = vld [vmem:[%s483 + $0x2660] sm:$0xff]
                %1406 = vst [vmem:[%s484 + $0xe60] sm:$0xff] %v1405
                %v1407 = vld [vmem:[%s483 + $0x2668] sm:$0xff]
                %1408 = vst [vmem:[%s484 + $0xe68] sm:$0xff] %v1407
                %v1409 = vld [vmem:[%s483 + $0x2670] sm:$0xff]
                %1410 = vst [vmem:[%s484 + $0xe70] sm:$0xff] %v1409
                %v1411 = vld [vmem:[%s483 + $0x2678] sm:$0xff]
                %1412 = vst [vmem:[%s484 + $0xe78] sm:$0xff] %v1411
                %v1413 = vld [vmem:[%s483 + $0x2680] sm:$0xff]
                %1414 = vst [vmem:[%s484 + $0xe80] sm:$0xff] %v1413
                %v1415 = vld [vmem:[%s483 + $0x2688] sm:$0xff]
                %1416 = vst [vmem:[%s484 + $0xe88] sm:$0xff] %v1415
                %v1417 = vld [vmem:[%s483 + $0x2690] sm:$0xff]
                %1418 = vst [vmem:[%s484 + $0xe90] sm:$0xff] %v1417
                %v1419 = vld [vmem:[%s483 + $0x2698] sm:$0xff]
                %1420 = vst [vmem:[%s484 + $0xe98] sm:$0xff] %v1419
                %v1421 = vld [vmem:[%s483 + $0x26a0] sm:$0xff]
                %1422 = vst [vmem:[%s484 + $0xea0] sm:$0xff] %v1421
                %v1423 = vld [vmem:[%s483 + $0x26a8] sm:$0xff]
                %1424 = vst [vmem:[%s484 + $0xea8] sm:$0xff] %v1423
                %v1425 = vld [vmem:[%s483 + $0x26b0] sm:$0xff]
                %1426 = vst [vmem:[%s484 + $0xeb0] sm:$0xff] %v1425
                %v1427 = vld [vmem:[%s483 + $0x26b8] sm:$0xff]
                %1428 = vst [vmem:[%s484 + $0xeb8] sm:$0xff] %v1427
                %v1429 = vld [vmem:[%s483 + $0x26c0] sm:$0xff]
                %1430 = vst [vmem:[%s484 + $0xec0] sm:$0xff] %v1429
                %v1431 = vld [vmem:[%s483 + $0x26c8] sm:$0xff]
                %1432 = vst [vmem:[%s484 + $0xec8] sm:$0xff] %v1431
                %v1433 = vld [vmem:[%s483 + $0x26d0] sm:$0xff]
                %1434 = vst [vmem:[%s484 + $0xed0] sm:$0xff] %v1433
                %v1435 = vld [vmem:[%s483 + $0x26d8] sm:$0xff]
                %1436 = vst [vmem:[%s484 + $0xed8] sm:$0xff] %v1435
                %v1437 = vld [vmem:[%s483 + $0x26e0] sm:$0xff]
                %1438 = vst [vmem:[%s484 + $0xee0] sm:$0xff] %v1437
                %v1439 = vld [vmem:[%s483 + $0x26e8] sm:$0xff]
                %1440 = vst [vmem:[%s484 + $0xee8] sm:$0xff] %v1439
                %v1441 = vld [vmem:[%s483 + $0x26f0] sm:$0xff]
                %1442 = vst [vmem:[%s484 + $0xef0] sm:$0xff] %v1441
                %v1443 = vld [vmem:[%s483 + $0x26f8] sm:$0xff]
                %1444 = vst [vmem:[%s484 + $0xef8] sm:$0xff] %v1443
                %v1445 = vld [vmem:[%s483 + $0x2700] sm:$0xff]
                %1446 = vst [vmem:[%s484 + $0xf00] sm:$0xff] %v1445
                %v1447 = vld [vmem:[%s483 + $0x2708] sm:$0xff]
                %1448 = vst [vmem:[%s484 + $0xf08] sm:$0xff] %v1447
                %v1449 = vld [vmem:[%s483 + $0x2710] sm:$0xff]
                %1450 = vst [vmem:[%s484 + $0xf10] sm:$0xff] %v1449
                %v1451 = vld [vmem:[%s483 + $0x2718] sm:$0xff]
                %1452 = vst [vmem:[%s484 + $0xf18] sm:$0xff] %v1451
                %v1453 = vld [vmem:[%s483 + $0x2720] sm:$0xff]
                %1454 = vst [vmem:[%s484 + $0xf20] sm:$0xff] %v1453
                %v1455 = vld [vmem:[%s483 + $0x2728] sm:$0xff]
                %1456 = vst [vmem:[%s484 + $0xf28] sm:$0xff] %v1455
                %v1457 = vld [vmem:[%s483 + $0x2730] sm:$0xff]
                %1458 = vst [vmem:[%s484 + $0xf30] sm:$0xff] %v1457
                %v1459 = vld [vmem:[%s483 + $0x2738] sm:$0xff]
                %1460 = vst [vmem:[%s484 + $0xf38] sm:$0xff] %v1459
                %v1461 = vld [vmem:[%s483 + $0x2740] sm:$0xff]
                %1462 = vst [vmem:[%s484 + $0xf40] sm:$0xff] %v1461
                %v1463 = vld [vmem:[%s483 + $0x2748] sm:$0xff]
                %1464 = vst [vmem:[%s484 + $0xf48] sm:$0xff] %v1463
                %v1465 = vld [vmem:[%s483 + $0x2750] sm:$0xff]
                %1466 = vst [vmem:[%s484 + $0xf50] sm:$0xff] %v1465
                %v1467 = vld [vmem:[%s483 + $0x2758] sm:$0xff]
                %1468 = vst [vmem:[%s484 + $0xf58] sm:$0xff] %v1467
                %v1469 = vld [vmem:[%s483 + $0x2760] sm:$0xff]
                %1470 = vst [vmem:[%s484 + $0xf60] sm:$0xff] %v1469
                %v1471 = vld [vmem:[%s483 + $0x2768] sm:$0xff]
                %1472 = vst [vmem:[%s484 + $0xf68] sm:$0xff] %v1471
                %v1473 = vld [vmem:[%s483 + $0x2770] sm:$0xff]
                %1474 = vst [vmem:[%s484 + $0xf70] sm:$0xff] %v1473
                %v1475 = vld [vmem:[%s483 + $0x2778] sm:$0xff]
                %1476 = vst [vmem:[%s484 + $0xf78] sm:$0xff] %v1475
                %v1477 = vld [vmem:[%s483 + $0x2780] sm:$0xff]
                %1478 = vst [vmem:[%s484 + $0xf80] sm:$0xff] %v1477
                %v1479 = vld [vmem:[%s483 + $0x2788] sm:$0xff]
                %1480 = vst [vmem:[%s484 + $0xf88] sm:$0xff] %v1479
                %v1481 = vld [vmem:[%s483 + $0x2790] sm:$0xff]
                %1482 = vst [vmem:[%s484 + $0xf90] sm:$0xff] %v1481
                %v1483 = vld [vmem:[%s483 + $0x2798] sm:$0xff]
                %1484 = vst [vmem:[%s484 + $0xf98] sm:$0xff] %v1483
                %v1485 = vld [vmem:[%s483 + $0x27a0] sm:$0xff]
                %1486 = vst [vmem:[%s484 + $0xfa0] sm:$0xff] %v1485
                %v1487 = vld [vmem:[%s483 + $0x27a8] sm:$0xff]
                %1488 = vst [vmem:[%s484 + $0xfa8] sm:$0xff] %v1487
                %v1489 = vld [vmem:[%s483 + $0x27b0] sm:$0xff]
                %1490 = vst [vmem:[%s484 + $0xfb0] sm:$0xff] %v1489
                %v1491 = vld [vmem:[%s483 + $0x27b8] sm:$0xff]
                %1492 = vst [vmem:[%s484 + $0xfb8] sm:$0xff] %v1491
                %v1493 = vld [vmem:[%s483 + $0x27c0] sm:$0xff]
                %1494 = vst [vmem:[%s484 + $0xfc0] sm:$0xff] %v1493
                %v1495 = vld [vmem:[%s483 + $0x27c8] sm:$0xff]
                %1496 = vst [vmem:[%s484 + $0xfc8] sm:$0xff] %v1495
                %v1497 = vld [vmem:[%s483 + $0x27d0] sm:$0xff]
                %1498 = vst [vmem:[%s484 + $0xfd0] sm:$0xff] %v1497
                %v1499 = vld [vmem:[%s483 + $0x27d8] sm:$0xff]
                %1500 = vst [vmem:[%s484 + $0xfd8] sm:$0xff] %v1499
                %v1501 = vld [vmem:[%s483 + $0x27e0] sm:$0xff]
                %1502 = vst [vmem:[%s484 + $0xfe0] sm:$0xff] %v1501
                %v1503 = vld [vmem:[%s483 + $0x27e8] sm:$0xff]
                %1504 = vst [vmem:[%s484 + $0xfe8] sm:$0xff] %v1503
                %v1505 = vld [vmem:[%s483 + $0x27f0] sm:$0xff]
                %1506 = vst [vmem:[%s484 + $0xff0] sm:$0xff] %v1505
                %v1507 = vld [vmem:[%s483 + $0x27f8] sm:$0xff]
                %1508 = vst [vmem:[%s484 + $0xff8] sm:$0xff] %v1507
              $region60: #{tpu_custom_call.1} parent=54 // loop_footer
                %s482 = sadd.s32 1, %s478
              $region61: #{tpu_custom_call.1} parent=54 // loop_footer_branch
                %477 = sbr.rel target = $region57
              $region62: #{tpu_custom_call.1} parent=54 // loop_exit
                _
            $region55: #{tpu_custom_call.1} parent=50 // pred_fallthru
              _
            // Predicated region
            $region63: #{tpu_custom_call.1} parent=50 // pred_check
              _
            $region64: #{tpu_custom_call.1} parent=50 // pred_check_branch
              %1510 = sbr.rel target = $region66
            $region65: #{tpu_custom_call.1} parent=50 // pred_region
              _
            $region66: #{tpu_custom_call.1} parent=50 // pred_fallthru
              _
          $region51: #{tpu_custom_call.1} parent=46 // pred_fallthru
            _
          %1511 = vnop
        $region47: #{tpu_custom_call.1} parent=19 // pred_fallthru
          _
        // Predicated region
        $region67: #{tpu_custom_call.1} parent=19 // pred_check
          %p1512 = pneg %p84
        $region68: #{tpu_custom_call.1} parent=19 // pred_check_branch
          %1514 = sbr.rel (%p1512) target = $region70
        $region69: #{tpu_custom_call.1} parent=19 // pred_region
          %s1515 = smul.u32 16, %s12
          %p1516 = scmp.lt.s32.totalorder %s1515, 63
          %s1517 = scalar_select %p1516, %s1515, 63
          %s1518 = smul.addr %s1517, 8
          %s1519 = scalar_lea.vmem %s2, %s1518
          %s1520 = smul.u32 16, %s12
        $region70: #{tpu_custom_call.1} parent=19 // pred_fallthru
          _
        // Predicated region
        $region71: #{tpu_custom_call.1} parent=19 // pred_check
          %p1521 = pneg %p110
        $region72: #{tpu_custom_call.1} parent=19 // pred_check_branch
          %1523 = sbr.rel (%p1521) target = $region74
        $region73: #{tpu_custom_call.1} parent=19 // pred_region
          %s1524 = smul.u32 64, %s12
          %p1525 = scmp.lt.s32.totalorder %s1524, 255
          %s1526 = scalar_select %p1525, %s1524, 255
          %s1527 = smul.addr %s1526, 8
          %s1528 = scalar_lea.vmem %s3, %s1527
          %s1529 = smul.u32 64, %s12
        $region74: #{tpu_custom_call.1} parent=19 // pred_fallthru
          _
      $region20: #{tpu_custom_call.1} parent=5 // pred_fallthru
        _
      %p1530 = scmp.le.s32.totalorder 1, %s12
      %p1531 = scmp.lt.s32.totalorder %s12, 5
      %p1532 = pnand %p1530, %p1531
      %p1533 = pneg %p1532
      // Predicated region
      $region75: #{tpu_custom_call.1} parent=5 // pred_check
        _
      $region76: #{tpu_custom_call.1} parent=5 // pred_check_branch
        %1535 = sbr.rel (%p1532) target = $region78
      $region77: #{tpu_custom_call.1} parent=5 // pred_region
        %s1536 = ssub.s32 %s12, 1
        %s1537 = sand.u32 %s25, 1
        %s1538 = sand.u32 %s25, 1
        %s1539 = smul.addr %s1538, 1024
        %s1540 = scalar_lea.vmem [#allocation3], %s1539
        // Predicated region
        $region79: #{tpu_custom_call.1} parent=77 // pred_check
          %p1541 = pneg %p38
        $region80: #{tpu_custom_call.1} parent=77 // pred_check_branch
          %1543 = sbr.rel (%p1541) target = $region82
        $region81: #{tpu_custom_call.1} parent=77 // pred_region
          _
        $region82: #{tpu_custom_call.1} parent=77 // pred_fallthru
          _
        %s1544 = sand.u32 %s51, 1
        %s1545 = sand.u32 %s51, 1
        %s1546 = smul.addr %s1545, 4096
        %s1547 = scalar_lea.vmem [#allocation4], %s1546
        // Predicated region
        $region83: #{tpu_custom_call.1} parent=77 // pred_check
          %p1548 = pneg %p64
        $region84: #{tpu_custom_call.1} parent=77 // pred_check_branch
          %1550 = sbr.rel (%p1548) target = $region86
        $region85: #{tpu_custom_call.1} parent=77 // pred_region
          _
        $region86: #{tpu_custom_call.1} parent=77 // pred_fallthru
          _
        %s1551 = sand.u32 %s25, 1
        %s1552 = sand.u32 %s25, 1
        %s1553 = smul.addr %s1552, 1024
        %s1554 = scalar_lea.vmem [#allocation3], %s1553
        %p1555 = pneg %p38
        %p1556 = pneg %p35
        %s1557 = sand.u32 %s51, 1
        %s1558 = sand.u32 %s51, 1
        %s1559 = smul.addr %s1558, 4096
        %s1560 = scalar_lea.vmem [#allocation4], %s1559
        %p1561 = pneg %p64
        %p1562 = pneg %p61
        %s1563 = smul.u32 16, %s17
        %p1564 = scmp.lt.s32.totalorder %s1563, 63
        %s1565 = scalar_select %p1564, %s1563, 63
        %s1566 = smul.addr %s1565, 8
        %s1567 = scalar_lea.vmem %s2, %s1566
        %p1568 = pneg %p90
        %p1569 = pneg %p87
        %s1570 = smul.u32 64, %s17
        %p1571 = scmp.lt.s32.totalorder %s1570, 255
        %s1572 = scalar_select %p1571, %s1570, 255
        %s1573 = smul.addr %s1572, 8
        %s1574 = scalar_lea.vmem %s3, %s1573
        %p1575 = pneg %p116
        %p1576 = pneg %p113
        %p1577 = pneg %p137
        %p1578 = pneg %p134
        %p1579 = pneg %p158
        %p1580 = pneg %p155
        %s1581 = smul.u32 16, %s17
        %s1582 = smul.u32 64, %s17
        %s1583 = smul.u32 16, %s17
        %p1584 = scmp.lt.s32.totalorder %s1583, 63
        %s1585 = scalar_select %p1584, %s1583, 63
        %s1586 = smul.addr %s1585, 8
        %s1587 = scalar_lea.vmem %s2, %s1586
        %s1588 = smul.u32 16, %s17
        %s1589 = smul.u32 64, %s17
        %p1590 = scmp.lt.s32.totalorder %s1589, 255
        %s1591 = scalar_select %p1590, %s1589, 255
        %s1592 = smul.addr %s1591, 8
        %s1593 = scalar_lea.vmem %s3, %s1592
        %s1594 = smul.u32 64, %s17
        %p1595 = scmp.eq.s32.totalorder %s17, 0
        // Predicated region
        $region87: #{tpu_custom_call.1} parent=77 // pred_check
          %p1596 = pneg %p1595
        $region88: #{tpu_custom_call.1} parent=77 // pred_check_branch
          %1598 = sbr.rel (%p1596) target = $region90
        $region89: #{tpu_custom_call.1} parent=77 // pred_region
          %vm1599 = vcmask 123904
          %1600 = vst.msk [vmem:[#allocation2] sm:$0x3] %vm1599, 0.0
        $region90: #{tpu_custom_call.1} parent=77 // pred_fallthru
          _
        %v1601 = vld [vmem:[%s1540] sm:$0xff]
        %v1602 = vld [vmem:[%s1540 + $0x8] sm:$0xff]
        %v1603 = vld [vmem:[%s1540 + $0x10] sm:$0xff]
        %v1604 = vld [vmem:[%s1540 + $0x18] sm:$0xff]
        %v1605 = vld [vmem:[%s1540 + $0x20] sm:$0xff]
        %v1606 = vld [vmem:[%s1540 + $0x28] sm:$0xff]
        %v1607 = vld [vmem:[%s1540 + $0x30] sm:$0xff]
        %v1608 = vld [vmem:[%s1540 + $0x38] sm:$0xff]
        %v1609 = vld [vmem:[%s1540 + $0x40] sm:$0xff]
        %v1610 = vld [vmem:[%s1540 + $0x48] sm:$0xff]
        %v1611 = vld [vmem:[%s1540 + $0x50] sm:$0xff]
        %v1612 = vld [vmem:[%s1540 + $0x58] sm:$0xff]
        %v1613 = vld [vmem:[%s1540 + $0x60] sm:$0xff]
        %v1614 = vld [vmem:[%s1540 + $0x68] sm:$0xff]
        %v1615 = vld [vmem:[%s1540 + $0x70] sm:$0xff]
        %v1616 = vld [vmem:[%s1540 + $0x78] sm:$0xff]
        %v1617 = vld [vmem:[%s1540 + $0x80] sm:$0xff]
        %v1618 = vld [vmem:[%s1540 + $0x88] sm:$0xff]
        %v1619 = vld [vmem:[%s1540 + $0x90] sm:$0xff]
        %v1620 = vld [vmem:[%s1540 + $0x98] sm:$0xff]
        %v1621 = vld [vmem:[%s1540 + $0xa0] sm:$0xff]
        %v1622 = vld [vmem:[%s1540 + $0xa8] sm:$0xff]
        %v1623 = vld [vmem:[%s1540 + $0xb0] sm:$0xff]
        %v1624 = vld [vmem:[%s1540 + $0xb8] sm:$0xff]
        %v1625 = vld [vmem:[%s1540 + $0xc0] sm:$0xff]
        %v1626 = vld [vmem:[%s1540 + $0xc8] sm:$0xff]
        %v1627 = vld [vmem:[%s1540 + $0xd0] sm:$0xff]
        %v1628 = vld [vmem:[%s1540 + $0xd8] sm:$0xff]
        %v1629 = vld [vmem:[%s1540 + $0xe0] sm:$0xff]
        %v1630 = vld [vmem:[%s1540 + $0xe8] sm:$0xff]
        %v1631 = vld [vmem:[%s1540 + $0xf0] sm:$0xff]
        %v1632 = vld [vmem:[%s1540 + $0xf8] sm:$0xff]
        %v1633 = vld [vmem:[%s1540 + $0x100] sm:$0xff]
        %v1634 = vld [vmem:[%s1540 + $0x108] sm:$0xff]
        %v1635 = vld [vmem:[%s1540 + $0x110] sm:$0xff]
        %v1636 = vld [vmem:[%s1540 + $0x118] sm:$0xff]
        %v1637 = vld [vmem:[%s1540 + $0x120] sm:$0xff]
        %v1638 = vld [vmem:[%s1540 + $0x128] sm:$0xff]
        %v1639 = vld [vmem:[%s1540 + $0x130] sm:$0xff]
        %v1640 = vld [vmem:[%s1540 + $0x138] sm:$0xff]
        %v1641 = vld [vmem:[%s1540 + $0x140] sm:$0xff]
        %v1642 = vld [vmem:[%s1540 + $0x148] sm:$0xff]
        %v1643 = vld [vmem:[%s1540 + $0x150] sm:$0xff]
        %v1644 = vld [vmem:[%s1540 + $0x158] sm:$0xff]
        %v1645 = vld [vmem:[%s1540 + $0x160] sm:$0xff]
        %v1646 = vld [vmem:[%s1540 + $0x168] sm:$0xff]
        %v1647 = vld [vmem:[%s1540 + $0x170] sm:$0xff]
        %v1648 = vld [vmem:[%s1540 + $0x178] sm:$0xff]
        %v1649 = vld [vmem:[%s1540 + $0x180] sm:$0xff]
        %v1650 = vld [vmem:[%s1540 + $0x188] sm:$0xff]
        %v1651 = vld [vmem:[%s1540 + $0x190] sm:$0xff]
        %v1652 = vld [vmem:[%s1540 + $0x198] sm:$0xff]
        %v1653 = vld [vmem:[%s1540 + $0x1a0] sm:$0xff]
        %v1654 = vld [vmem:[%s1540 + $0x1a8] sm:$0xff]
        %v1655 = vld [vmem:[%s1540 + $0x1b0] sm:$0xff]
        %v1656 = vld [vmem:[%s1540 + $0x1b8] sm:$0xff]
        %v1657 = vld [vmem:[%s1540 + $0x1c0] sm:$0xff]
        %v1658 = vld [vmem:[%s1540 + $0x1c8] sm:$0xff]
        %v1659 = vld [vmem:[%s1540 + $0x1d0] sm:$0xff]
        %v1660 = vld [vmem:[%s1540 + $0x1d8] sm:$0xff]
        %v1661 = vld [vmem:[%s1540 + $0x1e0] sm:$0xff]
        %v1662 = vld [vmem:[%s1540 + $0x1e8] sm:$0xff]
        %v1663 = vld [vmem:[%s1540 + $0x1f0] sm:$0xff]
        %v1664 = vld [vmem:[%s1540 + $0x1f8] sm:$0xff]
        %v1665 = vld [vmem:[%s1540 + $0x200] sm:$0xff]
        %v1666 = vld [vmem:[%s1540 + $0x208] sm:$0xff]
        %v1667 = vld [vmem:[%s1540 + $0x210] sm:$0xff]
        %v1668 = vld [vmem:[%s1540 + $0x218] sm:$0xff]
        %v1669 = vld [vmem:[%s1540 + $0x220] sm:$0xff]
        %v1670 = vld [vmem:[%s1540 + $0x228] sm:$0xff]
        %v1671 = vld [vmem:[%s1540 + $0x230] sm:$0xff]
        %v1672 = vld [vmem:[%s1540 + $0x238] sm:$0xff]
        %v1673 = vld [vmem:[%s1540 + $0x240] sm:$0xff]
        %v1674 = vld [vmem:[%s1540 + $0x248] sm:$0xff]
        %v1675 = vld [vmem:[%s1540 + $0x250] sm:$0xff]
        %v1676 = vld [vmem:[%s1540 + $0x258] sm:$0xff]
        %v1677 = vld [vmem:[%s1540 + $0x260] sm:$0xff]
        %v1678 = vld [vmem:[%s1540 + $0x268] sm:$0xff]
        %v1679 = vld [vmem:[%s1540 + $0x270] sm:$0xff]
        %v1680 = vld [vmem:[%s1540 + $0x278] sm:$0xff]
        %v1681 = vld [vmem:[%s1540 + $0x280] sm:$0xff]
        %v1682 = vld [vmem:[%s1540 + $0x288] sm:$0xff]
        %v1683 = vld [vmem:[%s1540 + $0x290] sm:$0xff]
        %v1684 = vld [vmem:[%s1540 + $0x298] sm:$0xff]
        %v1685 = vld [vmem:[%s1540 + $0x2a0] sm:$0xff]
        %v1686 = vld [vmem:[%s1540 + $0x2a8] sm:$0xff]
        %v1687 = vld [vmem:[%s1540 + $0x2b0] sm:$0xff]
        %v1688 = vld [vmem:[%s1540 + $0x2b8] sm:$0xff]
        %v1689 = vld [vmem:[%s1540 + $0x2c0] sm:$0xff]
        %v1690 = vld [vmem:[%s1540 + $0x2c8] sm:$0xff]
        %v1691 = vld [vmem:[%s1540 + $0x2d0] sm:$0xff]
        %v1692 = vld [vmem:[%s1540 + $0x2d8] sm:$0xff]
        %v1693 = vld [vmem:[%s1540 + $0x2e0] sm:$0xff]
        %v1694 = vld [vmem:[%s1540 + $0x2e8] sm:$0xff]
        %v1695 = vld [vmem:[%s1540 + $0x2f0] sm:$0xff]
        %v1696 = vld [vmem:[%s1540 + $0x2f8] sm:$0xff]
        %v1697 = vld [vmem:[%s1540 + $0x300] sm:$0xff]
        %v1698 = vld [vmem:[%s1540 + $0x308] sm:$0xff]
        %v1699 = vld [vmem:[%s1540 + $0x310] sm:$0xff]
        %v1700 = vld [vmem:[%s1540 + $0x318] sm:$0xff]
        %v1701 = vld [vmem:[%s1540 + $0x320] sm:$0xff]
        %v1702 = vld [vmem:[%s1540 + $0x328] sm:$0xff]
        %v1703 = vld [vmem:[%s1540 + $0x330] sm:$0xff]
        %v1704 = vld [vmem:[%s1540 + $0x338] sm:$0xff]
        %v1705 = vld [vmem:[%s1540 + $0x340] sm:$0xff]
        %v1706 = vld [vmem:[%s1540 + $0x348] sm:$0xff]
        %v1707 = vld [vmem:[%s1540 + $0x350] sm:$0xff]
        %v1708 = vld [vmem:[%s1540 + $0x358] sm:$0xff]
        %v1709 = vld [vmem:[%s1540 + $0x360] sm:$0xff]
        %v1710 = vld [vmem:[%s1540 + $0x368] sm:$0xff]
        %v1711 = vld [vmem:[%s1540 + $0x370] sm:$0xff]
        %v1712 = vld [vmem:[%s1540 + $0x378] sm:$0xff]
        %v1713 = vld [vmem:[%s1540 + $0x380] sm:$0xff]
        %v1714 = vld [vmem:[%s1540 + $0x388] sm:$0xff]
        %v1715 = vld [vmem:[%s1540 + $0x390] sm:$0xff]
        %v1716 = vld [vmem:[%s1540 + $0x398] sm:$0xff]
        %v1717 = vld [vmem:[%s1540 + $0x3a0] sm:$0xff]
        %v1718 = vld [vmem:[%s1540 + $0x3a8] sm:$0xff]
        %v1719 = vld [vmem:[%s1540 + $0x3b0] sm:$0xff]
        %v1720 = vld [vmem:[%s1540 + $0x3b8] sm:$0xff]
        %v1721 = vld [vmem:[%s1540 + $0x3c0] sm:$0xff]
        %v1722 = vld [vmem:[%s1540 + $0x3c8] sm:$0xff]
        %v1723 = vld [vmem:[%s1540 + $0x3d0] sm:$0xff]
        %v1724 = vld [vmem:[%s1540 + $0x3d8] sm:$0xff]
        %v1725 = vld [vmem:[%s1540 + $0x3e0] sm:$0xff]
        %v1726 = vld [vmem:[%s1540 + $0x3e8] sm:$0xff]
        %v1727 = vld [vmem:[%s1540 + $0x3f0] sm:$0xff]
        %v1728 = vld [vmem:[%s1540 + $0x3f8] sm:$0xff]
        %v1729 = vadd.f32 %v1601, %v1602
        %v1730 = vadd.f32 %v1729, %v1603
        %v1731 = vadd.f32 %v1730, %v1604
        %1732 = vadd.xlane.f32.xlu0 %v1731
        %v1733 = vpop.xlane.xlu0 %1732
        %v1734 = vadd.f32 %v1605, %v1606
        %v1735 = vadd.f32 %v1734, %v1607
        %v1736 = vadd.f32 %v1735, %v1608
        %1737 = vadd.xlane.f32.xlu0 %v1736
        %v1738 = vpop.xlane.xlu0 %1737
        %v1739 = vadd.f32 %v1609, %v1610
        %v1740 = vadd.f32 %v1739, %v1611
        %v1741 = vadd.f32 %v1740, %v1612
        %1742 = vadd.xlane.f32.xlu0 %v1741
        %v1743 = vpop.xlane.xlu0 %1742
        %v1744 = vadd.f32 %v1613, %v1614
        %v1745 = vadd.f32 %v1744, %v1615
        %v1746 = vadd.f32 %v1745, %v1616
        %1747 = vadd.xlane.f32.xlu0 %v1746
        %v1748 = vpop.xlane.xlu0 %1747
        %v1749 = vadd.f32 %v1617, %v1618
        %v1750 = vadd.f32 %v1749, %v1619
        %v1751 = vadd.f32 %v1750, %v1620
        %1752 = vadd.xlane.f32.xlu0 %v1751
        %v1753 = vpop.xlane.xlu0 %1752
        %v1754 = vadd.f32 %v1621, %v1622
        %v1755 = vadd.f32 %v1754, %v1623
        %v1756 = vadd.f32 %v1755, %v1624
        %1757 = vadd.xlane.f32.xlu0 %v1756
        %v1758 = vpop.xlane.xlu0 %1757
        %v1759 = vadd.f32 %v1625, %v1626
        %v1760 = vadd.f32 %v1759, %v1627
        %v1761 = vadd.f32 %v1760, %v1628
        %1762 = vadd.xlane.f32.xlu0 %v1761
        %v1763 = vpop.xlane.xlu0 %1762
        %v1764 = vadd.f32 %v1629, %v1630
        %v1765 = vadd.f32 %v1764, %v1631
        %v1766 = vadd.f32 %v1765, %v1632
        %1767 = vadd.xlane.f32.xlu0 %v1766
        %v1768 = vpop.xlane.xlu0 %1767
        %v1769 = vadd.f32 %v1633, %v1634
        %v1770 = vadd.f32 %v1769, %v1635
        %v1771 = vadd.f32 %v1770, %v1636
        %1772 = vadd.xlane.f32.xlu0 %v1771
        %v1773 = vpop.xlane.xlu0 %1772
        %v1774 = vadd.f32 %v1637, %v1638
        %v1775 = vadd.f32 %v1774, %v1639
        %v1776 = vadd.f32 %v1775, %v1640
        %1777 = vadd.xlane.f32.xlu0 %v1776
        %v1778 = vpop.xlane.xlu0 %1777
        %v1779 = vadd.f32 %v1641, %v1642
        %v1780 = vadd.f32 %v1779, %v1643
        %v1781 = vadd.f32 %v1780, %v1644
        %1782 = vadd.xlane.f32.xlu0 %v1781
        %v1783 = vpop.xlane.xlu0 %1782
        %v1784 = vadd.f32 %v1645, %v1646
        %v1785 = vadd.f32 %v1784, %v1647
        %v1786 = vadd.f32 %v1785, %v1648
        %1787 = vadd.xlane.f32.xlu0 %v1786
        %v1788 = vpop.xlane.xlu0 %1787
        %v1789 = vadd.f32 %v1649, %v1650
        %v1790 = vadd.f32 %v1789, %v1651
        %v1791 = vadd.f32 %v1790, %v1652
        %1792 = vadd.xlane.f32.xlu0 %v1791
        %v1793 = vpop.xlane.xlu0 %1792
        %v1794 = vadd.f32 %v1653, %v1654
        %v1795 = vadd.f32 %v1794, %v1655
        %v1796 = vadd.f32 %v1795, %v1656
        %1797 = vadd.xlane.f32.xlu0 %v1796
        %v1798 = vpop.xlane.xlu0 %1797
        %v1799 = vadd.f32 %v1657, %v1658
        %v1800 = vadd.f32 %v1799, %v1659
        %v1801 = vadd.f32 %v1800, %v1660
        %1802 = vadd.xlane.f32.xlu0 %v1801
        %v1803 = vpop.xlane.xlu0 %1802
        %v1804 = vadd.f32 %v1661, %v1662
        %v1805 = vadd.f32 %v1804, %v1663
        %v1806 = vadd.f32 %v1805, %v1664
        %1807 = vadd.xlane.f32.xlu0 %v1806
        %v1808 = vpop.xlane.xlu0 %1807
        %v1809 = vadd.f32 %v1665, %v1666
        %v1810 = vadd.f32 %v1809, %v1667
        %v1811 = vadd.f32 %v1810, %v1668
        %1812 = vadd.xlane.f32.xlu0 %v1811
        %v1813 = vpop.xlane.xlu0 %1812
        %v1814 = vadd.f32 %v1669, %v1670
        %v1815 = vadd.f32 %v1814, %v1671
        %v1816 = vadd.f32 %v1815, %v1672
        %1817 = vadd.xlane.f32.xlu0 %v1816
        %v1818 = vpop.xlane.xlu0 %1817
        %v1819 = vadd.f32 %v1673, %v1674
        %v1820 = vadd.f32 %v1819, %v1675
        %v1821 = vadd.f32 %v1820, %v1676
        %1822 = vadd.xlane.f32.xlu0 %v1821
        %v1823 = vpop.xlane.xlu0 %1822
        %v1824 = vadd.f32 %v1677, %v1678
        %v1825 = vadd.f32 %v1824, %v1679
        %v1826 = vadd.f32 %v1825, %v1680
        %1827 = vadd.xlane.f32.xlu0 %v1826
        %v1828 = vpop.xlane.xlu0 %1827
        %v1829 = vadd.f32 %v1681, %v1682
        %v1830 = vadd.f32 %v1829, %v1683
        %v1831 = vadd.f32 %v1830, %v1684
        %1832 = vadd.xlane.f32.xlu0 %v1831
        %v1833 = vpop.xlane.xlu0 %1832
        %v1834 = vadd.f32 %v1685, %v1686
        %v1835 = vadd.f32 %v1834, %v1687
        %v1836 = vadd.f32 %v1835, %v1688
        %1837 = vadd.xlane.f32.xlu0 %v1836
        %v1838 = vpop.xlane.xlu0 %1837
        %v1839 = vadd.f32 %v1689, %v1690
        %v1840 = vadd.f32 %v1839, %v1691
        %v1841 = vadd.f32 %v1840, %v1692
        %1842 = vadd.xlane.f32.xlu0 %v1841
        %v1843 = vpop.xlane.xlu0 %1842
        %v1844 = vadd.f32 %v1693, %v1694
        %v1845 = vadd.f32 %v1844, %v1695
        %v1846 = vadd.f32 %v1845, %v1696
        %1847 = vadd.xlane.f32.xlu0 %v1846
        %v1848 = vpop.xlane.xlu0 %1847
        %v1849 = vadd.f32 %v1697, %v1698
        %v1850 = vadd.f32 %v1849, %v1699
        %v1851 = vadd.f32 %v1850, %v1700
        %1852 = vadd.xlane.f32.xlu0 %v1851
        %v1853 = vpop.xlane.xlu0 %1852
        %v1854 = vadd.f32 %v1701, %v1702
        %v1855 = vadd.f32 %v1854, %v1703
        %v1856 = vadd.f32 %v1855, %v1704
        %1857 = vadd.xlane.f32.xlu0 %v1856
        %v1858 = vpop.xlane.xlu0 %1857
        %v1859 = vadd.f32 %v1705, %v1706
        %v1860 = vadd.f32 %v1859, %v1707
        %v1861 = vadd.f32 %v1860, %v1708
        %1862 = vadd.xlane.f32.xlu0 %v1861
        %v1863 = vpop.xlane.xlu0 %1862
        %v1864 = vadd.f32 %v1709, %v1710
        %v1865 = vadd.f32 %v1864, %v1711
        %v1866 = vadd.f32 %v1865, %v1712
        %1867 = vadd.xlane.f32.xlu0 %v1866
        %v1868 = vpop.xlane.xlu0 %1867
        %v1869 = vadd.f32 %v1713, %v1714
        %v1870 = vadd.f32 %v1869, %v1715
        %v1871 = vadd.f32 %v1870, %v1716
        %1872 = vadd.xlane.f32.xlu0 %v1871
        %v1873 = vpop.xlane.xlu0 %1872
        %v1874 = vadd.f32 %v1717, %v1718
        %v1875 = vadd.f32 %v1874, %v1719
        %v1876 = vadd.f32 %v1875, %v1720
        %1877 = vadd.xlane.f32.xlu0 %v1876
        %v1878 = vpop.xlane.xlu0 %1877
        %v1879 = vadd.f32 %v1721, %v1722
        %v1880 = vadd.f32 %v1879, %v1723
        %v1881 = vadd.f32 %v1880, %v1724
        %1882 = vadd.xlane.f32.xlu0 %v1881
        %v1883 = vpop.xlane.xlu0 %1882
        %v1884 = vadd.f32 %v1725, %v1726
        %v1885 = vadd.f32 %v1884, %v1727
        %v1886 = vadd.f32 %v1885, %v1728
        %1887 = vadd.xlane.f32.xlu0 %v1886
        %v1888 = vpop.xlane.xlu0 %1887
        %v1889 = vmul.f32 %v1733, 0.001953125
        %v1890 = vmul.f32 %v1738, 0.001953125
        %v1891 = vmul.f32 %v1743, 0.001953125
        %v1892 = vmul.f32 %v1748, 0.001953125
        %v1893 = vmul.f32 %v1753, 0.001953125
        %v1894 = vmul.f32 %v1758, 0.001953125
        %v1895 = vmul.f32 %v1763, 0.001953125
        %v1896 = vmul.f32 %v1768, 0.001953125
        %v1897 = vmul.f32 %v1773, 0.001953125
        %v1898 = vmul.f32 %v1778, 0.001953125
        %v1899 = vmul.f32 %v1783, 0.001953125
        %v1900 = vmul.f32 %v1788, 0.001953125
        %v1901 = vmul.f32 %v1793, 0.001953125
        %v1902 = vmul.f32 %v1798, 0.001953125
        %v1903 = vmul.f32 %v1803, 0.001953125
        %v1904 = vmul.f32 %v1808, 0.001953125
        %v1905 = vmul.f32 %v1813, 0.001953125
        %v1906 = vmul.f32 %v1818, 0.001953125
        %v1907 = vmul.f32 %v1823, 0.001953125
        %v1908 = vmul.f32 %v1828, 0.001953125
        %v1909 = vmul.f32 %v1833, 0.001953125
        %v1910 = vmul.f32 %v1838, 0.001953125
        %v1911 = vmul.f32 %v1843, 0.001953125
        %v1912 = vmul.f32 %v1848, 0.001953125
        %v1913 = vmul.f32 %v1853, 0.001953125
        %v1914 = vmul.f32 %v1858, 0.001953125
        %v1915 = vmul.f32 %v1863, 0.001953125
        %v1916 = vmul.f32 %v1868, 0.001953125
        %v1917 = vmul.f32 %v1873, 0.001953125
        %v1918 = vmul.f32 %v1878, 0.001953125
        %v1919 = vmul.f32 %v1883, 0.001953125
        %v1920 = vmul.f32 %v1888, 0.001953125
        %v1921 = vld [vmem:[%s1547] sm:$0xff]
        %v1922 = vld [vmem:[%s1547 + $0x8] sm:$0xff]
        %v1923 = vld [vmem:[%s1547 + $0x10] sm:$0xff]
        %v1924 = vld [vmem:[%s1547 + $0x18] sm:$0xff]
        %v1925 = vld [vmem:[%s1547 + $0x20] sm:$0xff]
        %v1926 = vld [vmem:[%s1547 + $0x28] sm:$0xff]
        %v1927 = vld [vmem:[%s1547 + $0x30] sm:$0xff]
        %v1928 = vld [vmem:[%s1547 + $0x38] sm:$0xff]
        %v1929 = vld [vmem:[%s1547 + $0x40] sm:$0xff]
        %v1930 = vld [vmem:[%s1547 + $0x48] sm:$0xff]
        %v1931 = vld [vmem:[%s1547 + $0x50] sm:$0xff]
        %v1932 = vld [vmem:[%s1547 + $0x58] sm:$0xff]
        %v1933 = vld [vmem:[%s1547 + $0x60] sm:$0xff]
        %v1934 = vld [vmem:[%s1547 + $0x68] sm:$0xff]
        %v1935 = vld [vmem:[%s1547 + $0x70] sm:$0xff]
        %v1936 = vld [vmem:[%s1547 + $0x78] sm:$0xff]
        %v1937 = vld [vmem:[%s1547 + $0x80] sm:$0xff]
        %v1938 = vld [vmem:[%s1547 + $0x88] sm:$0xff]
        %v1939 = vld [vmem:[%s1547 + $0x90] sm:$0xff]
        %v1940 = vld [vmem:[%s1547 + $0x98] sm:$0xff]
        %v1941 = vld [vmem:[%s1547 + $0xa0] sm:$0xff]
        %v1942 = vld [vmem:[%s1547 + $0xa8] sm:$0xff]
        %v1943 = vld [vmem:[%s1547 + $0xb0] sm:$0xff]
        %v1944 = vld [vmem:[%s1547 + $0xb8] sm:$0xff]
        %v1945 = vld [vmem:[%s1547 + $0xc0] sm:$0xff]
        %v1946 = vld [vmem:[%s1547 + $0xc8] sm:$0xff]
        %v1947 = vld [vmem:[%s1547 + $0xd0] sm:$0xff]
        %v1948 = vld [vmem:[%s1547 + $0xd8] sm:$0xff]
        %v1949 = vld [vmem:[%s1547 + $0xe0] sm:$0xff]
        %v1950 = vld [vmem:[%s1547 + $0xe8] sm:$0xff]
        %v1951 = vld [vmem:[%s1547 + $0xf0] sm:$0xff]
        %v1952 = vld [vmem:[%s1547 + $0xf8] sm:$0xff]
        %v1953 = vld [vmem:[%s1547 + $0x100] sm:$0xff]
        %v1954 = vld [vmem:[%s1547 + $0x108] sm:$0xff]
        %v1955 = vld [vmem:[%s1547 + $0x110] sm:$0xff]
        %v1956 = vld [vmem:[%s1547 + $0x118] sm:$0xff]
        %v1957 = vld [vmem:[%s1547 + $0x120] sm:$0xff]
        %v1958 = vld [vmem:[%s1547 + $0x128] sm:$0xff]
        %v1959 = vld [vmem:[%s1547 + $0x130] sm:$0xff]
        %v1960 = vld [vmem:[%s1547 + $0x138] sm:$0xff]
        %v1961 = vld [vmem:[%s1547 + $0x140] sm:$0xff]
        %v1962 = vld [vmem:[%s1547 + $0x148] sm:$0xff]
        %v1963 = vld [vmem:[%s1547 + $0x150] sm:$0xff]
        %v1964 = vld [vmem:[%s1547 + $0x158] sm:$0xff]
        %v1965 = vld [vmem:[%s1547 + $0x160] sm:$0xff]
        %v1966 = vld [vmem:[%s1547 + $0x168] sm:$0xff]
        %v1967 = vld [vmem:[%s1547 + $0x170] sm:$0xff]
        %v1968 = vld [vmem:[%s1547 + $0x178] sm:$0xff]
        %v1969 = vld [vmem:[%s1547 + $0x180] sm:$0xff]
        %v1970 = vld [vmem:[%s1547 + $0x188] sm:$0xff]
        %v1971 = vld [vmem:[%s1547 + $0x190] sm:$0xff]
        %v1972 = vld [vmem:[%s1547 + $0x198] sm:$0xff]
        %v1973 = vld [vmem:[%s1547 + $0x1a0] sm:$0xff]
        %v1974 = vld [vmem:[%s1547 + $0x1a8] sm:$0xff]
        %v1975 = vld [vmem:[%s1547 + $0x1b0] sm:$0xff]
        %v1976 = vld [vmem:[%s1547 + $0x1b8] sm:$0xff]
        %v1977 = vld [vmem:[%s1547 + $0x1c0] sm:$0xff]
        %v1978 = vld [vmem:[%s1547 + $0x1c8] sm:$0xff]
        %v1979 = vld [vmem:[%s1547 + $0x1d0] sm:$0xff]
        %v1980 = vld [vmem:[%s1547 + $0x1d8] sm:$0xff]
        %v1981 = vld [vmem:[%s1547 + $0x1e0] sm:$0xff]
        %v1982 = vld [vmem:[%s1547 + $0x1e8] sm:$0xff]
        %v1983 = vld [vmem:[%s1547 + $0x1f0] sm:$0xff]
        %v1984 = vld [vmem:[%s1547 + $0x1f8] sm:$0xff]
        %v1985 = vld [vmem:[%s1547 + $0x200] sm:$0xff]
        %v1986 = vld [vmem:[%s1547 + $0x208] sm:$0xff]
        %v1987 = vld [vmem:[%s1547 + $0x210] sm:$0xff]
        %v1988 = vld [vmem:[%s1547 + $0x218] sm:$0xff]
        %v1989 = vld [vmem:[%s1547 + $0x220] sm:$0xff]
        %v1990 = vld [vmem:[%s1547 + $0x228] sm:$0xff]
        %v1991 = vld [vmem:[%s1547 + $0x230] sm:$0xff]
        %v1992 = vld [vmem:[%s1547 + $0x238] sm:$0xff]
        %v1993 = vld [vmem:[%s1547 + $0x240] sm:$0xff]
        %v1994 = vld [vmem:[%s1547 + $0x248] sm:$0xff]
        %v1995 = vld [vmem:[%s1547 + $0x250] sm:$0xff]
        %v1996 = vld [vmem:[%s1547 + $0x258] sm:$0xff]
        %v1997 = vld [vmem:[%s1547 + $0x260] sm:$0xff]
        %v1998 = vld [vmem:[%s1547 + $0x268] sm:$0xff]
        %v1999 = vld [vmem:[%s1547 + $0x270] sm:$0xff]
        %v2000 = vld [vmem:[%s1547 + $0x278] sm:$0xff]
        %v2001 = vld [vmem:[%s1547 + $0x280] sm:$0xff]
        %v2002 = vld [vmem:[%s1547 + $0x288] sm:$0xff]
        %v2003 = vld [vmem:[%s1547 + $0x290] sm:$0xff]
        %v2004 = vld [vmem:[%s1547 + $0x298] sm:$0xff]
        %v2005 = vld [vmem:[%s1547 + $0x2a0] sm:$0xff]
        %v2006 = vld [vmem:[%s1547 + $0x2a8] sm:$0xff]
        %v2007 = vld [vmem:[%s1547 + $0x2b0] sm:$0xff]
        %v2008 = vld [vmem:[%s1547 + $0x2b8] sm:$0xff]
        %v2009 = vld [vmem:[%s1547 + $0x2c0] sm:$0xff]
        %v2010 = vld [vmem:[%s1547 + $0x2c8] sm:$0xff]
        %v2011 = vld [vmem:[%s1547 + $0x2d0] sm:$0xff]
        %v2012 = vld [vmem:[%s1547 + $0x2d8] sm:$0xff]
        %v2013 = vld [vmem:[%s1547 + $0x2e0] sm:$0xff]
        %v2014 = vld [vmem:[%s1547 + $0x2e8] sm:$0xff]
        %v2015 = vld [vmem:[%s1547 + $0x2f0] sm:$0xff]
        %v2016 = vld [vmem:[%s1547 + $0x2f8] sm:$0xff]
        %v2017 = vld [vmem:[%s1547 + $0x300] sm:$0xff]
        %v2018 = vld [vmem:[%s1547 + $0x308] sm:$0xff]
        %v2019 = vld [vmem:[%s1547 + $0x310] sm:$0xff]
        %v2020 = vld [vmem:[%s1547 + $0x318] sm:$0xff]
        %v2021 = vld [vmem:[%s1547 + $0x320] sm:$0xff]
        %v2022 = vld [vmem:[%s1547 + $0x328] sm:$0xff]
        %v2023 = vld [vmem:[%s1547 + $0x330] sm:$0xff]
        %v2024 = vld [vmem:[%s1547 + $0x338] sm:$0xff]
        %v2025 = vld [vmem:[%s1547 + $0x340] sm:$0xff]
        %v2026 = vld [vmem:[%s1547 + $0x348] sm:$0xff]
        %v2027 = vld [vmem:[%s1547 + $0x350] sm:$0xff]
        %v2028 = vld [vmem:[%s1547 + $0x358] sm:$0xff]
        %v2029 = vld [vmem:[%s1547 + $0x360] sm:$0xff]
        %v2030 = vld [vmem:[%s1547 + $0x368] sm:$0xff]
        %v2031 = vld [vmem:[%s1547 + $0x370] sm:$0xff]
        %v2032 = vld [vmem:[%s1547 + $0x378] sm:$0xff]
        %v2033 = vld [vmem:[%s1547 + $0x380] sm:$0xff]
        %v2034 = vld [vmem:[%s1547 + $0x388] sm:$0xff]
        %v2035 = vld [vmem:[%s1547 + $0x390] sm:$0xff]
        %v2036 = vld [vmem:[%s1547 + $0x398] sm:$0xff]
        %v2037 = vld [vmem:[%s1547 + $0x3a0] sm:$0xff]
        %v2038 = vld [vmem:[%s1547 + $0x3a8] sm:$0xff]
        %v2039 = vld [vmem:[%s1547 + $0x3b0] sm:$0xff]
        %v2040 = vld [vmem:[%s1547 + $0x3b8] sm:$0xff]
        %v2041 = vld [vmem:[%s1547 + $0x3c0] sm:$0xff]
        %v2042 = vld [vmem:[%s1547 + $0x3c8] sm:$0xff]
        %v2043 = vld [vmem:[%s1547 + $0x3d0] sm:$0xff]
        %v2044 = vld [vmem:[%s1547 + $0x3d8] sm:$0xff]
        %v2045 = vld [vmem:[%s1547 + $0x3e0] sm:$0xff]
        %v2046 = vld [vmem:[%s1547 + $0x3e8] sm:$0xff]
        %v2047 = vld [vmem:[%s1547 + $0x3f0] sm:$0xff]
        %v2048 = vld [vmem:[%s1547 + $0x3f8] sm:$0xff]
        %v2049 = vld [vmem:[%s1547 + $0x400] sm:$0xff]
        %v2050 = vld [vmem:[%s1547 + $0x408] sm:$0xff]
        %v2051 = vld [vmem:[%s1547 + $0x410] sm:$0xff]
        %v2052 = vld [vmem:[%s1547 + $0x418] sm:$0xff]
        %v2053 = vld [vmem:[%s1547 + $0x420] sm:$0xff]
        %v2054 = vld [vmem:[%s1547 + $0x428] sm:$0xff]
        %v2055 = vld [vmem:[%s1547 + $0x430] sm:$0xff]
        %v2056 = vld [vmem:[%s1547 + $0x438] sm:$0xff]
        %v2057 = vld [vmem:[%s1547 + $0x440] sm:$0xff]
        %v2058 = vld [vmem:[%s1547 + $0x448] sm:$0xff]
        %v2059 = vld [vmem:[%s1547 + $0x450] sm:$0xff]
        %v2060 = vld [vmem:[%s1547 + $0x458] sm:$0xff]
        %v2061 = vld [vmem:[%s1547 + $0x460] sm:$0xff]
        %v2062 = vld [vmem:[%s1547 + $0x468] sm:$0xff]
        %v2063 = vld [vmem:[%s1547 + $0x470] sm:$0xff]
        %v2064 = vld [vmem:[%s1547 + $0x478] sm:$0xff]
        %v2065 = vld [vmem:[%s1547 + $0x480] sm:$0xff]
        %v2066 = vld [vmem:[%s1547 + $0x488] sm:$0xff]
        %v2067 = vld [vmem:[%s1547 + $0x490] sm:$0xff]
        %v2068 = vld [vmem:[%s1547 + $0x498] sm:$0xff]
        %v2069 = vld [vmem:[%s1547 + $0x4a0] sm:$0xff]
        %v2070 = vld [vmem:[%s1547 + $0x4a8] sm:$0xff]
        %v2071 = vld [vmem:[%s1547 + $0x4b0] sm:$0xff]
        %v2072 = vld [vmem:[%s1547 + $0x4b8] sm:$0xff]
        %v2073 = vld [vmem:[%s1547 + $0x4c0] sm:$0xff]
        %v2074 = vld [vmem:[%s1547 + $0x4c8] sm:$0xff]
        %v2075 = vld [vmem:[%s1547 + $0x4d0] sm:$0xff]
        %v2076 = vld [vmem:[%s1547 + $0x4d8] sm:$0xff]
        %v2077 = vld [vmem:[%s1547 + $0x4e0] sm:$0xff]
        %v2078 = vld [vmem:[%s1547 + $0x4e8] sm:$0xff]
        %v2079 = vld [vmem:[%s1547 + $0x4f0] sm:$0xff]
        %v2080 = vld [vmem:[%s1547 + $0x4f8] sm:$0xff]
        %v2081 = vld [vmem:[%s1547 + $0x500] sm:$0xff]
        %v2082 = vld [vmem:[%s1547 + $0x508] sm:$0xff]
        %v2083 = vld [vmem:[%s1547 + $0x510] sm:$0xff]
        %v2084 = vld [vmem:[%s1547 + $0x518] sm:$0xff]
        %v2085 = vld [vmem:[%s1547 + $0x520] sm:$0xff]
        %v2086 = vld [vmem:[%s1547 + $0x528] sm:$0xff]
        %v2087 = vld [vmem:[%s1547 + $0x530] sm:$0xff]
        %v2088 = vld [vmem:[%s1547 + $0x538] sm:$0xff]
        %v2089 = vld [vmem:[%s1547 + $0x540] sm:$0xff]
        %v2090 = vld [vmem:[%s1547 + $0x548] sm:$0xff]
        %v2091 = vld [vmem:[%s1547 + $0x550] sm:$0xff]
        %v2092 = vld [vmem:[%s1547 + $0x558] sm:$0xff]
        %v2093 = vld [vmem:[%s1547 + $0x560] sm:$0xff]
        %v2094 = vld [vmem:[%s1547 + $0x568] sm:$0xff]
        %v2095 = vld [vmem:[%s1547 + $0x570] sm:$0xff]
        %v2096 = vld [vmem:[%s1547 + $0x578] sm:$0xff]
        %v2097 = vld [vmem:[%s1547 + $0x580] sm:$0xff]
        %v2098 = vld [vmem:[%s1547 + $0x588] sm:$0xff]
        %v2099 = vld [vmem:[%s1547 + $0x590] sm:$0xff]
        %v2100 = vld [vmem:[%s1547 + $0x598] sm:$0xff]
        %v2101 = vld [vmem:[%s1547 + $0x5a0] sm:$0xff]
        %v2102 = vld [vmem:[%s1547 + $0x5a8] sm:$0xff]
        %v2103 = vld [vmem:[%s1547 + $0x5b0] sm:$0xff]
        %v2104 = vld [vmem:[%s1547 + $0x5b8] sm:$0xff]
        %v2105 = vld [vmem:[%s1547 + $0x5c0] sm:$0xff]
        %v2106 = vld [vmem:[%s1547 + $0x5c8] sm:$0xff]
        %v2107 = vld [vmem:[%s1547 + $0x5d0] sm:$0xff]
        %v2108 = vld [vmem:[%s1547 + $0x5d8] sm:$0xff]
        %v2109 = vld [vmem:[%s1547 + $0x5e0] sm:$0xff]
        %v2110 = vld [vmem:[%s1547 + $0x5e8] sm:$0xff]
        %v2111 = vld [vmem:[%s1547 + $0x5f0] sm:$0xff]
        %v2112 = vld [vmem:[%s1547 + $0x5f8] sm:$0xff]
        %v2113 = vld [vmem:[%s1547 + $0x600] sm:$0xff]
        %v2114 = vld [vmem:[%s1547 + $0x608] sm:$0xff]
        %v2115 = vld [vmem:[%s1547 + $0x610] sm:$0xff]
        %v2116 = vld [vmem:[%s1547 + $0x618] sm:$0xff]
        %v2117 = vld [vmem:[%s1547 + $0x620] sm:$0xff]
        %v2118 = vld [vmem:[%s1547 + $0x628] sm:$0xff]
        %v2119 = vld [vmem:[%s1547 + $0x630] sm:$0xff]
        %v2120 = vld [vmem:[%s1547 + $0x638] sm:$0xff]
        %v2121 = vld [vmem:[%s1547 + $0x640] sm:$0xff]
        %v2122 = vld [vmem:[%s1547 + $0x648] sm:$0xff]
        %v2123 = vld [vmem:[%s1547 + $0x650] sm:$0xff]
        %v2124 = vld [vmem:[%s1547 + $0x658] sm:$0xff]
        %v2125 = vld [vmem:[%s1547 + $0x660] sm:$0xff]
        %v2126 = vld [vmem:[%s1547 + $0x668] sm:$0xff]
        %v2127 = vld [vmem:[%s1547 + $0x670] sm:$0xff]
        %v2128 = vld [vmem:[%s1547 + $0x678] sm:$0xff]
        %v2129 = vld [vmem:[%s1547 + $0x680] sm:$0xff]
        %v2130 = vld [vmem:[%s1547 + $0x688] sm:$0xff]
        %v2131 = vld [vmem:[%s1547 + $0x690] sm:$0xff]
        %v2132 = vld [vmem:[%s1547 + $0x698] sm:$0xff]
        %v2133 = vld [vmem:[%s1547 + $0x6a0] sm:$0xff]
        %v2134 = vld [vmem:[%s1547 + $0x6a8] sm:$0xff]
        %v2135 = vld [vmem:[%s1547 + $0x6b0] sm:$0xff]
        %v2136 = vld [vmem:[%s1547 + $0x6b8] sm:$0xff]
        %v2137 = vld [vmem:[%s1547 + $0x6c0] sm:$0xff]
        %v2138 = vld [vmem:[%s1547 + $0x6c8] sm:$0xff]
        %v2139 = vld [vmem:[%s1547 + $0x6d0] sm:$0xff]
        %v2140 = vld [vmem:[%s1547 + $0x6d8] sm:$0xff]
        %v2141 = vld [vmem:[%s1547 + $0x6e0] sm:$0xff]
        %v2142 = vld [vmem:[%s1547 + $0x6e8] sm:$0xff]
        %v2143 = vld [vmem:[%s1547 + $0x6f0] sm:$0xff]
        %v2144 = vld [vmem:[%s1547 + $0x6f8] sm:$0xff]
        %v2145 = vld [vmem:[%s1547 + $0x700] sm:$0xff]
        %v2146 = vld [vmem:[%s1547 + $0x708] sm:$0xff]
        %v2147 = vld [vmem:[%s1547 + $0x710] sm:$0xff]
        %v2148 = vld [vmem:[%s1547 + $0x718] sm:$0xff]
        %v2149 = vld [vmem:[%s1547 + $0x720] sm:$0xff]
        %v2150 = vld [vmem:[%s1547 + $0x728] sm:$0xff]
        %v2151 = vld [vmem:[%s1547 + $0x730] sm:$0xff]
        %v2152 = vld [vmem:[%s1547 + $0x738] sm:$0xff]
        %v2153 = vld [vmem:[%s1547 + $0x740] sm:$0xff]
        %v2154 = vld [vmem:[%s1547 + $0x748] sm:$0xff]
        %v2155 = vld [vmem:[%s1547 + $0x750] sm:$0xff]
        %v2156 = vld [vmem:[%s1547 + $0x758] sm:$0xff]
        %v2157 = vld [vmem:[%s1547 + $0x760] sm:$0xff]
        %v2158 = vld [vmem:[%s1547 + $0x768] sm:$0xff]
        %v2159 = vld [vmem:[%s1547 + $0x770] sm:$0xff]
        %v2160 = vld [vmem:[%s1547 + $0x778] sm:$0xff]
        %v2161 = vld [vmem:[%s1547 + $0x780] sm:$0xff]
        %v2162 = vld [vmem:[%s1547 + $0x788] sm:$0xff]
        %v2163 = vld [vmem:[%s1547 + $0x790] sm:$0xff]
        %v2164 = vld [vmem:[%s1547 + $0x798] sm:$0xff]
        %v2165 = vld [vmem:[%s1547 + $0x7a0] sm:$0xff]
        %v2166 = vld [vmem:[%s1547 + $0x7a8] sm:$0xff]
        %v2167 = vld [vmem:[%s1547 + $0x7b0] sm:$0xff]
        %v2168 = vld [vmem:[%s1547 + $0x7b8] sm:$0xff]
        %v2169 = vld [vmem:[%s1547 + $0x7c0] sm:$0xff]
        %v2170 = vld [vmem:[%s1547 + $0x7c8] sm:$0xff]
        %v2171 = vld [vmem:[%s1547 + $0x7d0] sm:$0xff]
        %v2172 = vld [vmem:[%s1547 + $0x7d8] sm:$0xff]
        %v2173 = vld [vmem:[%s1547 + $0x7e0] sm:$0xff]
        %v2174 = vld [vmem:[%s1547 + $0x7e8] sm:$0xff]
        %v2175 = vld [vmem:[%s1547 + $0x7f0] sm:$0xff]
        %v2176 = vld [vmem:[%s1547 + $0x7f8] sm:$0xff]
        %v2177 = vld [vmem:[%s1547 + $0x800] sm:$0xff]
        %v2178 = vld [vmem:[%s1547 + $0x808] sm:$0xff]
        %v2179 = vld [vmem:[%s1547 + $0x810] sm:$0xff]
        %v2180 = vld [vmem:[%s1547 + $0x818] sm:$0xff]
        %v2181 = vld [vmem:[%s1547 + $0x820] sm:$0xff]
        %v2182 = vld [vmem:[%s1547 + $0x828] sm:$0xff]
        %v2183 = vld [vmem:[%s1547 + $0x830] sm:$0xff]
        %v2184 = vld [vmem:[%s1547 + $0x838] sm:$0xff]
        %v2185 = vld [vmem:[%s1547 + $0x840] sm:$0xff]
        %v2186 = vld [vmem:[%s1547 + $0x848] sm:$0xff]
        %v2187 = vld [vmem:[%s1547 + $0x850] sm:$0xff]
        %v2188 = vld [vmem:[%s1547 + $0x858] sm:$0xff]
        %v2189 = vld [vmem:[%s1547 + $0x860] sm:$0xff]
        %v2190 = vld [vmem:[%s1547 + $0x868] sm:$0xff]
        %v2191 = vld [vmem:[%s1547 + $0x870] sm:$0xff]
        %v2192 = vld [vmem:[%s1547 + $0x878] sm:$0xff]
        %v2193 = vld [vmem:[%s1547 + $0x880] sm:$0xff]
        %v2194 = vld [vmem:[%s1547 + $0x888] sm:$0xff]
        %v2195 = vld [vmem:[%s1547 + $0x890] sm:$0xff]
        %v2196 = vld [vmem:[%s1547 + $0x898] sm:$0xff]
        %v2197 = vld [vmem:[%s1547 + $0x8a0] sm:$0xff]
        %v2198 = vld [vmem:[%s1547 + $0x8a8] sm:$0xff]
        %v2199 = vld [vmem:[%s1547 + $0x8b0] sm:$0xff]
        %v2200 = vld [vmem:[%s1547 + $0x8b8] sm:$0xff]
        %v2201 = vld [vmem:[%s1547 + $0x8c0] sm:$0xff]
        %v2202 = vld [vmem:[%s1547 + $0x8c8] sm:$0xff]
        %v2203 = vld [vmem:[%s1547 + $0x8d0] sm:$0xff]
        %v2204 = vld [vmem:[%s1547 + $0x8d8] sm:$0xff]
        %v2205 = vld [vmem:[%s1547 + $0x8e0] sm:$0xff]
        %v2206 = vld [vmem:[%s1547 + $0x8e8] sm:$0xff]
        %v2207 = vld [vmem:[%s1547 + $0x8f0] sm:$0xff]
        %v2208 = vld [vmem:[%s1547 + $0x8f8] sm:$0xff]
        %v2209 = vld [vmem:[%s1547 + $0x900] sm:$0xff]
        %v2210 = vld [vmem:[%s1547 + $0x908] sm:$0xff]
        %v2211 = vld [vmem:[%s1547 + $0x910] sm:$0xff]
        %v2212 = vld [vmem:[%s1547 + $0x918] sm:$0xff]
        %v2213 = vld [vmem:[%s1547 + $0x920] sm:$0xff]
        %v2214 = vld [vmem:[%s1547 + $0x928] sm:$0xff]
        %v2215 = vld [vmem:[%s1547 + $0x930] sm:$0xff]
        %v2216 = vld [vmem:[%s1547 + $0x938] sm:$0xff]
        %v2217 = vld [vmem:[%s1547 + $0x940] sm:$0xff]
        %v2218 = vld [vmem:[%s1547 + $0x948] sm:$0xff]
        %v2219 = vld [vmem:[%s1547 + $0x950] sm:$0xff]
        %v2220 = vld [vmem:[%s1547 + $0x958] sm:$0xff]
        %v2221 = vld [vmem:[%s1547 + $0x960] sm:$0xff]
        %v2222 = vld [vmem:[%s1547 + $0x968] sm:$0xff]
        %v2223 = vld [vmem:[%s1547 + $0x970] sm:$0xff]
        %v2224 = vld [vmem:[%s1547 + $0x978] sm:$0xff]
        %v2225 = vld [vmem:[%s1547 + $0x980] sm:$0xff]
        %v2226 = vld [vmem:[%s1547 + $0x988] sm:$0xff]
        %v2227 = vld [vmem:[%s1547 + $0x990] sm:$0xff]
        %v2228 = vld [vmem:[%s1547 + $0x998] sm:$0xff]
        %v2229 = vld [vmem:[%s1547 + $0x9a0] sm:$0xff]
        %v2230 = vld [vmem:[%s1547 + $0x9a8] sm:$0xff]
        %v2231 = vld [vmem:[%s1547 + $0x9b0] sm:$0xff]
        %v2232 = vld [vmem:[%s1547 + $0x9b8] sm:$0xff]
        %v2233 = vld [vmem:[%s1547 + $0x9c0] sm:$0xff]
        %v2234 = vld [vmem:[%s1547 + $0x9c8] sm:$0xff]
        %v2235 = vld [vmem:[%s1547 + $0x9d0] sm:$0xff]
        %v2236 = vld [vmem:[%s1547 + $0x9d8] sm:$0xff]
        %v2237 = vld [vmem:[%s1547 + $0x9e0] sm:$0xff]
        %v2238 = vld [vmem:[%s1547 + $0x9e8] sm:$0xff]
        %v2239 = vld [vmem:[%s1547 + $0x9f0] sm:$0xff]
        %v2240 = vld [vmem:[%s1547 + $0x9f8] sm:$0xff]
        %v2241 = vld [vmem:[%s1547 + $0xa00] sm:$0xff]
        %v2242 = vld [vmem:[%s1547 + $0xa08] sm:$0xff]
        %v2243 = vld [vmem:[%s1547 + $0xa10] sm:$0xff]
        %v2244 = vld [vmem:[%s1547 + $0xa18] sm:$0xff]
        %v2245 = vld [vmem:[%s1547 + $0xa20] sm:$0xff]
        %v2246 = vld [vmem:[%s1547 + $0xa28] sm:$0xff]
        %v2247 = vld [vmem:[%s1547 + $0xa30] sm:$0xff]
        %v2248 = vld [vmem:[%s1547 + $0xa38] sm:$0xff]
        %v2249 = vld [vmem:[%s1547 + $0xa40] sm:$0xff]
        %v2250 = vld [vmem:[%s1547 + $0xa48] sm:$0xff]
        %v2251 = vld [vmem:[%s1547 + $0xa50] sm:$0xff]
        %v2252 = vld [vmem:[%s1547 + $0xa58] sm:$0xff]
        %v2253 = vld [vmem:[%s1547 + $0xa60] sm:$0xff]
        %v2254 = vld [vmem:[%s1547 + $0xa68] sm:$0xff]
        %v2255 = vld [vmem:[%s1547 + $0xa70] sm:$0xff]
        %v2256 = vld [vmem:[%s1547 + $0xa78] sm:$0xff]
        %v2257 = vld [vmem:[%s1547 + $0xa80] sm:$0xff]
        %v2258 = vld [vmem:[%s1547 + $0xa88] sm:$0xff]
        %v2259 = vld [vmem:[%s1547 + $0xa90] sm:$0xff]
        %v2260 = vld [vmem:[%s1547 + $0xa98] sm:$0xff]
        %v2261 = vld [vmem:[%s1547 + $0xaa0] sm:$0xff]
        %v2262 = vld [vmem:[%s1547 + $0xaa8] sm:$0xff]
        %v2263 = vld [vmem:[%s1547 + $0xab0] sm:$0xff]
        %v2264 = vld [vmem:[%s1547 + $0xab8] sm:$0xff]
        %v2265 = vld [vmem:[%s1547 + $0xac0] sm:$0xff]
        %v2266 = vld [vmem:[%s1547 + $0xac8] sm:$0xff]
        %v2267 = vld [vmem:[%s1547 + $0xad0] sm:$0xff]
        %v2268 = vld [vmem:[%s1547 + $0xad8] sm:$0xff]
        %v2269 = vld [vmem:[%s1547 + $0xae0] sm:$0xff]
        %v2270 = vld [vmem:[%s1547 + $0xae8] sm:$0xff]
        %v2271 = vld [vmem:[%s1547 + $0xaf0] sm:$0xff]
        %v2272 = vld [vmem:[%s1547 + $0xaf8] sm:$0xff]
        %v2273 = vld [vmem:[%s1547 + $0xb00] sm:$0xff]
        %v2274 = vld [vmem:[%s1547 + $0xb08] sm:$0xff]
        %v2275 = vld [vmem:[%s1547 + $0xb10] sm:$0xff]
        %v2276 = vld [vmem:[%s1547 + $0xb18] sm:$0xff]
        %v2277 = vld [vmem:[%s1547 + $0xb20] sm:$0xff]
        %v2278 = vld [vmem:[%s1547 + $0xb28] sm:$0xff]
        %v2279 = vld [vmem:[%s1547 + $0xb30] sm:$0xff]
        %v2280 = vld [vmem:[%s1547 + $0xb38] sm:$0xff]
        %v2281 = vld [vmem:[%s1547 + $0xb40] sm:$0xff]
        %v2282 = vld [vmem:[%s1547 + $0xb48] sm:$0xff]
        %v2283 = vld [vmem:[%s1547 + $0xb50] sm:$0xff]
        %v2284 = vld [vmem:[%s1547 + $0xb58] sm:$0xff]
        %v2285 = vld [vmem:[%s1547 + $0xb60] sm:$0xff]
        %v2286 = vld [vmem:[%s1547 + $0xb68] sm:$0xff]
        %v2287 = vld [vmem:[%s1547 + $0xb70] sm:$0xff]
        %v2288 = vld [vmem:[%s1547 + $0xb78] sm:$0xff]
        %v2289 = vld [vmem:[%s1547 + $0xb80] sm:$0xff]
        %v2290 = vld [vmem:[%s1547 + $0xb88] sm:$0xff]
        %v2291 = vld [vmem:[%s1547 + $0xb90] sm:$0xff]
        %v2292 = vld [vmem:[%s1547 + $0xb98] sm:$0xff]
        %v2293 = vld [vmem:[%s1547 + $0xba0] sm:$0xff]
        %v2294 = vld [vmem:[%s1547 + $0xba8] sm:$0xff]
        %v2295 = vld [vmem:[%s1547 + $0xbb0] sm:$0xff]
        %v2296 = vld [vmem:[%s1547 + $0xbb8] sm:$0xff]
        %v2297 = vld [vmem:[%s1547 + $0xbc0] sm:$0xff]
        %v2298 = vld [vmem:[%s1547 + $0xbc8] sm:$0xff]
        %v2299 = vld [vmem:[%s1547 + $0xbd0] sm:$0xff]
        %v2300 = vld [vmem:[%s1547 + $0xbd8] sm:$0xff]
        %v2301 = vld [vmem:[%s1547 + $0xbe0] sm:$0xff]
        %v2302 = vld [vmem:[%s1547 + $0xbe8] sm:$0xff]
        %v2303 = vld [vmem:[%s1547 + $0xbf0] sm:$0xff]
        %v2304 = vld [vmem:[%s1547 + $0xbf8] sm:$0xff]
        %v2305 = vld [vmem:[%s1547 + $0xc00] sm:$0xff]
        %v2306 = vld [vmem:[%s1547 + $0xc08] sm:$0xff]
        %v2307 = vld [vmem:[%s1547 + $0xc10] sm:$0xff]
        %v2308 = vld [vmem:[%s1547 + $0xc18] sm:$0xff]
        %v2309 = vld [vmem:[%s1547 + $0xc20] sm:$0xff]
        %v2310 = vld [vmem:[%s1547 + $0xc28] sm:$0xff]
        %v2311 = vld [vmem:[%s1547 + $0xc30] sm:$0xff]
        %v2312 = vld [vmem:[%s1547 + $0xc38] sm:$0xff]
        %v2313 = vld [vmem:[%s1547 + $0xc40] sm:$0xff]
        %v2314 = vld [vmem:[%s1547 + $0xc48] sm:$0xff]
        %v2315 = vld [vmem:[%s1547 + $0xc50] sm:$0xff]
        %v2316 = vld [vmem:[%s1547 + $0xc58] sm:$0xff]
        %v2317 = vld [vmem:[%s1547 + $0xc60] sm:$0xff]
        %v2318 = vld [vmem:[%s1547 + $0xc68] sm:$0xff]
        %v2319 = vld [vmem:[%s1547 + $0xc70] sm:$0xff]
        %v2320 = vld [vmem:[%s1547 + $0xc78] sm:$0xff]
        %v2321 = vld [vmem:[%s1547 + $0xc80] sm:$0xff]
        %v2322 = vld [vmem:[%s1547 + $0xc88] sm:$0xff]
        %v2323 = vld [vmem:[%s1547 + $0xc90] sm:$0xff]
        %v2324 = vld [vmem:[%s1547 + $0xc98] sm:$0xff]
        %v2325 = vld [vmem:[%s1547 + $0xca0] sm:$0xff]
        %v2326 = vld [vmem:[%s1547 + $0xca8] sm:$0xff]
        %v2327 = vld [vmem:[%s1547 + $0xcb0] sm:$0xff]
        %v2328 = vld [vmem:[%s1547 + $0xcb8] sm:$0xff]
        %v2329 = vld [vmem:[%s1547 + $0xcc0] sm:$0xff]
        %v2330 = vld [vmem:[%s1547 + $0xcc8] sm:$0xff]
        %v2331 = vld [vmem:[%s1547 + $0xcd0] sm:$0xff]
        %v2332 = vld [vmem:[%s1547 + $0xcd8] sm:$0xff]
        %v2333 = vld [vmem:[%s1547 + $0xce0] sm:$0xff]
        %v2334 = vld [vmem:[%s1547 + $0xce8] sm:$0xff]
        %v2335 = vld [vmem:[%s1547 + $0xcf0] sm:$0xff]
        %v2336 = vld [vmem:[%s1547 + $0xcf8] sm:$0xff]
        %v2337 = vld [vmem:[%s1547 + $0xd00] sm:$0xff]
        %v2338 = vld [vmem:[%s1547 + $0xd08] sm:$0xff]
        %v2339 = vld [vmem:[%s1547 + $0xd10] sm:$0xff]
        %v2340 = vld [vmem:[%s1547 + $0xd18] sm:$0xff]
        %v2341 = vld [vmem:[%s1547 + $0xd20] sm:$0xff]
        %v2342 = vld [vmem:[%s1547 + $0xd28] sm:$0xff]
        %v2343 = vld [vmem:[%s1547 + $0xd30] sm:$0xff]
        %v2344 = vld [vmem:[%s1547 + $0xd38] sm:$0xff]
        %v2345 = vld [vmem:[%s1547 + $0xd40] sm:$0xff]
        %v2346 = vld [vmem:[%s1547 + $0xd48] sm:$0xff]
        %v2347 = vld [vmem:[%s1547 + $0xd50] sm:$0xff]
        %v2348 = vld [vmem:[%s1547 + $0xd58] sm:$0xff]
        %v2349 = vld [vmem:[%s1547 + $0xd60] sm:$0xff]
        %v2350 = vld [vmem:[%s1547 + $0xd68] sm:$0xff]
        %v2351 = vld [vmem:[%s1547 + $0xd70] sm:$0xff]
        %v2352 = vld [vmem:[%s1547 + $0xd78] sm:$0xff]
        %v2353 = vld [vmem:[%s1547 + $0xd80] sm:$0xff]
        %v2354 = vld [vmem:[%s1547 + $0xd88] sm:$0xff]
        %v2355 = vld [vmem:[%s1547 + $0xd90] sm:$0xff]
        %v2356 = vld [vmem:[%s1547 + $0xd98] sm:$0xff]
        %v2357 = vld [vmem:[%s1547 + $0xda0] sm:$0xff]
        %v2358 = vld [vmem:[%s1547 + $0xda8] sm:$0xff]
        %v2359 = vld [vmem:[%s1547 + $0xdb0] sm:$0xff]
        %v2360 = vld [vmem:[%s1547 + $0xdb8] sm:$0xff]
        %v2361 = vld [vmem:[%s1547 + $0xdc0] sm:$0xff]
        %v2362 = vld [vmem:[%s1547 + $0xdc8] sm:$0xff]
        %v2363 = vld [vmem:[%s1547 + $0xdd0] sm:$0xff]
        %v2364 = vld [vmem:[%s1547 + $0xdd8] sm:$0xff]
        %v2365 = vld [vmem:[%s1547 + $0xde0] sm:$0xff]
        %v2366 = vld [vmem:[%s1547 + $0xde8] sm:$0xff]
        %v2367 = vld [vmem:[%s1547 + $0xdf0] sm:$0xff]
        %v2368 = vld [vmem:[%s1547 + $0xdf8] sm:$0xff]
        %v2369 = vld [vmem:[%s1547 + $0xe00] sm:$0xff]
        %v2370 = vld [vmem:[%s1547 + $0xe08] sm:$0xff]
        %v2371 = vld [vmem:[%s1547 + $0xe10] sm:$0xff]
        %v2372 = vld [vmem:[%s1547 + $0xe18] sm:$0xff]
        %v2373 = vld [vmem:[%s1547 + $0xe20] sm:$0xff]
        %v2374 = vld [vmem:[%s1547 + $0xe28] sm:$0xff]
        %v2375 = vld [vmem:[%s1547 + $0xe30] sm:$0xff]
        %v2376 = vld [vmem:[%s1547 + $0xe38] sm:$0xff]
        %v2377 = vld [vmem:[%s1547 + $0xe40] sm:$0xff]
        %v2378 = vld [vmem:[%s1547 + $0xe48] sm:$0xff]
        %v2379 = vld [vmem:[%s1547 + $0xe50] sm:$0xff]
        %v2380 = vld [vmem:[%s1547 + $0xe58] sm:$0xff]
        %v2381 = vld [vmem:[%s1547 + $0xe60] sm:$0xff]
        %v2382 = vld [vmem:[%s1547 + $0xe68] sm:$0xff]
        %v2383 = vld [vmem:[%s1547 + $0xe70] sm:$0xff]
        %v2384 = vld [vmem:[%s1547 + $0xe78] sm:$0xff]
        %v2385 = vld [vmem:[%s1547 + $0xe80] sm:$0xff]
        %v2386 = vld [vmem:[%s1547 + $0xe88] sm:$0xff]
        %v2387 = vld [vmem:[%s1547 + $0xe90] sm:$0xff]
        %v2388 = vld [vmem:[%s1547 + $0xe98] sm:$0xff]
        %v2389 = vld [vmem:[%s1547 + $0xea0] sm:$0xff]
        %v2390 = vld [vmem:[%s1547 + $0xea8] sm:$0xff]
        %v2391 = vld [vmem:[%s1547 + $0xeb0] sm:$0xff]
        %v2392 = vld [vmem:[%s1547 + $0xeb8] sm:$0xff]
        %v2393 = vld [vmem:[%s1547 + $0xec0] sm:$0xff]
        %v2394 = vld [vmem:[%s1547 + $0xec8] sm:$0xff]
        %v2395 = vld [vmem:[%s1547 + $0xed0] sm:$0xff]
        %v2396 = vld [vmem:[%s1547 + $0xed8] sm:$0xff]
        %v2397 = vld [vmem:[%s1547 + $0xee0] sm:$0xff]
        %v2398 = vld [vmem:[%s1547 + $0xee8] sm:$0xff]
        %v2399 = vld [vmem:[%s1547 + $0xef0] sm:$0xff]
        %v2400 = vld [vmem:[%s1547 + $0xef8] sm:$0xff]
        %v2401 = vld [vmem:[%s1547 + $0xf00] sm:$0xff]
        %v2402 = vld [vmem:[%s1547 + $0xf08] sm:$0xff]
        %v2403 = vld [vmem:[%s1547 + $0xf10] sm:$0xff]
        %v2404 = vld [vmem:[%s1547 + $0xf18] sm:$0xff]
        %v2405 = vld [vmem:[%s1547 + $0xf20] sm:$0xff]
        %v2406 = vld [vmem:[%s1547 + $0xf28] sm:$0xff]
        %v2407 = vld [vmem:[%s1547 + $0xf30] sm:$0xff]
        %v2408 = vld [vmem:[%s1547 + $0xf38] sm:$0xff]
        %v2409 = vld [vmem:[%s1547 + $0xf40] sm:$0xff]
        %v2410 = vld [vmem:[%s1547 + $0xf48] sm:$0xff]
        %v2411 = vld [vmem:[%s1547 + $0xf50] sm:$0xff]
        %v2412 = vld [vmem:[%s1547 + $0xf58] sm:$0xff]
        %v2413 = vld [vmem:[%s1547 + $0xf60] sm:$0xff]
        %v2414 = vld [vmem:[%s1547 + $0xf68] sm:$0xff]
        %v2415 = vld [vmem:[%s1547 + $0xf70] sm:$0xff]
        %v2416 = vld [vmem:[%s1547 + $0xf78] sm:$0xff]
        %v2417 = vld [vmem:[%s1547 + $0xf80] sm:$0xff]
        %v2418 = vld [vmem:[%s1547 + $0xf88] sm:$0xff]
        %v2419 = vld [vmem:[%s1547 + $0xf90] sm:$0xff]
        %v2420 = vld [vmem:[%s1547 + $0xf98] sm:$0xff]
        %v2421 = vld [vmem:[%s1547 + $0xfa0] sm:$0xff]
        %v2422 = vld [vmem:[%s1547 + $0xfa8] sm:$0xff]
        %v2423 = vld [vmem:[%s1547 + $0xfb0] sm:$0xff]
        %v2424 = vld [vmem:[%s1547 + $0xfb8] sm:$0xff]
        %v2425 = vld [vmem:[%s1547 + $0xfc0] sm:$0xff]
        %v2426 = vld [vmem:[%s1547 + $0xfc8] sm:$0xff]
        %v2427 = vld [vmem:[%s1547 + $0xfd0] sm:$0xff]
        %v2428 = vld [vmem:[%s1547 + $0xfd8] sm:$0xff]
        %v2429 = vld [vmem:[%s1547 + $0xfe0] sm:$0xff]
        %v2430 = vld [vmem:[%s1547 + $0xfe8] sm:$0xff]
        %v2431 = vld [vmem:[%s1547 + $0xff0] sm:$0xff]
        %v2432 = vld [vmem:[%s1547 + $0xff8] sm:$0xff]
        %v2433 = vadd.f32 %v1921, %v1922
        %v2434 = vadd.f32 %v2433, %v1923
        %vm2435 = vcmask 64512
        %v2436 = vsel %vm2435, %v1924, 0.0
        %v2437 = vadd.f32 %v2434, %v2436
        %2438 = vadd.xlane.f32.xlu0 %v2437
        %v2439 = vpop.xlane.xlu0 %2438
        %v2440 = vadd.f32 %v1925, %v1926
        %v2441 = vadd.f32 %v2440, %v1927
        %v2442 = vsel %vm2435, %v1928, 0.0
        %v2443 = vadd.f32 %v2441, %v2442
        %2444 = vadd.xlane.f32.xlu0 %v2443
        %v2445 = vpop.xlane.xlu0 %2444
        %v2446 = vadd.f32 %v1929, %v1930
        %v2447 = vadd.f32 %v2446, %v1931
        %v2448 = vsel %vm2435, %v1932, 0.0
        %v2449 = vadd.f32 %v2447, %v2448
        %2450 = vadd.xlane.f32.xlu0 %v2449
        %v2451 = vpop.xlane.xlu0 %2450
        %v2452 = vadd.f32 %v1933, %v1934
        %v2453 = vadd.f32 %v2452, %v1935
        %v2454 = vsel %vm2435, %v1936, 0.0
        %v2455 = vadd.f32 %v2453, %v2454
        %2456 = vadd.xlane.f32.xlu0 %v2455
        %v2457 = vpop.xlane.xlu0 %2456
        %v2458 = vadd.f32 %v1937, %v1938
        %v2459 = vadd.f32 %v2458, %v1939
        %v2460 = vsel %vm2435, %v1940, 0.0
        %v2461 = vadd.f32 %v2459, %v2460
        %2462 = vadd.xlane.f32.xlu0 %v2461
        %v2463 = vpop.xlane.xlu0 %2462
        %v2464 = vadd.f32 %v1941, %v1942
        %v2465 = vadd.f32 %v2464, %v1943
        %v2466 = vsel %vm2435, %v1944, 0.0
        %v2467 = vadd.f32 %v2465, %v2466
        %2468 = vadd.xlane.f32.xlu0 %v2467
        %v2469 = vpop.xlane.xlu0 %2468
        %v2470 = vadd.f32 %v1945, %v1946
        %v2471 = vadd.f32 %v2470, %v1947
        %v2472 = vsel %vm2435, %v1948, 0.0
        %v2473 = vadd.f32 %v2471, %v2472
        %2474 = vadd.xlane.f32.xlu0 %v2473
        %v2475 = vpop.xlane.xlu0 %2474
        %v2476 = vadd.f32 %v1949, %v1950
        %v2477 = vadd.f32 %v2476, %v1951
        %v2478 = vsel %vm2435, %v1952, 0.0
        %v2479 = vadd.f32 %v2477, %v2478
        %2480 = vadd.xlane.f32.xlu0 %v2479
        %v2481 = vpop.xlane.xlu0 %2480
        %v2482 = vadd.f32 %v1953, %v1954
        %v2483 = vadd.f32 %v2482, %v1955
        %v2484 = vsel %vm2435, %v1956, 0.0
        %v2485 = vadd.f32 %v2483, %v2484
        %2486 = vadd.xlane.f32.xlu0 %v2485
        %v2487 = vpop.xlane.xlu0 %2486
        %v2488 = vadd.f32 %v1957, %v1958
        %v2489 = vadd.f32 %v2488, %v1959
        %v2490 = vsel %vm2435, %v1960, 0.0
        %v2491 = vadd.f32 %v2489, %v2490
        %2492 = vadd.xlane.f32.xlu0 %v2491
        %v2493 = vpop.xlane.xlu0 %2492
        %v2494 = vadd.f32 %v1961, %v1962
        %v2495 = vadd.f32 %v2494, %v1963
        %v2496 = vsel %vm2435, %v1964, 0.0
        %v2497 = vadd.f32 %v2495, %v2496
        %2498 = vadd.xlane.f32.xlu0 %v2497
        %v2499 = vpop.xlane.xlu0 %2498
        %v2500 = vadd.f32 %v1965, %v1966
        %v2501 = vadd.f32 %v2500, %v1967
        %v2502 = vsel %vm2435, %v1968, 0.0
        %v2503 = vadd.f32 %v2501, %v2502
        %2504 = vadd.xlane.f32.xlu0 %v2503
        %v2505 = vpop.xlane.xlu0 %2504
        %v2506 = vadd.f32 %v1969, %v1970
        %v2507 = vadd.f32 %v2506, %v1971
        %v2508 = vsel %vm2435, %v1972, 0.0
        %v2509 = vadd.f32 %v2507, %v2508
        %2510 = vadd.xlane.f32.xlu0 %v2509
        %v2511 = vpop.xlane.xlu0 %2510
        %v2512 = vadd.f32 %v1973, %v1974
        %v2513 = vadd.f32 %v2512, %v1975
        %v2514 = vsel %vm2435, %v1976, 0.0
        %v2515 = vadd.f32 %v2513, %v2514
        %2516 = vadd.xlane.f32.xlu0 %v2515
        %v2517 = vpop.xlane.xlu0 %2516
        %v2518 = vadd.f32 %v1977, %v1978
        %v2519 = vadd.f32 %v2518, %v1979
        %v2520 = vsel %vm2435, %v1980, 0.0
        %v2521 = vadd.f32 %v2519, %v2520
        %2522 = vadd.xlane.f32.xlu0 %v2521
        %v2523 = vpop.xlane.xlu0 %2522
        %v2524 = vadd.f32 %v1981, %v1982
        %v2525 = vadd.f32 %v2524, %v1983
        %v2526 = vsel %vm2435, %v1984, 0.0
        %v2527 = vadd.f32 %v2525, %v2526
        %2528 = vadd.xlane.f32.xlu0 %v2527
        %v2529 = vpop.xlane.xlu0 %2528
        %v2530 = vadd.f32 %v1985, %v1986
        %v2531 = vadd.f32 %v2530, %v1987
        %v2532 = vsel %vm2435, %v1988, 0.0
        %v2533 = vadd.f32 %v2531, %v2532
        %2534 = vadd.xlane.f32.xlu0 %v2533
        %v2535 = vpop.xlane.xlu0 %2534
        %v2536 = vadd.f32 %v1989, %v1990
        %v2537 = vadd.f32 %v2536, %v1991
        %v2538 = vsel %vm2435, %v1992, 0.0
        %v2539 = vadd.f32 %v2537, %v2538
        %2540 = vadd.xlane.f32.xlu0 %v2539
        %v2541 = vpop.xlane.xlu0 %2540
        %v2542 = vadd.f32 %v1993, %v1994
        %v2543 = vadd.f32 %v2542, %v1995
        %v2544 = vsel %vm2435, %v1996, 0.0
        %v2545 = vadd.f32 %v2543, %v2544
        %2546 = vadd.xlane.f32.xlu0 %v2545
        %v2547 = vpop.xlane.xlu0 %2546
        %v2548 = vadd.f32 %v1997, %v1998
        %v2549 = vadd.f32 %v2548, %v1999
        %v2550 = vsel %vm2435, %v2000, 0.0
        %v2551 = vadd.f32 %v2549, %v2550
        %2552 = vadd.xlane.f32.xlu0 %v2551
        %v2553 = vpop.xlane.xlu0 %2552
        %v2554 = vadd.f32 %v2001, %v2002
        %v2555 = vadd.f32 %v2554, %v2003
        %v2556 = vsel %vm2435, %v2004, 0.0
        %v2557 = vadd.f32 %v2555, %v2556
        %2558 = vadd.xlane.f32.xlu0 %v2557
        %v2559 = vpop.xlane.xlu0 %2558
        %v2560 = vadd.f32 %v2005, %v2006
        %v2561 = vadd.f32 %v2560, %v2007
        %v2562 = vsel %vm2435, %v2008, 0.0
        %v2563 = vadd.f32 %v2561, %v2562
        %2564 = vadd.xlane.f32.xlu0 %v2563
        %v2565 = vpop.xlane.xlu0 %2564
        %v2566 = vadd.f32 %v2009, %v2010
        %v2567 = vadd.f32 %v2566, %v2011
        %v2568 = vsel %vm2435, %v2012, 0.0
        %v2569 = vadd.f32 %v2567, %v2568
        %2570 = vadd.xlane.f32.xlu0 %v2569
        %v2571 = vpop.xlane.xlu0 %2570
        %v2572 = vadd.f32 %v2013, %v2014
        %v2573 = vadd.f32 %v2572, %v2015
        %v2574 = vsel %vm2435, %v2016, 0.0
        %v2575 = vadd.f32 %v2573, %v2574
        %2576 = vadd.xlane.f32.xlu0 %v2575
        %v2577 = vpop.xlane.xlu0 %2576
        %v2578 = vadd.f32 %v2017, %v2018
        %v2579 = vadd.f32 %v2578, %v2019
        %v2580 = vsel %vm2435, %v2020, 0.0
        %v2581 = vadd.f32 %v2579, %v2580
        %2582 = vadd.xlane.f32.xlu0 %v2581
        %v2583 = vpop.xlane.xlu0 %2582
        %v2584 = vadd.f32 %v2021, %v2022
        %v2585 = vadd.f32 %v2584, %v2023
        %v2586 = vsel %vm2435, %v2024, 0.0
        %v2587 = vadd.f32 %v2585, %v2586
        %2588 = vadd.xlane.f32.xlu0 %v2587
        %v2589 = vpop.xlane.xlu0 %2588
        %v2590 = vadd.f32 %v2025, %v2026
        %v2591 = vadd.f32 %v2590, %v2027
        %v2592 = vsel %vm2435, %v2028, 0.0
        %v2593 = vadd.f32 %v2591, %v2592
        %2594 = vadd.xlane.f32.xlu0 %v2593
        %v2595 = vpop.xlane.xlu0 %2594
        %v2596 = vadd.f32 %v2029, %v2030
        %v2597 = vadd.f32 %v2596, %v2031
        %v2598 = vsel %vm2435, %v2032, 0.0
        %v2599 = vadd.f32 %v2597, %v2598
        %2600 = vadd.xlane.f32.xlu0 %v2599
        %v2601 = vpop.xlane.xlu0 %2600
        %v2602 = vadd.f32 %v2033, %v2034
        %v2603 = vadd.f32 %v2602, %v2035
        %v2604 = vsel %vm2435, %v2036, 0.0
        %v2605 = vadd.f32 %v2603, %v2604
        %2606 = vadd.xlane.f32.xlu0 %v2605
        %v2607 = vpop.xlane.xlu0 %2606
        %v2608 = vadd.f32 %v2037, %v2038
        %v2609 = vadd.f32 %v2608, %v2039
        %v2610 = vsel %vm2435, %v2040, 0.0
        %v2611 = vadd.f32 %v2609, %v2610
        %2612 = vadd.xlane.f32.xlu0 %v2611
        %v2613 = vpop.xlane.xlu0 %2612
        %v2614 = vadd.f32 %v2041, %v2042
        %v2615 = vadd.f32 %v2614, %v2043
        %v2616 = vsel %vm2435, %v2044, 0.0
        %v2617 = vadd.f32 %v2615, %v2616
        %2618 = vadd.xlane.f32.xlu0 %v2617
        %v2619 = vpop.xlane.xlu0 %2618
        %v2620 = vadd.f32 %v2045, %v2046
        %v2621 = vadd.f32 %v2620, %v2047
        %v2622 = vsel %vm2435, %v2048, 0.0
        %v2623 = vadd.f32 %v2621, %v2622
        %2624 = vadd.xlane.f32.xlu0 %v2623
        %v2625 = vpop.xlane.xlu0 %2624
        %v2626 = vadd.f32 %v2049, %v2050
        %v2627 = vadd.f32 %v2626, %v2051
        %v2628 = vsel %vm2435, %v2052, 0.0
        %v2629 = vadd.f32 %v2627, %v2628
        %2630 = vadd.xlane.f32.xlu0 %v2629
        %v2631 = vpop.xlane.xlu0 %2630
        %v2632 = vadd.f32 %v2053, %v2054
        %v2633 = vadd.f32 %v2632, %v2055
        %v2634 = vsel %vm2435, %v2056, 0.0
        %v2635 = vadd.f32 %v2633, %v2634
        %2636 = vadd.xlane.f32.xlu0 %v2635
        %v2637 = vpop.xlane.xlu0 %2636
        %v2638 = vadd.f32 %v2057, %v2058
        %v2639 = vadd.f32 %v2638, %v2059
        %v2640 = vsel %vm2435, %v2060, 0.0
        %v2641 = vadd.f32 %v2639, %v2640
        %2642 = vadd.xlane.f32.xlu0 %v2641
        %v2643 = vpop.xlane.xlu0 %2642
        %v2644 = vadd.f32 %v2061, %v2062
        %v2645 = vadd.f32 %v2644, %v2063
        %v2646 = vsel %vm2435, %v2064, 0.0
        %v2647 = vadd.f32 %v2645, %v2646
        %2648 = vadd.xlane.f32.xlu0 %v2647
        %v2649 = vpop.xlane.xlu0 %2648
        %v2650 = vadd.f32 %v2065, %v2066
        %v2651 = vadd.f32 %v2650, %v2067
        %v2652 = vsel %vm2435, %v2068, 0.0
        %v2653 = vadd.f32 %v2651, %v2652
        %2654 = vadd.xlane.f32.xlu0 %v2653
        %v2655 = vpop.xlane.xlu0 %2654
        %v2656 = vadd.f32 %v2069, %v2070
        %v2657 = vadd.f32 %v2656, %v2071
        %v2658 = vsel %vm2435, %v2072, 0.0
        %v2659 = vadd.f32 %v2657, %v2658
        %2660 = vadd.xlane.f32.xlu0 %v2659
        %v2661 = vpop.xlane.xlu0 %2660
        %v2662 = vadd.f32 %v2073, %v2074
        %v2663 = vadd.f32 %v2662, %v2075
        %v2664 = vsel %vm2435, %v2076, 0.0
        %v2665 = vadd.f32 %v2663, %v2664
        %2666 = vadd.xlane.f32.xlu0 %v2665
        %v2667 = vpop.xlane.xlu0 %2666
        %v2668 = vadd.f32 %v2077, %v2078
        %v2669 = vadd.f32 %v2668, %v2079
        %v2670 = vsel %vm2435, %v2080, 0.0
        %v2671 = vadd.f32 %v2669, %v2670
        %2672 = vadd.xlane.f32.xlu0 %v2671
        %v2673 = vpop.xlane.xlu0 %2672
        %v2674 = vadd.f32 %v2081, %v2082
        %v2675 = vadd.f32 %v2674, %v2083
        %v2676 = vsel %vm2435, %v2084, 0.0
        %v2677 = vadd.f32 %v2675, %v2676
        %2678 = vadd.xlane.f32.xlu0 %v2677
        %v2679 = vpop.xlane.xlu0 %2678
        %v2680 = vadd.f32 %v2085, %v2086
        %v2681 = vadd.f32 %v2680, %v2087
        %v2682 = vsel %vm2435, %v2088, 0.0
        %v2683 = vadd.f32 %v2681, %v2682
        %2684 = vadd.xlane.f32.xlu0 %v2683
        %v2685 = vpop.xlane.xlu0 %2684
        %v2686 = vadd.f32 %v2089, %v2090
        %v2687 = vadd.f32 %v2686, %v2091
        %v2688 = vsel %vm2435, %v2092, 0.0
        %v2689 = vadd.f32 %v2687, %v2688
        %2690 = vadd.xlane.f32.xlu0 %v2689
        %v2691 = vpop.xlane.xlu0 %2690
        %v2692 = vadd.f32 %v2093, %v2094
        %v2693 = vadd.f32 %v2692, %v2095
        %v2694 = vsel %vm2435, %v2096, 0.0
        %v2695 = vadd.f32 %v2693, %v2694
        %2696 = vadd.xlane.f32.xlu0 %v2695
        %v2697 = vpop.xlane.xlu0 %2696
        %v2698 = vadd.f32 %v2097, %v2098
        %v2699 = vadd.f32 %v2698, %v2099
        %v2700 = vsel %vm2435, %v2100, 0.0
        %v2701 = vadd.f32 %v2699, %v2700
        %2702 = vadd.xlane.f32.xlu0 %v2701
        %v2703 = vpop.xlane.xlu0 %2702
        %v2704 = vadd.f32 %v2101, %v2102
        %v2705 = vadd.f32 %v2704, %v2103
        %v2706 = vsel %vm2435, %v2104, 0.0
        %v2707 = vadd.f32 %v2705, %v2706
        %2708 = vadd.xlane.f32.xlu0 %v2707
        %v2709 = vpop.xlane.xlu0 %2708
        %v2710 = vadd.f32 %v2105, %v2106
        %v2711 = vadd.f32 %v2710, %v2107
        %v2712 = vsel %vm2435, %v2108, 0.0
        %v2713 = vadd.f32 %v2711, %v2712
        %2714 = vadd.xlane.f32.xlu0 %v2713
        %v2715 = vpop.xlane.xlu0 %2714
        %v2716 = vadd.f32 %v2109, %v2110
        %v2717 = vadd.f32 %v2716, %v2111
        %v2718 = vsel %vm2435, %v2112, 0.0
        %v2719 = vadd.f32 %v2717, %v2718
        %2720 = vadd.xlane.f32.xlu0 %v2719
        %v2721 = vpop.xlane.xlu0 %2720
        %v2722 = vadd.f32 %v2113, %v2114
        %v2723 = vadd.f32 %v2722, %v2115
        %v2724 = vsel %vm2435, %v2116, 0.0
        %v2725 = vadd.f32 %v2723, %v2724
        %2726 = vadd.xlane.f32.xlu0 %v2725
        %v2727 = vpop.xlane.xlu0 %2726
        %v2728 = vadd.f32 %v2117, %v2118
        %v2729 = vadd.f32 %v2728, %v2119
        %v2730 = vsel %vm2435, %v2120, 0.0
        %v2731 = vadd.f32 %v2729, %v2730
        %2732 = vadd.xlane.f32.xlu0 %v2731
        %v2733 = vpop.xlane.xlu0 %2732
        %v2734 = vadd.f32 %v2121, %v2122
        %v2735 = vadd.f32 %v2734, %v2123
        %v2736 = vsel %vm2435, %v2124, 0.0
        %v2737 = vadd.f32 %v2735, %v2736
        %2738 = vadd.xlane.f32.xlu0 %v2737
        %v2739 = vpop.xlane.xlu0 %2738
        %v2740 = vadd.f32 %v2125, %v2126
        %v2741 = vadd.f32 %v2740, %v2127
        %v2742 = vsel %vm2435, %v2128, 0.0
        %v2743 = vadd.f32 %v2741, %v2742
        %2744 = vadd.xlane.f32.xlu0 %v2743
        %v2745 = vpop.xlane.xlu0 %2744
        %v2746 = vadd.f32 %v2129, %v2130
        %v2747 = vadd.f32 %v2746, %v2131
        %v2748 = vsel %vm2435, %v2132, 0.0
        %v2749 = vadd.f32 %v2747, %v2748
        %2750 = vadd.xlane.f32.xlu0 %v2749
        %v2751 = vpop.xlane.xlu0 %2750
        %v2752 = vadd.f32 %v2133, %v2134
        %v2753 = vadd.f32 %v2752, %v2135
        %v2754 = vsel %vm2435, %v2136, 0.0
        %v2755 = vadd.f32 %v2753, %v2754
        %2756 = vadd.xlane.f32.xlu0 %v2755
        %v2757 = vpop.xlane.xlu0 %2756
        %v2758 = vadd.f32 %v2137, %v2138
        %v2759 = vadd.f32 %v2758, %v2139
        %v2760 = vsel %vm2435, %v2140, 0.0
        %v2761 = vadd.f32 %v2759, %v2760
        %2762 = vadd.xlane.f32.xlu0 %v2761
        %v2763 = vpop.xlane.xlu0 %2762
        %v2764 = vadd.f32 %v2141, %v2142
        %v2765 = vadd.f32 %v2764, %v2143
        %v2766 = vsel %vm2435, %v2144, 0.0
        %v2767 = vadd.f32 %v2765, %v2766
        %2768 = vadd.xlane.f32.xlu0 %v2767
        %v2769 = vpop.xlane.xlu0 %2768
        %v2770 = vadd.f32 %v2145, %v2146
        %v2771 = vadd.f32 %v2770, %v2147
        %v2772 = vsel %vm2435, %v2148, 0.0
        %v2773 = vadd.f32 %v2771, %v2772
        %2774 = vadd.xlane.f32.xlu0 %v2773
        %v2775 = vpop.xlane.xlu0 %2774
        %v2776 = vadd.f32 %v2149, %v2150
        %v2777 = vadd.f32 %v2776, %v2151
        %v2778 = vsel %vm2435, %v2152, 0.0
        %v2779 = vadd.f32 %v2777, %v2778
        %2780 = vadd.xlane.f32.xlu0 %v2779
        %v2781 = vpop.xlane.xlu0 %2780
        %v2782 = vadd.f32 %v2153, %v2154
        %v2783 = vadd.f32 %v2782, %v2155
        %v2784 = vsel %vm2435, %v2156, 0.0
        %v2785 = vadd.f32 %v2783, %v2784
        %2786 = vadd.xlane.f32.xlu0 %v2785
        %v2787 = vpop.xlane.xlu0 %2786
        %v2788 = vadd.f32 %v2157, %v2158
        %v2789 = vadd.f32 %v2788, %v2159
        %v2790 = vsel %vm2435, %v2160, 0.0
        %v2791 = vadd.f32 %v2789, %v2790
        %2792 = vadd.xlane.f32.xlu0 %v2791
        %v2793 = vpop.xlane.xlu0 %2792
        %v2794 = vadd.f32 %v2161, %v2162
        %v2795 = vadd.f32 %v2794, %v2163
        %v2796 = vsel %vm2435, %v2164, 0.0
        %v2797 = vadd.f32 %v2795, %v2796
        %2798 = vadd.xlane.f32.xlu0 %v2797
        %v2799 = vpop.xlane.xlu0 %2798
        %v2800 = vadd.f32 %v2165, %v2166
        %v2801 = vadd.f32 %v2800, %v2167
        %v2802 = vsel %vm2435, %v2168, 0.0
        %v2803 = vadd.f32 %v2801, %v2802
        %2804 = vadd.xlane.f32.xlu0 %v2803
        %v2805 = vpop.xlane.xlu0 %2804
        %v2806 = vadd.f32 %v2169, %v2170
        %v2807 = vadd.f32 %v2806, %v2171
        %v2808 = vsel %vm2435, %v2172, 0.0
        %v2809 = vadd.f32 %v2807, %v2808
        %2810 = vadd.xlane.f32.xlu0 %v2809
        %v2811 = vpop.xlane.xlu0 %2810
        %v2812 = vadd.f32 %v2173, %v2174
        %v2813 = vadd.f32 %v2812, %v2175
        %v2814 = vsel %vm2435, %v2176, 0.0
        %v2815 = vadd.f32 %v2813, %v2814
        %2816 = vadd.xlane.f32.xlu0 %v2815
        %v2817 = vpop.xlane.xlu0 %2816
        %v2818 = vadd.f32 %v2177, %v2178
        %v2819 = vadd.f32 %v2818, %v2179
        %v2820 = vsel %vm2435, %v2180, 0.0
        %v2821 = vadd.f32 %v2819, %v2820
        %2822 = vadd.xlane.f32.xlu0 %v2821
        %v2823 = vpop.xlane.xlu0 %2822
        %v2824 = vadd.f32 %v2181, %v2182
        %v2825 = vadd.f32 %v2824, %v2183
        %v2826 = vsel %vm2435, %v2184, 0.0
        %v2827 = vadd.f32 %v2825, %v2826
        %2828 = vadd.xlane.f32.xlu0 %v2827
        %v2829 = vpop.xlane.xlu0 %2828
        %v2830 = vadd.f32 %v2185, %v2186
        %v2831 = vadd.f32 %v2830, %v2187
        %v2832 = vsel %vm2435, %v2188, 0.0
        %v2833 = vadd.f32 %v2831, %v2832
        %2834 = vadd.xlane.f32.xlu0 %v2833
        %v2835 = vpop.xlane.xlu0 %2834
        %v2836 = vadd.f32 %v2189, %v2190
        %v2837 = vadd.f32 %v2836, %v2191
        %v2838 = vsel %vm2435, %v2192, 0.0
        %v2839 = vadd.f32 %v2837, %v2838
        %2840 = vadd.xlane.f32.xlu0 %v2839
        %v2841 = vpop.xlane.xlu0 %2840
        %v2842 = vadd.f32 %v2193, %v2194
        %v2843 = vadd.f32 %v2842, %v2195
        %v2844 = vsel %vm2435, %v2196, 0.0
        %v2845 = vadd.f32 %v2843, %v2844
        %2846 = vadd.xlane.f32.xlu0 %v2845
        %v2847 = vpop.xlane.xlu0 %2846
        %v2848 = vadd.f32 %v2197, %v2198
        %v2849 = vadd.f32 %v2848, %v2199
        %v2850 = vsel %vm2435, %v2200, 0.0
        %v2851 = vadd.f32 %v2849, %v2850
        %2852 = vadd.xlane.f32.xlu0 %v2851
        %v2853 = vpop.xlane.xlu0 %2852
        %v2854 = vadd.f32 %v2201, %v2202
        %v2855 = vadd.f32 %v2854, %v2203
        %v2856 = vsel %vm2435, %v2204, 0.0
        %v2857 = vadd.f32 %v2855, %v2856
        %2858 = vadd.xlane.f32.xlu0 %v2857
        %v2859 = vpop.xlane.xlu0 %2858
        %v2860 = vadd.f32 %v2205, %v2206
        %v2861 = vadd.f32 %v2860, %v2207
        %v2862 = vsel %vm2435, %v2208, 0.0
        %v2863 = vadd.f32 %v2861, %v2862
        %2864 = vadd.xlane.f32.xlu0 %v2863
        %v2865 = vpop.xlane.xlu0 %2864
        %v2866 = vadd.f32 %v2209, %v2210
        %v2867 = vadd.f32 %v2866, %v2211
        %v2868 = vsel %vm2435, %v2212, 0.0
        %v2869 = vadd.f32 %v2867, %v2868
        %2870 = vadd.xlane.f32.xlu0 %v2869
        %v2871 = vpop.xlane.xlu0 %2870
        %v2872 = vadd.f32 %v2213, %v2214
        %v2873 = vadd.f32 %v2872, %v2215
        %v2874 = vsel %vm2435, %v2216, 0.0
        %v2875 = vadd.f32 %v2873, %v2874
        %2876 = vadd.xlane.f32.xlu0 %v2875
        %v2877 = vpop.xlane.xlu0 %2876
        %v2878 = vadd.f32 %v2217, %v2218
        %v2879 = vadd.f32 %v2878, %v2219
        %v2880 = vsel %vm2435, %v2220, 0.0
        %v2881 = vadd.f32 %v2879, %v2880
        %2882 = vadd.xlane.f32.xlu0 %v2881
        %v2883 = vpop.xlane.xlu0 %2882
        %v2884 = vadd.f32 %v2221, %v2222
        %v2885 = vadd.f32 %v2884, %v2223
        %v2886 = vsel %vm2435, %v2224, 0.0
        %v2887 = vadd.f32 %v2885, %v2886
        %2888 = vadd.xlane.f32.xlu0 %v2887
        %v2889 = vpop.xlane.xlu0 %2888
        %v2890 = vadd.f32 %v2225, %v2226
        %v2891 = vadd.f32 %v2890, %v2227
        %v2892 = vsel %vm2435, %v2228, 0.0
        %v2893 = vadd.f32 %v2891, %v2892
        %2894 = vadd.xlane.f32.xlu0 %v2893
        %v2895 = vpop.xlane.xlu0 %2894
        %v2896 = vadd.f32 %v2229, %v2230
        %v2897 = vadd.f32 %v2896, %v2231
        %v2898 = vsel %vm2435, %v2232, 0.0
        %v2899 = vadd.f32 %v2897, %v2898
        %2900 = vadd.xlane.f32.xlu0 %v2899
        %v2901 = vpop.xlane.xlu0 %2900
        %v2902 = vadd.f32 %v2233, %v2234
        %v2903 = vadd.f32 %v2902, %v2235
        %v2904 = vsel %vm2435, %v2236, 0.0
        %v2905 = vadd.f32 %v2903, %v2904
        %2906 = vadd.xlane.f32.xlu0 %v2905
        %v2907 = vpop.xlane.xlu0 %2906
        %v2908 = vadd.f32 %v2237, %v2238
        %v2909 = vadd.f32 %v2908, %v2239
        %v2910 = vsel %vm2435, %v2240, 0.0
        %v2911 = vadd.f32 %v2909, %v2910
        %2912 = vadd.xlane.f32.xlu0 %v2911
        %v2913 = vpop.xlane.xlu0 %2912
        %v2914 = vadd.f32 %v2241, %v2242
        %v2915 = vadd.f32 %v2914, %v2243
        %v2916 = vsel %vm2435, %v2244, 0.0
        %v2917 = vadd.f32 %v2915, %v2916
        %2918 = vadd.xlane.f32.xlu0 %v2917
        %v2919 = vpop.xlane.xlu0 %2918
        %v2920 = vadd.f32 %v2245, %v2246
        %v2921 = vadd.f32 %v2920, %v2247
        %v2922 = vsel %vm2435, %v2248, 0.0
        %v2923 = vadd.f32 %v2921, %v2922
        %2924 = vadd.xlane.f32.xlu0 %v2923
        %v2925 = vpop.xlane.xlu0 %2924
        %v2926 = vadd.f32 %v2249, %v2250
        %v2927 = vadd.f32 %v2926, %v2251
        %v2928 = vsel %vm2435, %v2252, 0.0
        %v2929 = vadd.f32 %v2927, %v2928
        %2930 = vadd.xlane.f32.xlu0 %v2929
        %v2931 = vpop.xlane.xlu0 %2930
        %v2932 = vadd.f32 %v2253, %v2254
        %v2933 = vadd.f32 %v2932, %v2255
        %v2934 = vsel %vm2435, %v2256, 0.0
        %v2935 = vadd.f32 %v2933, %v2934
        %2936 = vadd.xlane.f32.xlu0 %v2935
        %v2937 = vpop.xlane.xlu0 %2936
        %v2938 = vadd.f32 %v2257, %v2258
        %v2939 = vadd.f32 %v2938, %v2259
        %v2940 = vsel %vm2435, %v2260, 0.0
        %v2941 = vadd.f32 %v2939, %v2940
        %2942 = vadd.xlane.f32.xlu0 %v2941
        %v2943 = vpop.xlane.xlu0 %2942
        %v2944 = vadd.f32 %v2261, %v2262
        %v2945 = vadd.f32 %v2944, %v2263
        %v2946 = vsel %vm2435, %v2264, 0.0
        %v2947 = vadd.f32 %v2945, %v2946
        %2948 = vadd.xlane.f32.xlu0 %v2947
        %v2949 = vpop.xlane.xlu0 %2948
        %v2950 = vadd.f32 %v2265, %v2266
        %v2951 = vadd.f32 %v2950, %v2267
        %v2952 = vsel %vm2435, %v2268, 0.0
        %v2953 = vadd.f32 %v2951, %v2952
        %2954 = vadd.xlane.f32.xlu0 %v2953
        %v2955 = vpop.xlane.xlu0 %2954
        %v2956 = vadd.f32 %v2269, %v2270
        %v2957 = vadd.f32 %v2956, %v2271
        %v2958 = vsel %vm2435, %v2272, 0.0
        %v2959 = vadd.f32 %v2957, %v2958
        %2960 = vadd.xlane.f32.xlu0 %v2959
        %v2961 = vpop.xlane.xlu0 %2960
        %v2962 = vadd.f32 %v2273, %v2274
        %v2963 = vadd.f32 %v2962, %v2275
        %v2964 = vsel %vm2435, %v2276, 0.0
        %v2965 = vadd.f32 %v2963, %v2964
        %2966 = vadd.xlane.f32.xlu0 %v2965
        %v2967 = vpop.xlane.xlu0 %2966
        %v2968 = vadd.f32 %v2277, %v2278
        %v2969 = vadd.f32 %v2968, %v2279
        %v2970 = vsel %vm2435, %v2280, 0.0
        %v2971 = vadd.f32 %v2969, %v2970
        %2972 = vadd.xlane.f32.xlu0 %v2971
        %v2973 = vpop.xlane.xlu0 %2972
        %v2974 = vadd.f32 %v2281, %v2282
        %v2975 = vadd.f32 %v2974, %v2283
        %v2976 = vsel %vm2435, %v2284, 0.0
        %v2977 = vadd.f32 %v2975, %v2976
        %2978 = vadd.xlane.f32.xlu0 %v2977
        %v2979 = vpop.xlane.xlu0 %2978
        %v2980 = vadd.f32 %v2285, %v2286
        %v2981 = vadd.f32 %v2980, %v2287
        %v2982 = vsel %vm2435, %v2288, 0.0
        %v2983 = vadd.f32 %v2981, %v2982
        %2984 = vadd.xlane.f32.xlu0 %v2983
        %v2985 = vpop.xlane.xlu0 %2984
        %v2986 = vadd.f32 %v2289, %v2290
        %v2987 = vadd.f32 %v2986, %v2291
        %v2988 = vsel %vm2435, %v2292, 0.0
        %v2989 = vadd.f32 %v2987, %v2988
        %2990 = vadd.xlane.f32.xlu0 %v2989
        %v2991 = vpop.xlane.xlu0 %2990
        %v2992 = vadd.f32 %v2293, %v2294
        %v2993 = vadd.f32 %v2992, %v2295
        %v2994 = vsel %vm2435, %v2296, 0.0
        %v2995 = vadd.f32 %v2993, %v2994
        %2996 = vadd.xlane.f32.xlu0 %v2995
        %v2997 = vpop.xlane.xlu0 %2996
        %v2998 = vadd.f32 %v2297, %v2298
        %v2999 = vadd.f32 %v2998, %v2299
        %v3000 = vsel %vm2435, %v2300, 0.0
        %v3001 = vadd.f32 %v2999, %v3000
        %3002 = vadd.xlane.f32.xlu0 %v3001
        %v3003 = vpop.xlane.xlu0 %3002
        %v3004 = vadd.f32 %v2301, %v2302
        %v3005 = vadd.f32 %v3004, %v2303
        %v3006 = vsel %vm2435, %v2304, 0.0
        %v3007 = vadd.f32 %v3005, %v3006
        %3008 = vadd.xlane.f32.xlu0 %v3007
        %v3009 = vpop.xlane.xlu0 %3008
        %v3010 = vadd.f32 %v2305, %v2306
        %v3011 = vadd.f32 %v3010, %v2307
        %v3012 = vsel %vm2435, %v2308, 0.0
        %v3013 = vadd.f32 %v3011, %v3012
        %3014 = vadd.xlane.f32.xlu0 %v3013
        %v3015 = vpop.xlane.xlu0 %3014
        %v3016 = vadd.f32 %v2309, %v2310
        %v3017 = vadd.f32 %v3016, %v2311
        %v3018 = vsel %vm2435, %v2312, 0.0
        %v3019 = vadd.f32 %v3017, %v3018
        %3020 = vadd.xlane.f32.xlu0 %v3019
        %v3021 = vpop.xlane.xlu0 %3020
        %v3022 = vadd.f32 %v2313, %v2314
        %v3023 = vadd.f32 %v3022, %v2315
        %v3024 = vsel %vm2435, %v2316, 0.0
        %v3025 = vadd.f32 %v3023, %v3024
        %3026 = vadd.xlane.f32.xlu0 %v3025
        %v3027 = vpop.xlane.xlu0 %3026
        %v3028 = vadd.f32 %v2317, %v2318
        %v3029 = vadd.f32 %v3028, %v2319
        %v3030 = vsel %vm2435, %v2320, 0.0
        %v3031 = vadd.f32 %v3029, %v3030
        %3032 = vadd.xlane.f32.xlu0 %v3031
        %v3033 = vpop.xlane.xlu0 %3032
        %v3034 = vadd.f32 %v2321, %v2322
        %v3035 = vadd.f32 %v3034, %v2323
        %v3036 = vsel %vm2435, %v2324, 0.0
        %v3037 = vadd.f32 %v3035, %v3036
        %3038 = vadd.xlane.f32.xlu0 %v3037
        %v3039 = vpop.xlane.xlu0 %3038
        %v3040 = vadd.f32 %v2325, %v2326
        %v3041 = vadd.f32 %v3040, %v2327
        %v3042 = vsel %vm2435, %v2328, 0.0
        %v3043 = vadd.f32 %v3041, %v3042
        %3044 = vadd.xlane.f32.xlu0 %v3043
        %v3045 = vpop.xlane.xlu0 %3044
        %v3046 = vadd.f32 %v2329, %v2330
        %v3047 = vadd.f32 %v3046, %v2331
        %v3048 = vsel %vm2435, %v2332, 0.0
        %v3049 = vadd.f32 %v3047, %v3048
        %3050 = vadd.xlane.f32.xlu0 %v3049
        %v3051 = vpop.xlane.xlu0 %3050
        %v3052 = vadd.f32 %v2333, %v2334
        %v3053 = vadd.f32 %v3052, %v2335
        %v3054 = vsel %vm2435, %v2336, 0.0
        %v3055 = vadd.f32 %v3053, %v3054
        %3056 = vadd.xlane.f32.xlu0 %v3055
        %v3057 = vpop.xlane.xlu0 %3056
        %v3058 = vadd.f32 %v2337, %v2338
        %v3059 = vadd.f32 %v3058, %v2339
        %v3060 = vsel %vm2435, %v2340, 0.0
        %v3061 = vadd.f32 %v3059, %v3060
        %3062 = vadd.xlane.f32.xlu0 %v3061
        %v3063 = vpop.xlane.xlu0 %3062
        %v3064 = vadd.f32 %v2341, %v2342
        %v3065 = vadd.f32 %v3064, %v2343
        %v3066 = vsel %vm2435, %v2344, 0.0
        %v3067 = vadd.f32 %v3065, %v3066
        %3068 = vadd.xlane.f32.xlu0 %v3067
        %v3069 = vpop.xlane.xlu0 %3068
        %v3070 = vadd.f32 %v2345, %v2346
        %v3071 = vadd.f32 %v3070, %v2347
        %v3072 = vsel %vm2435, %v2348, 0.0
        %v3073 = vadd.f32 %v3071, %v3072
        %3074 = vadd.xlane.f32.xlu0 %v3073
        %v3075 = vpop.xlane.xlu0 %3074
        %v3076 = vadd.f32 %v2349, %v2350
        %v3077 = vadd.f32 %v3076, %v2351
        %v3078 = vsel %vm2435, %v2352, 0.0
        %v3079 = vadd.f32 %v3077, %v3078
        %3080 = vadd.xlane.f32.xlu0 %v3079
        %v3081 = vpop.xlane.xlu0 %3080
        %v3082 = vadd.f32 %v2353, %v2354
        %v3083 = vadd.f32 %v3082, %v2355
        %v3084 = vsel %vm2435, %v2356, 0.0
        %v3085 = vadd.f32 %v3083, %v3084
        %3086 = vadd.xlane.f32.xlu0 %v3085
        %v3087 = vpop.xlane.xlu0 %3086
        %v3088 = vadd.f32 %v2357, %v2358
        %v3089 = vadd.f32 %v3088, %v2359
        %v3090 = vsel %vm2435, %v2360, 0.0
        %v3091 = vadd.f32 %v3089, %v3090
        %3092 = vadd.xlane.f32.xlu0 %v3091
        %v3093 = vpop.xlane.xlu0 %3092
        %v3094 = vadd.f32 %v2361, %v2362
        %v3095 = vadd.f32 %v3094, %v2363
        %v3096 = vsel %vm2435, %v2364, 0.0
        %v3097 = vadd.f32 %v3095, %v3096
        %3098 = vadd.xlane.f32.xlu0 %v3097
        %v3099 = vpop.xlane.xlu0 %3098
        %v3100 = vadd.f32 %v2365, %v2366
        %v3101 = vadd.f32 %v3100, %v2367
        %v3102 = vsel %vm2435, %v2368, 0.0
        %v3103 = vadd.f32 %v3101, %v3102
        %3104 = vadd.xlane.f32.xlu0 %v3103
        %v3105 = vpop.xlane.xlu0 %3104
        %v3106 = vadd.f32 %v2369, %v2370
        %v3107 = vadd.f32 %v3106, %v2371
        %v3108 = vsel %vm2435, %v2372, 0.0
        %v3109 = vadd.f32 %v3107, %v3108
        %3110 = vadd.xlane.f32.xlu0 %v3109
        %v3111 = vpop.xlane.xlu0 %3110
        %v3112 = vadd.f32 %v2373, %v2374
        %v3113 = vadd.f32 %v3112, %v2375
        %v3114 = vsel %vm2435, %v2376, 0.0
        %v3115 = vadd.f32 %v3113, %v3114
        %3116 = vadd.xlane.f32.xlu0 %v3115
        %v3117 = vpop.xlane.xlu0 %3116
        %v3118 = vadd.f32 %v2377, %v2378
        %v3119 = vadd.f32 %v3118, %v2379
        %v3120 = vsel %vm2435, %v2380, 0.0
        %v3121 = vadd.f32 %v3119, %v3120
        %3122 = vadd.xlane.f32.xlu0 %v3121
        %v3123 = vpop.xlane.xlu0 %3122
        %v3124 = vadd.f32 %v2381, %v2382
        %v3125 = vadd.f32 %v3124, %v2383
        %v3126 = vsel %vm2435, %v2384, 0.0
        %v3127 = vadd.f32 %v3125, %v3126
        %3128 = vadd.xlane.f32.xlu0 %v3127
        %v3129 = vpop.xlane.xlu0 %3128
        %v3130 = vadd.f32 %v2385, %v2386
        %v3131 = vadd.f32 %v3130, %v2387
        %v3132 = vsel %vm2435, %v2388, 0.0
        %v3133 = vadd.f32 %v3131, %v3132
        %3134 = vadd.xlane.f32.xlu0 %v3133
        %v3135 = vpop.xlane.xlu0 %3134
        %v3136 = vadd.f32 %v2389, %v2390
        %v3137 = vadd.f32 %v3136, %v2391
        %v3138 = vsel %vm2435, %v2392, 0.0
        %v3139 = vadd.f32 %v3137, %v3138
        %3140 = vadd.xlane.f32.xlu0 %v3139
        %v3141 = vpop.xlane.xlu0 %3140
        %v3142 = vadd.f32 %v2393, %v2394
        %v3143 = vadd.f32 %v3142, %v2395
        %v3144 = vsel %vm2435, %v2396, 0.0
        %v3145 = vadd.f32 %v3143, %v3144
        %3146 = vadd.xlane.f32.xlu0 %v3145
        %v3147 = vpop.xlane.xlu0 %3146
        %v3148 = vadd.f32 %v2397, %v2398
        %v3149 = vadd.f32 %v3148, %v2399
        %v3150 = vsel %vm2435, %v2400, 0.0
        %v3151 = vadd.f32 %v3149, %v3150
        %3152 = vadd.xlane.f32.xlu0 %v3151
        %v3153 = vpop.xlane.xlu0 %3152
        %v3154 = vadd.f32 %v2401, %v2402
        %v3155 = vadd.f32 %v3154, %v2403
        %v3156 = vsel %vm2435, %v2404, 0.0
        %v3157 = vadd.f32 %v3155, %v3156
        %3158 = vadd.xlane.f32.xlu0 %v3157
        %v3159 = vpop.xlane.xlu0 %3158
        %v3160 = vadd.f32 %v2405, %v2406
        %v3161 = vadd.f32 %v3160, %v2407
        %v3162 = vsel %vm2435, %v2408, 0.0
        %v3163 = vadd.f32 %v3161, %v3162
        %3164 = vadd.xlane.f32.xlu0 %v3163
        %v3165 = vpop.xlane.xlu0 %3164
        %v3166 = vadd.f32 %v2409, %v2410
        %v3167 = vadd.f32 %v3166, %v2411
        %v3168 = vsel %vm2435, %v2412, 0.0
        %v3169 = vadd.f32 %v3167, %v3168
        %3170 = vadd.xlane.f32.xlu0 %v3169
        %v3171 = vpop.xlane.xlu0 %3170
        %v3172 = vadd.f32 %v2413, %v2414
        %v3173 = vadd.f32 %v3172, %v2415
        %v3174 = vsel %vm2435, %v2416, 0.0
        %v3175 = vadd.f32 %v3173, %v3174
        %3176 = vadd.xlane.f32.xlu0 %v3175
        %v3177 = vpop.xlane.xlu0 %3176
        %v3178 = vadd.f32 %v2417, %v2418
        %v3179 = vadd.f32 %v3178, %v2419
        %v3180 = vsel %vm2435, %v2420, 0.0
        %v3181 = vadd.f32 %v3179, %v3180
        %3182 = vadd.xlane.f32.xlu0 %v3181
        %v3183 = vpop.xlane.xlu0 %3182
        %v3184 = vadd.f32 %v2421, %v2422
        %v3185 = vadd.f32 %v3184, %v2423
        %v3186 = vsel %vm2435, %v2424, 0.0
        %v3187 = vadd.f32 %v3185, %v3186
        %3188 = vadd.xlane.f32.xlu0 %v3187
        %v3189 = vpop.xlane.xlu0 %3188
        %v3190 = vadd.f32 %v2425, %v2426
        %v3191 = vadd.f32 %v3190, %v2427
        %v3192 = vsel %vm2435, %v2428, 0.0
        %v3193 = vadd.f32 %v3191, %v3192
        %3194 = vadd.xlane.f32.xlu0 %v3193
        %v3195 = vpop.xlane.xlu0 %3194
        %v3196 = vadd.f32 %v2429, %v2430
        %v3197 = vadd.f32 %v3196, %v2431
        %v3198 = vsel %vm2435, %v2432, 0.0
        %v3199 = vadd.f32 %v3197, %v3198
        %3200 = vadd.xlane.f32.xlu0 %v3199
        %v3201 = vpop.xlane.xlu0 %3200
        %v3202 = vmul.f32 %v2439, 0.0025510204
        %v3203 = vmul.f32 %v2445, 0.0025510204
        %v3204 = vmul.f32 %v2451, 0.0025510204
        %v3205 = vmul.f32 %v2457, 0.0025510204
        %v3206 = vmul.f32 %v2463, 0.0025510204
        %v3207 = vmul.f32 %v2469, 0.0025510204
        %v3208 = vmul.f32 %v2475, 0.0025510204
        %v3209 = vmul.f32 %v2481, 0.0025510204
        %v3210 = vmul.f32 %v2487, 0.0025510204
        %v3211 = vmul.f32 %v2493, 0.0025510204
        %v3212 = vmul.f32 %v2499, 0.0025510204
        %v3213 = vmul.f32 %v2505, 0.0025510204
        %v3214 = vmul.f32 %v2511, 0.0025510204
        %v3215 = vmul.f32 %v2517, 0.0025510204
        %v3216 = vmul.f32 %v2523, 0.0025510204
        %v3217 = vmul.f32 %v2529, 0.0025510204
        %v3218 = vmul.f32 %v2535, 0.0025510204
        %v3219 = vmul.f32 %v2541, 0.0025510204
        %v3220 = vmul.f32 %v2547, 0.0025510204
        %v3221 = vmul.f32 %v2553, 0.0025510204
        %v3222 = vmul.f32 %v2559, 0.0025510204
        %v3223 = vmul.f32 %v2565, 0.0025510204
        %v3224 = vmul.f32 %v2571, 0.0025510204
        %v3225 = vmul.f32 %v2577, 0.0025510204
        %v3226 = vmul.f32 %v2583, 0.0025510204
        %v3227 = vmul.f32 %v2589, 0.0025510204
        %v3228 = vmul.f32 %v2595, 0.0025510204
        %v3229 = vmul.f32 %v2601, 0.0025510204
        %v3230 = vmul.f32 %v2607, 0.0025510204
        %v3231 = vmul.f32 %v2613, 0.0025510204
        %v3232 = vmul.f32 %v2619, 0.0025510204
        %v3233 = vmul.f32 %v2625, 0.0025510204
        %v3234 = vmul.f32 %v2631, 0.0025510204
        %v3235 = vmul.f32 %v2637, 0.0025510204
        %v3236 = vmul.f32 %v2643, 0.0025510204
        %v3237 = vmul.f32 %v2649, 0.0025510204
        %v3238 = vmul.f32 %v2655, 0.0025510204
        %v3239 = vmul.f32 %v2661, 0.0025510204
        %v3240 = vmul.f32 %v2667, 0.0025510204
        %v3241 = vmul.f32 %v2673, 0.0025510204
        %v3242 = vmul.f32 %v2679, 0.0025510204
        %v3243 = vmul.f32 %v2685, 0.0025510204
        %v3244 = vmul.f32 %v2691, 0.0025510204
        %v3245 = vmul.f32 %v2697, 0.0025510204
        %v3246 = vmul.f32 %v2703, 0.0025510204
        %v3247 = vmul.f32 %v2709, 0.0025510204
        %v3248 = vmul.f32 %v2715, 0.0025510204
        %v3249 = vmul.f32 %v2721, 0.0025510204
        %v3250 = vmul.f32 %v2727, 0.0025510204
        %v3251 = vmul.f32 %v2733, 0.0025510204
        %v3252 = vmul.f32 %v2739, 0.0025510204
        %v3253 = vmul.f32 %v2745, 0.0025510204
        %v3254 = vmul.f32 %v2751, 0.0025510204
        %v3255 = vmul.f32 %v2757, 0.0025510204
        %v3256 = vmul.f32 %v2763, 0.0025510204
        %v3257 = vmul.f32 %v2769, 0.0025510204
        %v3258 = vmul.f32 %v2775, 0.0025510204
        %v3259 = vmul.f32 %v2781, 0.0025510204
        %v3260 = vmul.f32 %v2787, 0.0025510204
        %v3261 = vmul.f32 %v2793, 0.0025510204
        %v3262 = vmul.f32 %v2799, 0.0025510204
        %v3263 = vmul.f32 %v2805, 0.0025510204
        %v3264 = vmul.f32 %v2811, 0.0025510204
        %v3265 = vmul.f32 %v2817, 0.0025510204
        %v3266 = vmul.f32 %v2823, 0.0025510204
        %v3267 = vmul.f32 %v2829, 0.0025510204
        %v3268 = vmul.f32 %v2835, 0.0025510204
        %v3269 = vmul.f32 %v2841, 0.0025510204
        %v3270 = vmul.f32 %v2847, 0.0025510204
        %v3271 = vmul.f32 %v2853, 0.0025510204
        %v3272 = vmul.f32 %v2859, 0.0025510204
        %v3273 = vmul.f32 %v2865, 0.0025510204
        %v3274 = vmul.f32 %v2871, 0.0025510204
        %v3275 = vmul.f32 %v2877, 0.0025510204
        %v3276 = vmul.f32 %v2883, 0.0025510204
        %v3277 = vmul.f32 %v2889, 0.0025510204
        %v3278 = vmul.f32 %v2895, 0.0025510204
        %v3279 = vmul.f32 %v2901, 0.0025510204
        %v3280 = vmul.f32 %v2907, 0.0025510204
        %v3281 = vmul.f32 %v2913, 0.0025510204
        %v3282 = vmul.f32 %v2919, 0.0025510204
        %v3283 = vmul.f32 %v2925, 0.0025510204
        %v3284 = vmul.f32 %v2931, 0.0025510204
        %v3285 = vmul.f32 %v2937, 0.0025510204
        %v3286 = vmul.f32 %v2943, 0.0025510204
        %v3287 = vmul.f32 %v2949, 0.0025510204
        %v3288 = vmul.f32 %v2955, 0.0025510204
        %v3289 = vmul.f32 %v2961, 0.0025510204
        %v3290 = vmul.f32 %v2967, 0.0025510204
        %v3291 = vmul.f32 %v2973, 0.0025510204
        %v3292 = vmul.f32 %v2979, 0.0025510204
        %v3293 = vmul.f32 %v2985, 0.0025510204
        %v3294 = vmul.f32 %v2991, 0.0025510204
        %v3295 = vmul.f32 %v2997, 0.0025510204
        %v3296 = vmul.f32 %v3003, 0.0025510204
        %v3297 = vmul.f32 %v3009, 0.0025510204
        %v3298 = vmul.f32 %v3015, 0.0025510204
        %v3299 = vmul.f32 %v3021, 0.0025510204
        %v3300 = vmul.f32 %v3027, 0.0025510204
        %v3301 = vmul.f32 %v3033, 0.0025510204
        %v3302 = vmul.f32 %v3039, 0.0025510204
        %v3303 = vmul.f32 %v3045, 0.0025510204
        %v3304 = vmul.f32 %v3051, 0.0025510204
        %v3305 = vmul.f32 %v3057, 0.0025510204
        %v3306 = vmul.f32 %v3063, 0.0025510204
        %v3307 = vmul.f32 %v3069, 0.0025510204
        %v3308 = vmul.f32 %v3075, 0.0025510204
        %v3309 = vmul.f32 %v3081, 0.0025510204
        %v3310 = vmul.f32 %v3087, 0.0025510204
        %v3311 = vmul.f32 %v3093, 0.0025510204
        %v3312 = vmul.f32 %v3099, 0.0025510204
        %v3313 = vmul.f32 %v3105, 0.0025510204
        %v3314 = vmul.f32 %v3111, 0.0025510204
        %v3315 = vmul.f32 %v3117, 0.0025510204
        %v3316 = vmul.f32 %v3123, 0.0025510204
        %v3317 = vmul.f32 %v3129, 0.0025510204
        %v3318 = vmul.f32 %v3135, 0.0025510204
        %v3319 = vmul.f32 %v3141, 0.0025510204
        %v3320 = vmul.f32 %v3147, 0.0025510204
        %v3321 = vmul.f32 %v3153, 0.0025510204
        %v3322 = vmul.f32 %v3159, 0.0025510204
        %v3323 = vmul.f32 %v3165, 0.0025510204
        %v3324 = vmul.f32 %v3171, 0.0025510204
        %v3325 = vmul.f32 %v3177, 0.0025510204
        %v3326 = vmul.f32 %v3183, 0.0025510204
        %v3327 = vmul.f32 %v3189, 0.0025510204
        %v3328 = vmul.f32 %v3195, 0.0025510204
        %v3329 = vmul.f32 %v3201, 0.0025510204
        %v3330 = vld [vmem:[#allocation2] sm:$0x3]
        %v3331 = vld [vmem:[%s1587] sm:$0xff]
        %v3332 = vld [vmem:[%s1587 + $0x8] sm:$0xff]
        %v3333 = vld [vmem:[%s1587 + $0x10] sm:$0xff]
        %v3334 = vld [vmem:[%s1587 + $0x18] sm:$0xff]
        %v3335 = vld [vmem:[%s1587 + $0x20] sm:$0xff]
        %v3336 = vld [vmem:[%s1587 + $0x28] sm:$0xff]
        %v3337 = vld [vmem:[%s1587 + $0x30] sm:$0xff]
        %v3338 = vld [vmem:[%s1587 + $0x38] sm:$0xff]
        %v3339 = vld [vmem:[%s1587 + $0x40] sm:$0xff]
        %v3340 = vld [vmem:[%s1587 + $0x48] sm:$0xff]
        %v3341 = vld [vmem:[%s1587 + $0x50] sm:$0xff]
        %v3342 = vld [vmem:[%s1587 + $0x58] sm:$0xff]
        %v3343 = vld [vmem:[%s1587 + $0x60] sm:$0xff]
        %v3344 = vld [vmem:[%s1587 + $0x68] sm:$0xff]
        %v3345 = vld [vmem:[%s1587 + $0x70] sm:$0xff]
        %v3346 = vld [vmem:[%s1587 + $0x78] sm:$0xff]
        %v3347 = vld [vmem:[%s1593] sm:$0xff]
        %v3348 = vld [vmem:[%s1593 + $0x8] sm:$0xff]
        %v3349 = vld [vmem:[%s1593 + $0x10] sm:$0xff]
        %v3350 = vld [vmem:[%s1593 + $0x18] sm:$0xff]
        %v3351 = vld [vmem:[%s1593 + $0x20] sm:$0xff]
        %v3352 = vld [vmem:[%s1593 + $0x28] sm:$0xff]
        %v3353 = vld [vmem:[%s1593 + $0x30] sm:$0xff]
        %v3354 = vld [vmem:[%s1593 + $0x38] sm:$0xff]
        %v3355 = vld [vmem:[%s1593 + $0x40] sm:$0xff]
        %v3356 = vld [vmem:[%s1593 + $0x48] sm:$0xff]
        %v3357 = vld [vmem:[%s1593 + $0x50] sm:$0xff]
        %v3358 = vld [vmem:[%s1593 + $0x58] sm:$0xff]
        %v3359 = vld [vmem:[%s1593 + $0x60] sm:$0xff]
        %v3360 = vld [vmem:[%s1593 + $0x68] sm:$0xff]
        %v3361 = vld [vmem:[%s1593 + $0x70] sm:$0xff]
        %v3362 = vld [vmem:[%s1593 + $0x78] sm:$0xff]
        %v3363 = vld [vmem:[%s1593 + $0x80] sm:$0xff]
        %v3364 = vld [vmem:[%s1593 + $0x88] sm:$0xff]
        %v3365 = vld [vmem:[%s1593 + $0x90] sm:$0xff]
        %v3366 = vld [vmem:[%s1593 + $0x98] sm:$0xff]
        %v3367 = vld [vmem:[%s1593 + $0xa0] sm:$0xff]
        %v3368 = vld [vmem:[%s1593 + $0xa8] sm:$0xff]
        %v3369 = vld [vmem:[%s1593 + $0xb0] sm:$0xff]
        %v3370 = vld [vmem:[%s1593 + $0xb8] sm:$0xff]
        %v3371 = vld [vmem:[%s1593 + $0xc0] sm:$0xff]
        %v3372 = vld [vmem:[%s1593 + $0xc8] sm:$0xff]
        %v3373 = vld [vmem:[%s1593 + $0xd0] sm:$0xff]
        %v3374 = vld [vmem:[%s1593 + $0xd8] sm:$0xff]
        %v3375 = vld [vmem:[%s1593 + $0xe0] sm:$0xff]
        %v3376 = vld [vmem:[%s1593 + $0xe8] sm:$0xff]
        %v3377 = vld [vmem:[%s1593 + $0xf0] sm:$0xff]
        %v3378 = vld [vmem:[%s1593 + $0xf8] sm:$0xff]
        %v3379 = vld [vmem:[%s1593 + $0x100] sm:$0xff]
        %v3380 = vld [vmem:[%s1593 + $0x108] sm:$0xff]
        %v3381 = vld [vmem:[%s1593 + $0x110] sm:$0xff]
        %v3382 = vld [vmem:[%s1593 + $0x118] sm:$0xff]
        %v3383 = vld [vmem:[%s1593 + $0x120] sm:$0xff]
        %v3384 = vld [vmem:[%s1593 + $0x128] sm:$0xff]
        %v3385 = vld [vmem:[%s1593 + $0x130] sm:$0xff]
        %v3386 = vld [vmem:[%s1593 + $0x138] sm:$0xff]
        %v3387 = vld [vmem:[%s1593 + $0x140] sm:$0xff]
        %v3388 = vld [vmem:[%s1593 + $0x148] sm:$0xff]
        %v3389 = vld [vmem:[%s1593 + $0x150] sm:$0xff]
        %v3390 = vld [vmem:[%s1593 + $0x158] sm:$0xff]
        %v3391 = vld [vmem:[%s1593 + $0x160] sm:$0xff]
        %v3392 = vld [vmem:[%s1593 + $0x168] sm:$0xff]
        %v3393 = vld [vmem:[%s1593 + $0x170] sm:$0xff]
        %v3394 = vld [vmem:[%s1593 + $0x178] sm:$0xff]
        %v3395 = vld [vmem:[%s1593 + $0x180] sm:$0xff]
        %v3396 = vld [vmem:[%s1593 + $0x188] sm:$0xff]
        %v3397 = vld [vmem:[%s1593 + $0x190] sm:$0xff]
        %v3398 = vld [vmem:[%s1593 + $0x198] sm:$0xff]
        %v3399 = vld [vmem:[%s1593 + $0x1a0] sm:$0xff]
        %v3400 = vld [vmem:[%s1593 + $0x1a8] sm:$0xff]
        %v3401 = vld [vmem:[%s1593 + $0x1b0] sm:$0xff]
        %v3402 = vld [vmem:[%s1593 + $0x1b8] sm:$0xff]
        %v3403 = vld [vmem:[%s1593 + $0x1c0] sm:$0xff]
        %v3404 = vld [vmem:[%s1593 + $0x1c8] sm:$0xff]
        %v3405 = vld [vmem:[%s1593 + $0x1d0] sm:$0xff]
        %v3406 = vld [vmem:[%s1593 + $0x1d8] sm:$0xff]
        %v3407 = vld [vmem:[%s1593 + $0x1e0] sm:$0xff]
        %v3408 = vld [vmem:[%s1593 + $0x1e8] sm:$0xff]
        %v3409 = vld [vmem:[%s1593 + $0x1f0] sm:$0xff]
        %v3410 = vld [vmem:[%s1593 + $0x1f8] sm:$0xff]
        %v3539 = vlaneseq
        %v3540 = vand.u32 %v3539, 127
        %v3541 = vlaneseq
        %v3542 = vshrl.u32 %v3541, 7
        %v3543 = vsub.s32 %v3540, %v3542
        %v3544 = vrot.slane %v3202, %v3543
        %v3545 = vadd.s32 %v3540, 4294967288
        %v3546 = vlaneseq
        %v3547 = vshrl.u32 %v3546, 7
        %v3548 = vsub.s32 %v3545, %v3547
        %v3549 = vrot.slane %v3203, %v3548
        %vm3550 = vcmask 130112
        %v3551 = vsel %vm3550, %v3549, %v3544
        %v3552 = vadd.s32 %v3540, 4294967280
        %v3553 = vlaneseq
        %v3554 = vshrl.u32 %v3553, 7
        %v3555 = vsub.s32 %v3552, %v3554
        %v3556 = vrot.slane %v3204, %v3555
        %vm3557 = vcmask 195712
        %v3558 = vsel %vm3557, %v3556, %v3551
        %v3559 = vadd.s32 %v3540, 4294967272
        %v3560 = vlaneseq
        %v3561 = vshrl.u32 %v3560, 7
        %v3562 = vsub.s32 %v3559, %v3561
        %v3563 = vrot.slane %v3205, %v3562
        %vm3564 = vcmask 261312
        %v3565 = vsel %vm3564, %v3563, %v3558
        %v3566 = vadd.s32 %v3540, 4294967264
        %v3567 = vlaneseq
        %v3568 = vshrl.u32 %v3567, 7
        %v3569 = vsub.s32 %v3566, %v3568
        %v3570 = vrot.slane %v3206, %v3569
        %vm3571 = vcmask 326912
        %v3572 = vsel %vm3571, %v3570, %v3565
        %v3573 = vadd.s32 %v3540, 4294967256
        %v3574 = vlaneseq
        %v3575 = vshrl.u32 %v3574, 7
        %v3576 = vsub.s32 %v3573, %v3575
        %v3577 = vrot.slane %v3207, %v3576
        %vm3578 = vcmask 392512
        %v3579 = vsel %vm3578, %v3577, %v3572
        %v3580 = vadd.s32 %v3540, 4294967248
        %v3581 = vlaneseq
        %v3582 = vshrl.u32 %v3581, 7
        %v3583 = vsub.s32 %v3580, %v3582
        %v3584 = vrot.slane %v3208, %v3583
        %vm3585 = vcmask 458112
        %v3586 = vsel %vm3585, %v3584, %v3579
        %v3587 = vadd.s32 %v3540, 4294967240
        %v3588 = vlaneseq
        %v3589 = vshrl.u32 %v3588, 7
        %v3590 = vsub.s32 %v3587, %v3589
        %v3591 = vrot.slane %v3209, %v3590
        %vm3592 = vcmask 523712
        %v3593 = vsel %vm3592, %v3591, %v3586
        %v3594 = vadd.s32 %v3540, 4294967232
        %v3595 = vlaneseq
        %v3596 = vshrl.u32 %v3595, 7
        %v3597 = vsub.s32 %v3594, %v3596
        %v3598 = vrot.slane %v3210, %v3597
        %vm3599 = vcmask 589312
        %v3600 = vsel %vm3599, %v3598, %v3593
        %v3601 = vadd.s32 %v3540, 4294967224
        %v3602 = vlaneseq
        %v3603 = vshrl.u32 %v3602, 7
        %v3604 = vsub.s32 %v3601, %v3603
        %v3605 = vrot.slane %v3211, %v3604
        %vm3606 = vcmask 654912
        %v3607 = vsel %vm3606, %v3605, %v3600
        %v3608 = vadd.s32 %v3540, 4294967216
        %v3609 = vlaneseq
        %v3610 = vshrl.u32 %v3609, 7
        %v3611 = vsub.s32 %v3608, %v3610
        %v3612 = vrot.slane %v3212, %v3611
        %vm3613 = vcmask 720512
        %v3614 = vsel %vm3613, %v3612, %v3607
        %v3615 = vadd.s32 %v3540, 4294967208
        %v3616 = vlaneseq
        %v3617 = vshrl.u32 %v3616, 7
        %v3618 = vsub.s32 %v3615, %v3617
        %v3619 = vrot.slane %v3213, %v3618
        %vm3620 = vcmask 786112
        %v3621 = vsel %vm3620, %v3619, %v3614
        %v3622 = vadd.s32 %v3540, 4294967200
        %v3623 = vlaneseq
        %v3624 = vshrl.u32 %v3623, 7
        %v3625 = vsub.s32 %v3622, %v3624
        %v3626 = vrot.slane %v3214, %v3625
        %vm3627 = vcmask 851712
        %v3628 = vsel %vm3627, %v3626, %v3621
        %v3629 = vadd.s32 %v3540, 4294967192
        %v3630 = vlaneseq
        %v3631 = vshrl.u32 %v3630, 7
        %v3632 = vsub.s32 %v3629, %v3631
        %v3633 = vrot.slane %v3215, %v3632
        %vm3634 = vcmask 917312
        %v3635 = vsel %vm3634, %v3633, %v3628
        %v3636 = vadd.s32 %v3540, 4294967184
        %v3637 = vlaneseq
        %v3638 = vshrl.u32 %v3637, 7
        %v3639 = vsub.s32 %v3636, %v3638
        %v3640 = vrot.slane %v3216, %v3639
        %vm3641 = vcmask 982912
        %v3642 = vsel %vm3641, %v3640, %v3635
        %v3643 = vadd.s32 %v3540, 4294967176
        %v3644 = vlaneseq
        %v3645 = vshrl.u32 %v3644, 7
        %v3646 = vsub.s32 %v3643, %v3645
        %v3647 = vrot.slane %v3217, %v3646
        %vm3648 = vcmask 1048512
        %v3649 = vsel %vm3648, %v3647, %v3642
        %v3650 = vlaneseq
        %v3651 = vshrl.u32 %v3650, 7
        %v3652 = vsub.s32 %v3540, %v3651
        %v3653 = vrot.slane %v3218, %v3652
        %v3654 = vlaneseq
        %v3655 = vshrl.u32 %v3654, 7
        %v3656 = vsub.s32 %v3545, %v3655
        %v3657 = vrot.slane %v3219, %v3656
        %v3658 = vsel %vm3550, %v3657, %v3653
        %v3659 = vlaneseq
        %v3660 = vshrl.u32 %v3659, 7
        %v3661 = vsub.s32 %v3552, %v3660
        %v3662 = vrot.slane %v3220, %v3661
        %v3663 = vsel %vm3557, %v3662, %v3658
        %v3664 = vlaneseq
        %v3665 = vshrl.u32 %v3664, 7
        %v3666 = vsub.s32 %v3559, %v3665
        %v3667 = vrot.slane %v3221, %v3666
        %v3668 = vsel %vm3564, %v3667, %v3663
        %v3669 = vlaneseq
        %v3670 = vshrl.u32 %v3669, 7
        %v3671 = vsub.s32 %v3566, %v3670
        %v3672 = vrot.slane %v3222, %v3671
        %v3673 = vsel %vm3571, %v3672, %v3668
        %v3674 = vlaneseq
        %v3675 = vshrl.u32 %v3674, 7
        %v3676 = vsub.s32 %v3573, %v3675
        %v3677 = vrot.slane %v3223, %v3676
        %v3678 = vsel %vm3578, %v3677, %v3673
        %v3679 = vlaneseq
        %v3680 = vshrl.u32 %v3679, 7
        %v3681 = vsub.s32 %v3580, %v3680
        %v3682 = vrot.slane %v3224, %v3681
        %v3683 = vsel %vm3585, %v3682, %v3678
        %v3684 = vlaneseq
        %v3685 = vshrl.u32 %v3684, 7
        %v3686 = vsub.s32 %v3587, %v3685
        %v3687 = vrot.slane %v3225, %v3686
        %v3688 = vsel %vm3592, %v3687, %v3683
        %v3689 = vlaneseq
        %v3690 = vshrl.u32 %v3689, 7
        %v3691 = vsub.s32 %v3594, %v3690
        %v3692 = vrot.slane %v3226, %v3691
        %v3693 = vsel %vm3599, %v3692, %v3688
        %v3694 = vlaneseq
        %v3695 = vshrl.u32 %v3694, 7
        %v3696 = vsub.s32 %v3601, %v3695
        %v3697 = vrot.slane %v3227, %v3696
        %v3698 = vsel %vm3606, %v3697, %v3693
        %v3699 = vlaneseq
        %v3700 = vshrl.u32 %v3699, 7
        %v3701 = vsub.s32 %v3608, %v3700
        %v3702 = vrot.slane %v3228, %v3701
        %v3703 = vsel %vm3613, %v3702, %v3698
        %v3704 = vlaneseq
        %v3705 = vshrl.u32 %v3704, 7
        %v3706 = vsub.s32 %v3615, %v3705
        %v3707 = vrot.slane %v3229, %v3706
        %v3708 = vsel %vm3620, %v3707, %v3703
        %v3709 = vlaneseq
        %v3710 = vshrl.u32 %v3709, 7
        %v3711 = vsub.s32 %v3622, %v3710
        %v3712 = vrot.slane %v3230, %v3711
        %v3713 = vsel %vm3627, %v3712, %v3708
        %v3714 = vlaneseq
        %v3715 = vshrl.u32 %v3714, 7
        %v3716 = vsub.s32 %v3629, %v3715
        %v3717 = vrot.slane %v3231, %v3716
        %v3718 = vsel %vm3634, %v3717, %v3713
        %v3719 = vlaneseq
        %v3720 = vshrl.u32 %v3719, 7
        %v3721 = vsub.s32 %v3636, %v3720
        %v3722 = vrot.slane %v3232, %v3721
        %v3723 = vsel %vm3641, %v3722, %v3718
        %v3724 = vlaneseq
        %v3725 = vshrl.u32 %v3724, 7
        %v3726 = vsub.s32 %v3643, %v3725
        %v3727 = vrot.slane %v3233, %v3726
        %v3728 = vsel %vm3648, %v3727, %v3723
        %v3729 = vlaneseq
        %v3730 = vshrl.u32 %v3729, 7
        %v3731 = vsub.s32 %v3540, %v3730
        %v3732 = vrot.slane %v3234, %v3731
        %v3733 = vlaneseq
        %v3734 = vshrl.u32 %v3733, 7
        %v3735 = vsub.s32 %v3545, %v3734
        %v3736 = vrot.slane %v3235, %v3735
        %v3737 = vsel %vm3550, %v3736, %v3732
        %v3738 = vlaneseq
        %v3739 = vshrl.u32 %v3738, 7
        %v3740 = vsub.s32 %v3552, %v3739
        %v3741 = vrot.slane %v3236, %v3740
        %v3742 = vsel %vm3557, %v3741, %v3737
        %v3743 = vlaneseq
        %v3744 = vshrl.u32 %v3743, 7
        %v3745 = vsub.s32 %v3559, %v3744
        %v3746 = vrot.slane %v3237, %v3745
        %v3747 = vsel %vm3564, %v3746, %v3742
        %v3748 = vlaneseq
        %v3749 = vshrl.u32 %v3748, 7
        %v3750 = vsub.s32 %v3566, %v3749
        %v3751 = vrot.slane %v3238, %v3750
        %v3752 = vsel %vm3571, %v3751, %v3747
        %v3753 = vlaneseq
        %v3754 = vshrl.u32 %v3753, 7
        %v3755 = vsub.s32 %v3573, %v3754
        %v3756 = vrot.slane %v3239, %v3755
        %v3757 = vsel %vm3578, %v3756, %v3752
        %v3758 = vlaneseq
        %v3759 = vshrl.u32 %v3758, 7
        %v3760 = vsub.s32 %v3580, %v3759
        %v3761 = vrot.slane %v3240, %v3760
        %v3762 = vsel %vm3585, %v3761, %v3757
        %v3763 = vlaneseq
        %v3764 = vshrl.u32 %v3763, 7
        %v3765 = vsub.s32 %v3587, %v3764
        %v3766 = vrot.slane %v3241, %v3765
        %v3767 = vsel %vm3592, %v3766, %v3762
        %v3768 = vlaneseq
        %v3769 = vshrl.u32 %v3768, 7
        %v3770 = vsub.s32 %v3594, %v3769
        %v3771 = vrot.slane %v3242, %v3770
        %v3772 = vsel %vm3599, %v3771, %v3767
        %v3773 = vlaneseq
        %v3774 = vshrl.u32 %v3773, 7
        %v3775 = vsub.s32 %v3601, %v3774
        %v3776 = vrot.slane %v3243, %v3775
        %v3777 = vsel %vm3606, %v3776, %v3772
        %v3778 = vlaneseq
        %v3779 = vshrl.u32 %v3778, 7
        %v3780 = vsub.s32 %v3608, %v3779
        %v3781 = vrot.slane %v3244, %v3780
        %v3782 = vsel %vm3613, %v3781, %v3777
        %v3783 = vlaneseq
        %v3784 = vshrl.u32 %v3783, 7
        %v3785 = vsub.s32 %v3615, %v3784
        %v3786 = vrot.slane %v3245, %v3785
        %v3787 = vsel %vm3620, %v3786, %v3782
        %v3788 = vlaneseq
        %v3789 = vshrl.u32 %v3788, 7
        %v3790 = vsub.s32 %v3622, %v3789
        %v3791 = vrot.slane %v3246, %v3790
        %v3792 = vsel %vm3627, %v3791, %v3787
        %v3793 = vlaneseq
        %v3794 = vshrl.u32 %v3793, 7
        %v3795 = vsub.s32 %v3629, %v3794
        %v3796 = vrot.slane %v3247, %v3795
        %v3797 = vsel %vm3634, %v3796, %v3792
        %v3798 = vlaneseq
        %v3799 = vshrl.u32 %v3798, 7
        %v3800 = vsub.s32 %v3636, %v3799
        %v3801 = vrot.slane %v3248, %v3800
        %v3802 = vsel %vm3641, %v3801, %v3797
        %v3803 = vlaneseq
        %v3804 = vshrl.u32 %v3803, 7
        %v3805 = vsub.s32 %v3643, %v3804
        %v3806 = vrot.slane %v3249, %v3805
        %v3807 = vsel %vm3648, %v3806, %v3802
        %v3808 = vlaneseq
        %v3809 = vshrl.u32 %v3808, 7
        %v3810 = vsub.s32 %v3540, %v3809
        %v3811 = vrot.slane %v3250, %v3810
        %v3812 = vlaneseq
        %v3813 = vshrl.u32 %v3812, 7
        %v3814 = vsub.s32 %v3545, %v3813
        %v3815 = vrot.slane %v3251, %v3814
        %v3816 = vsel %vm3550, %v3815, %v3811
        %v3817 = vlaneseq
        %v3818 = vshrl.u32 %v3817, 7
        %v3819 = vsub.s32 %v3552, %v3818
        %v3820 = vrot.slane %v3252, %v3819
        %v3821 = vsel %vm3557, %v3820, %v3816
        %v3822 = vlaneseq
        %v3823 = vshrl.u32 %v3822, 7
        %v3824 = vsub.s32 %v3559, %v3823
        %v3825 = vrot.slane %v3253, %v3824
        %v3826 = vsel %vm3564, %v3825, %v3821
        %v3827 = vlaneseq
        %v3828 = vshrl.u32 %v3827, 7
        %v3829 = vsub.s32 %v3566, %v3828
        %v3830 = vrot.slane %v3254, %v3829
        %v3831 = vsel %vm3571, %v3830, %v3826
        %v3832 = vlaneseq
        %v3833 = vshrl.u32 %v3832, 7
        %v3834 = vsub.s32 %v3573, %v3833
        %v3835 = vrot.slane %v3255, %v3834
        %v3836 = vsel %vm3578, %v3835, %v3831
        %v3837 = vlaneseq
        %v3838 = vshrl.u32 %v3837, 7
        %v3839 = vsub.s32 %v3580, %v3838
        %v3840 = vrot.slane %v3256, %v3839
        %v3841 = vsel %vm3585, %v3840, %v3836
        %v3842 = vlaneseq
        %v3843 = vshrl.u32 %v3842, 7
        %v3844 = vsub.s32 %v3587, %v3843
        %v3845 = vrot.slane %v3257, %v3844
        %v3846 = vsel %vm3592, %v3845, %v3841
        %v3847 = vlaneseq
        %v3848 = vshrl.u32 %v3847, 7
        %v3849 = vsub.s32 %v3594, %v3848
        %v3850 = vrot.slane %v3258, %v3849
        %v3851 = vsel %vm3599, %v3850, %v3846
        %v3852 = vlaneseq
        %v3853 = vshrl.u32 %v3852, 7
        %v3854 = vsub.s32 %v3601, %v3853
        %v3855 = vrot.slane %v3259, %v3854
        %v3856 = vsel %vm3606, %v3855, %v3851
        %v3857 = vlaneseq
        %v3858 = vshrl.u32 %v3857, 7
        %v3859 = vsub.s32 %v3608, %v3858
        %v3860 = vrot.slane %v3260, %v3859
        %v3861 = vsel %vm3613, %v3860, %v3856
        %v3862 = vlaneseq
        %v3863 = vshrl.u32 %v3862, 7
        %v3864 = vsub.s32 %v3615, %v3863
        %v3865 = vrot.slane %v3261, %v3864
        %v3866 = vsel %vm3620, %v3865, %v3861
        %v3867 = vlaneseq
        %v3868 = vshrl.u32 %v3867, 7
        %v3869 = vsub.s32 %v3622, %v3868
        %v3870 = vrot.slane %v3262, %v3869
        %v3871 = vsel %vm3627, %v3870, %v3866
        %v3872 = vlaneseq
        %v3873 = vshrl.u32 %v3872, 7
        %v3874 = vsub.s32 %v3629, %v3873
        %v3875 = vrot.slane %v3263, %v3874
        %v3876 = vsel %vm3634, %v3875, %v3871
        %v3877 = vlaneseq
        %v3878 = vshrl.u32 %v3877, 7
        %v3879 = vsub.s32 %v3636, %v3878
        %v3880 = vrot.slane %v3264, %v3879
        %v3881 = vsel %vm3641, %v3880, %v3876
        %v3882 = vlaneseq
        %v3883 = vshrl.u32 %v3882, 7
        %v3884 = vsub.s32 %v3643, %v3883
        %v3885 = vrot.slane %v3265, %v3884
        %v3886 = vsel %vm3648, %v3885, %v3881
        %v3887 = vlaneseq
        %v3888 = vshrl.u32 %v3887, 7
        %v3889 = vsub.s32 %v3540, %v3888
        %v3890 = vrot.slane %v3266, %v3889
        %v3891 = vlaneseq
        %v3892 = vshrl.u32 %v3891, 7
        %v3893 = vsub.s32 %v3545, %v3892
        %v3894 = vrot.slane %v3267, %v3893
        %v3895 = vsel %vm3550, %v3894, %v3890
        %v3896 = vlaneseq
        %v3897 = vshrl.u32 %v3896, 7
        %v3898 = vsub.s32 %v3552, %v3897
        %v3899 = vrot.slane %v3268, %v3898
        %v3900 = vsel %vm3557, %v3899, %v3895
        %v3901 = vlaneseq
        %v3902 = vshrl.u32 %v3901, 7
        %v3903 = vsub.s32 %v3559, %v3902
        %v3904 = vrot.slane %v3269, %v3903
        %v3905 = vsel %vm3564, %v3904, %v3900
        %v3906 = vlaneseq
        %v3907 = vshrl.u32 %v3906, 7
        %v3908 = vsub.s32 %v3566, %v3907
        %v3909 = vrot.slane %v3270, %v3908
        %v3910 = vsel %vm3571, %v3909, %v3905
        %v3911 = vlaneseq
        %v3912 = vshrl.u32 %v3911, 7
        %v3913 = vsub.s32 %v3573, %v3912
        %v3914 = vrot.slane %v3271, %v3913
        %v3915 = vsel %vm3578, %v3914, %v3910
        %v3916 = vlaneseq
        %v3917 = vshrl.u32 %v3916, 7
        %v3918 = vsub.s32 %v3580, %v3917
        %v3919 = vrot.slane %v3272, %v3918
        %v3920 = vsel %vm3585, %v3919, %v3915
        %v3921 = vlaneseq
        %v3922 = vshrl.u32 %v3921, 7
        %v3923 = vsub.s32 %v3587, %v3922
        %v3924 = vrot.slane %v3273, %v3923
        %v3925 = vsel %vm3592, %v3924, %v3920
        %v3926 = vlaneseq
        %v3927 = vshrl.u32 %v3926, 7
        %v3928 = vsub.s32 %v3594, %v3927
        %v3929 = vrot.slane %v3274, %v3928
        %v3930 = vsel %vm3599, %v3929, %v3925
        %v3931 = vlaneseq
        %v3932 = vshrl.u32 %v3931, 7
        %v3933 = vsub.s32 %v3601, %v3932
        %v3934 = vrot.slane %v3275, %v3933
        %v3935 = vsel %vm3606, %v3934, %v3930
        %v3936 = vlaneseq
        %v3937 = vshrl.u32 %v3936, 7
        %v3938 = vsub.s32 %v3608, %v3937
        %v3939 = vrot.slane %v3276, %v3938
        %v3940 = vsel %vm3613, %v3939, %v3935
        %v3941 = vlaneseq
        %v3942 = vshrl.u32 %v3941, 7
        %v3943 = vsub.s32 %v3615, %v3942
        %v3944 = vrot.slane %v3277, %v3943
        %v3945 = vsel %vm3620, %v3944, %v3940
        %v3946 = vlaneseq
        %v3947 = vshrl.u32 %v3946, 7
        %v3948 = vsub.s32 %v3622, %v3947
        %v3949 = vrot.slane %v3278, %v3948
        %v3950 = vsel %vm3627, %v3949, %v3945
        %v3951 = vlaneseq
        %v3952 = vshrl.u32 %v3951, 7
        %v3953 = vsub.s32 %v3629, %v3952
        %v3954 = vrot.slane %v3279, %v3953
        %v3955 = vsel %vm3634, %v3954, %v3950
        %v3956 = vlaneseq
        %v3957 = vshrl.u32 %v3956, 7
        %v3958 = vsub.s32 %v3636, %v3957
        %v3959 = vrot.slane %v3280, %v3958
        %v3960 = vsel %vm3641, %v3959, %v3955
        %v3961 = vlaneseq
        %v3962 = vshrl.u32 %v3961, 7
        %v3963 = vsub.s32 %v3643, %v3962
        %v3964 = vrot.slane %v3281, %v3963
        %v3965 = vsel %vm3648, %v3964, %v3960
        %v3966 = vlaneseq
        %v3967 = vshrl.u32 %v3966, 7
        %v3968 = vsub.s32 %v3540, %v3967
        %v3969 = vrot.slane %v3282, %v3968
        %v3970 = vlaneseq
        %v3971 = vshrl.u32 %v3970, 7
        %v3972 = vsub.s32 %v3545, %v3971
        %v3973 = vrot.slane %v3283, %v3972
        %v3974 = vsel %vm3550, %v3973, %v3969
        %v3975 = vlaneseq
        %v3976 = vshrl.u32 %v3975, 7
        %v3977 = vsub.s32 %v3552, %v3976
        %v3978 = vrot.slane %v3284, %v3977
        %v3979 = vsel %vm3557, %v3978, %v3974
        %v3980 = vlaneseq
        %v3981 = vshrl.u32 %v3980, 7
        %v3982 = vsub.s32 %v3559, %v3981
        %v3983 = vrot.slane %v3285, %v3982
        %v3984 = vsel %vm3564, %v3983, %v3979
        %v3985 = vlaneseq
        %v3986 = vshrl.u32 %v3985, 7
        %v3987 = vsub.s32 %v3566, %v3986
        %v3988 = vrot.slane %v3286, %v3987
        %v3989 = vsel %vm3571, %v3988, %v3984
        %v3990 = vlaneseq
        %v3991 = vshrl.u32 %v3990, 7
        %v3992 = vsub.s32 %v3573, %v3991
        %v3993 = vrot.slane %v3287, %v3992
        %v3994 = vsel %vm3578, %v3993, %v3989
        %v3995 = vlaneseq
        %v3996 = vshrl.u32 %v3995, 7
        %v3997 = vsub.s32 %v3580, %v3996
        %v3998 = vrot.slane %v3288, %v3997
        %v3999 = vsel %vm3585, %v3998, %v3994
        %v4000 = vlaneseq
        %v4001 = vshrl.u32 %v4000, 7
        %v4002 = vsub.s32 %v3587, %v4001
        %v4003 = vrot.slane %v3289, %v4002
        %v4004 = vsel %vm3592, %v4003, %v3999
        %v4005 = vlaneseq
        %v4006 = vshrl.u32 %v4005, 7
        %v4007 = vsub.s32 %v3594, %v4006
        %v4008 = vrot.slane %v3290, %v4007
        %v4009 = vsel %vm3599, %v4008, %v4004
        %v4010 = vlaneseq
        %v4011 = vshrl.u32 %v4010, 7
        %v4012 = vsub.s32 %v3601, %v4011
        %v4013 = vrot.slane %v3291, %v4012
        %v4014 = vsel %vm3606, %v4013, %v4009
        %v4015 = vlaneseq
        %v4016 = vshrl.u32 %v4015, 7
        %v4017 = vsub.s32 %v3608, %v4016
        %v4018 = vrot.slane %v3292, %v4017
        %v4019 = vsel %vm3613, %v4018, %v4014
        %v4020 = vlaneseq
        %v4021 = vshrl.u32 %v4020, 7
        %v4022 = vsub.s32 %v3615, %v4021
        %v4023 = vrot.slane %v3293, %v4022
        %v4024 = vsel %vm3620, %v4023, %v4019
        %v4025 = vlaneseq
        %v4026 = vshrl.u32 %v4025, 7
        %v4027 = vsub.s32 %v3622, %v4026
        %v4028 = vrot.slane %v3294, %v4027
        %v4029 = vsel %vm3627, %v4028, %v4024
        %v4030 = vlaneseq
        %v4031 = vshrl.u32 %v4030, 7
        %v4032 = vsub.s32 %v3629, %v4031
        %v4033 = vrot.slane %v3295, %v4032
        %v4034 = vsel %vm3634, %v4033, %v4029
        %v4035 = vlaneseq
        %v4036 = vshrl.u32 %v4035, 7
        %v4037 = vsub.s32 %v3636, %v4036
        %v4038 = vrot.slane %v3296, %v4037
        %v4039 = vsel %vm3641, %v4038, %v4034
        %v4040 = vlaneseq
        %v4041 = vshrl.u32 %v4040, 7
        %v4042 = vsub.s32 %v3643, %v4041
        %v4043 = vrot.slane %v3297, %v4042
        %v4044 = vsel %vm3648, %v4043, %v4039
        %v4045 = vlaneseq
        %v4046 = vshrl.u32 %v4045, 7
        %v4047 = vsub.s32 %v3540, %v4046
        %v4048 = vrot.slane %v3298, %v4047
        %v4049 = vlaneseq
        %v4050 = vshrl.u32 %v4049, 7
        %v4051 = vsub.s32 %v3545, %v4050
        %v4052 = vrot.slane %v3299, %v4051
        %v4053 = vsel %vm3550, %v4052, %v4048
        %v4054 = vlaneseq
        %v4055 = vshrl.u32 %v4054, 7
        %v4056 = vsub.s32 %v3552, %v4055
        %v4057 = vrot.slane %v3300, %v4056
        %v4058 = vsel %vm3557, %v4057, %v4053
        %v4059 = vlaneseq
        %v4060 = vshrl.u32 %v4059, 7
        %v4061 = vsub.s32 %v3559, %v4060
        %v4062 = vrot.slane %v3301, %v4061
        %v4063 = vsel %vm3564, %v4062, %v4058
        %v4064 = vlaneseq
        %v4065 = vshrl.u32 %v4064, 7
        %v4066 = vsub.s32 %v3566, %v4065
        %v4067 = vrot.slane %v3302, %v4066
        %v4068 = vsel %vm3571, %v4067, %v4063
        %v4069 = vlaneseq
        %v4070 = vshrl.u32 %v4069, 7
        %v4071 = vsub.s32 %v3573, %v4070
        %v4072 = vrot.slane %v3303, %v4071
        %v4073 = vsel %vm3578, %v4072, %v4068
        %v4074 = vlaneseq
        %v4075 = vshrl.u32 %v4074, 7
        %v4076 = vsub.s32 %v3580, %v4075
        %v4077 = vrot.slane %v3304, %v4076
        %v4078 = vsel %vm3585, %v4077, %v4073
        %v4079 = vlaneseq
        %v4080 = vshrl.u32 %v4079, 7
        %v4081 = vsub.s32 %v3587, %v4080
        %v4082 = vrot.slane %v3305, %v4081
        %v4083 = vsel %vm3592, %v4082, %v4078
        %v4084 = vlaneseq
        %v4085 = vshrl.u32 %v4084, 7
        %v4086 = vsub.s32 %v3594, %v4085
        %v4087 = vrot.slane %v3306, %v4086
        %v4088 = vsel %vm3599, %v4087, %v4083
        %v4089 = vlaneseq
        %v4090 = vshrl.u32 %v4089, 7
        %v4091 = vsub.s32 %v3601, %v4090
        %v4092 = vrot.slane %v3307, %v4091
        %v4093 = vsel %vm3606, %v4092, %v4088
        %v4094 = vlaneseq
        %v4095 = vshrl.u32 %v4094, 7
        %v4096 = vsub.s32 %v3608, %v4095
        %v4097 = vrot.slane %v3308, %v4096
        %v4098 = vsel %vm3613, %v4097, %v4093
        %v4099 = vlaneseq
        %v4100 = vshrl.u32 %v4099, 7
        %v4101 = vsub.s32 %v3615, %v4100
        %v4102 = vrot.slane %v3309, %v4101
        %v4103 = vsel %vm3620, %v4102, %v4098
        %v4104 = vlaneseq
        %v4105 = vshrl.u32 %v4104, 7
        %v4106 = vsub.s32 %v3622, %v4105
        %v4107 = vrot.slane %v3310, %v4106
        %v4108 = vsel %vm3627, %v4107, %v4103
        %v4109 = vlaneseq
        %v4110 = vshrl.u32 %v4109, 7
        %v4111 = vsub.s32 %v3629, %v4110
        %v4112 = vrot.slane %v3311, %v4111
        %v4113 = vsel %vm3634, %v4112, %v4108
        %v4114 = vlaneseq
        %v4115 = vshrl.u32 %v4114, 7
        %v4116 = vsub.s32 %v3636, %v4115
        %v4117 = vrot.slane %v3312, %v4116
        %v4118 = vsel %vm3641, %v4117, %v4113
        %v4119 = vlaneseq
        %v4120 = vshrl.u32 %v4119, 7
        %v4121 = vsub.s32 %v3643, %v4120
        %v4122 = vrot.slane %v3313, %v4121
        %v4123 = vsel %vm3648, %v4122, %v4118
        %v4124 = vlaneseq
        %v4125 = vshrl.u32 %v4124, 7
        %v4126 = vsub.s32 %v3540, %v4125
        %v4127 = vrot.slane %v3314, %v4126
        %v4128 = vlaneseq
        %v4129 = vshrl.u32 %v4128, 7
        %v4130 = vsub.s32 %v3545, %v4129
        %v4131 = vrot.slane %v3315, %v4130
        %v4132 = vsel %vm3550, %v4131, %v4127
        %v4133 = vlaneseq
        %v4134 = vshrl.u32 %v4133, 7
        %v4135 = vsub.s32 %v3552, %v4134
        %v4136 = vrot.slane %v3316, %v4135
        %v4137 = vsel %vm3557, %v4136, %v4132
        %v4138 = vlaneseq
        %v4139 = vshrl.u32 %v4138, 7
        %v4140 = vsub.s32 %v3559, %v4139
        %v4141 = vrot.slane %v3317, %v4140
        %v4142 = vsel %vm3564, %v4141, %v4137
        %v4143 = vlaneseq
        %v4144 = vshrl.u32 %v4143, 7
        %v4145 = vsub.s32 %v3566, %v4144
        %v4146 = vrot.slane %v3318, %v4145
        %v4147 = vsel %vm3571, %v4146, %v4142
        %v4148 = vlaneseq
        %v4149 = vshrl.u32 %v4148, 7
        %v4150 = vsub.s32 %v3573, %v4149
        %v4151 = vrot.slane %v3319, %v4150
        %v4152 = vsel %vm3578, %v4151, %v4147
        %v4153 = vlaneseq
        %v4154 = vshrl.u32 %v4153, 7
        %v4155 = vsub.s32 %v3580, %v4154
        %v4156 = vrot.slane %v3320, %v4155
        %v4157 = vsel %vm3585, %v4156, %v4152
        %v4158 = vlaneseq
        %v4159 = vshrl.u32 %v4158, 7
        %v4160 = vsub.s32 %v3587, %v4159
        %v4161 = vrot.slane %v3321, %v4160
        %v4162 = vsel %vm3592, %v4161, %v4157
        %v4163 = vlaneseq
        %v4164 = vshrl.u32 %v4163, 7
        %v4165 = vsub.s32 %v3594, %v4164
        %v4166 = vrot.slane %v3322, %v4165
        %v4167 = vsel %vm3599, %v4166, %v4162
        %v4168 = vlaneseq
        %v4169 = vshrl.u32 %v4168, 7
        %v4170 = vsub.s32 %v3601, %v4169
        %v4171 = vrot.slane %v3323, %v4170
        %v4172 = vsel %vm3606, %v4171, %v4167
        %v4173 = vlaneseq
        %v4174 = vshrl.u32 %v4173, 7
        %v4175 = vsub.s32 %v3608, %v4174
        %v4176 = vrot.slane %v3324, %v4175
        %v4177 = vsel %vm3613, %v4176, %v4172
        %v4178 = vlaneseq
        %v4179 = vshrl.u32 %v4178, 7
        %v4180 = vsub.s32 %v3615, %v4179
        %v4181 = vrot.slane %v3325, %v4180
        %v4182 = vsel %vm3620, %v4181, %v4177
        %v4183 = vlaneseq
        %v4184 = vshrl.u32 %v4183, 7
        %v4185 = vsub.s32 %v3622, %v4184
        %v4186 = vrot.slane %v3326, %v4185
        %v4187 = vsel %vm3627, %v4186, %v4182
        %v4188 = vlaneseq
        %v4189 = vshrl.u32 %v4188, 7
        %v4190 = vsub.s32 %v3629, %v4189
        %v4191 = vrot.slane %v3327, %v4190
        %v4192 = vsel %vm3634, %v4191, %v4187
        %v4193 = vlaneseq
        %v4194 = vshrl.u32 %v4193, 7
        %v4195 = vsub.s32 %v3636, %v4194
        %v4196 = vrot.slane %v3328, %v4195
        %v4197 = vsel %vm3641, %v4196, %v4192
        %v4198 = vlaneseq
        %v4199 = vshrl.u32 %v4198, 7
        %v4200 = vsub.s32 %v3643, %v4199
        %v4201 = vrot.slane %v3329, %v4200
        %v4202 = vsel %vm3648, %v4201, %v4197
        %vm4203 = vcmask 1041409
        %v4204 = vsel %vm4203, %v3965, %v3649
        %v4205 = vsel %vm4203, %v4044, %v3728
        %v4206 = vsel %vm4203, %v4123, %v3807
        %v4207 = vsel %vm4203, %v4202, %v3886
        %4212 = vmatprep.subr.mxu0 0.0
        %4213 = vmatpush1.msra.mxu0 %v3347
        %4214 = vmatprep.subr.mxu0 0.0
        %4215 = vmatpush1.msra.mxu0 %v3348
        %4216 = vmatprep.subr.mxu0 0.0
        %4217 = vmatpush1.msra.mxu0 %v3349
        %4218 = vmatprep.subr.mxu0 0.0
        %4219 = vmatpush1.msra.mxu0 %v3350
        %4220 = vmatprep.subr.mxu0 0.0
        %4221 = vmatpush1.msra.mxu0 %v3351
        %4222 = vmatprep.subr.mxu0 0.0
        %4223 = vmatpush1.msra.mxu0 %v3352
        %4224 = vmatprep.subr.mxu0 0.0
        %4225 = vmatpush1.msra.mxu0 %v3353
        %4226 = vmatprep.subr.mxu0 0.0
        %4227 = vmatpush1.msra.mxu0 %v3354
        %4228 = vmatprep.subr.mxu0 0.0
        %4229 = vmatpush1.msra.mxu0 %v3355
        %4230 = vmatprep.subr.mxu0 0.0
        %4231 = vmatpush1.msra.mxu0 %v3356
        %4232 = vmatprep.subr.mxu0 0.0
        %4233 = vmatpush1.msra.mxu0 %v3357
        %4234 = vmatprep.subr.mxu0 0.0
        %4235 = vmatpush1.msra.mxu0 %v3358
        %4236 = vmatprep.subr.mxu0 0.0
        %4237 = vmatpush1.msra.mxu0 %v3359
        %4238 = vmatprep.subr.mxu0 0.0
        %4239 = vmatpush1.msra.mxu0 %v3360
        %4240 = vmatprep.subr.mxu0 0.0
        %4241 = vmatpush1.msra.mxu0 %v3361
        %4242 = vmatprep.subr.mxu0 0.0
        %4243 = vmatpush1.msra.mxu0 %v3362
        %4244 = vmatprep.subr.mxu0 0.0
        %4245 = vmatpush1.msra.mxu0 %v3363
        %4246 = vmatprep.subr.mxu0 0.0
        %4247 = vmatpush1.msra.mxu0 %v3364
        %4248 = vmatprep.subr.mxu0 0.0
        %4249 = vmatpush1.msra.mxu0 %v3365
        %4250 = vmatprep.subr.mxu0 0.0
        %4251 = vmatpush1.msra.mxu0 %v3366
        %4252 = vmatprep.subr.mxu0 0.0
        %4253 = vmatpush1.msra.mxu0 %v3367
        %4254 = vmatprep.subr.mxu0 0.0
        %4255 = vmatpush1.msra.mxu0 %v3368
        %4256 = vmatprep.subr.mxu0 0.0
        %4257 = vmatpush1.msra.mxu0 %v3369
        %4258 = vmatprep.subr.mxu0 0.0
        %4259 = vmatpush1.msra.mxu0 %v3370
        %4260 = vmatprep.subr.mxu0 0.0
        %4261 = vmatpush1.msra.mxu0 %v3371
        %4262 = vmatprep.subr.mxu0 0.0
        %4263 = vmatpush1.msra.mxu0 %v3372
        %4264 = vmatprep.subr.mxu0 0.0
        %4265 = vmatpush1.msra.mxu0 %v3373
        %4266 = vmatprep.subr.mxu0 0.0
        %4267 = vmatpush1.msra.mxu0 %v3374
        %4268 = vmatprep.subr.mxu0 0.0
        %4269 = vmatpush1.msra.mxu0 %v3375
        %4270 = vmatprep.subr.mxu0 0.0
        %4271 = vmatpush1.msra.mxu0 %v3376
        %4272 = vmatprep.subr.mxu0 0.0
        %4273 = vmatpush1.msra.mxu0 %v3377
        %4274 = vmatprep.subr.mxu0 0.0
        %4275 = vmatpush1.msra.mxu0 %v3378
        %4276 = vmatprep.mubr.f32.mxu0 %v4205
        %4277 = vmatmul.mubr.f32.gmra.mrb[0].mxu0 %v4204
        %v4278 = vpop.f32.mrb[0].mxu0
        %v4279 = vadd.f32 0.0, %v4278
        %v4280 = vpop.f32.mrb[0].mxu0
        %4281 = vdwg.mxu0
        %4282 = vmatprep.subr.mxu0 0.0
        %4283 = vmatpush1.msra.mxu0 %v3379
        %4284 = vmatprep.subr.mxu0 0.0
        %4285 = vmatpush1.msra.mxu0 %v3380
        %4286 = vmatprep.subr.mxu0 0.0
        %4287 = vmatpush1.msra.mxu0 %v3381
        %4288 = vmatprep.subr.mxu0 0.0
        %4289 = vmatpush1.msra.mxu0 %v3382
        %4290 = vmatprep.subr.mxu0 0.0
        %4291 = vmatpush1.msra.mxu0 %v3383
        %4292 = vmatprep.subr.mxu0 0.0
        %4293 = vmatpush1.msra.mxu0 %v3384
        %4294 = vmatprep.subr.mxu0 0.0
        %4295 = vmatpush1.msra.mxu0 %v3385
        %4296 = vmatprep.subr.mxu0 0.0
        %4297 = vmatpush1.msra.mxu0 %v3386
        %4298 = vmatprep.subr.mxu0 0.0
        %4299 = vmatpush1.msra.mxu0 %v3387
        %4300 = vmatprep.subr.mxu0 0.0
        %4301 = vmatpush1.msra.mxu0 %v3388
        %4302 = vmatprep.subr.mxu0 0.0
        %4303 = vmatpush1.msra.mxu0 %v3389
        %4304 = vmatprep.subr.mxu0 0.0
        %4305 = vmatpush1.msra.mxu0 %v3390
        %4306 = vmatprep.subr.mxu0 0.0
        %4307 = vmatpush1.msra.mxu0 %v3391
        %4308 = vmatprep.subr.mxu0 0.0
        %4309 = vmatpush1.msra.mxu0 %v3392
        %4310 = vmatprep.subr.mxu0 0.0
        %4311 = vmatpush1.msra.mxu0 %v3393
        %4312 = vmatprep.subr.mxu0 0.0
        %4313 = vmatpush1.msra.mxu0 %v3394
        %4314 = vmatprep.subr.mxu0 0.0
        %4315 = vmatpush1.msra.mxu0 %v3395
        %4316 = vmatprep.subr.mxu0 0.0
        %4317 = vmatpush1.msra.mxu0 %v3396
        %4318 = vmatprep.subr.mxu0 0.0
        %4319 = vmatpush1.msra.mxu0 %v3397
        %4320 = vmatprep.subr.mxu0 0.0
        %4321 = vmatpush1.msra.mxu0 %v3398
        %4322 = vmatprep.subr.mxu0 0.0
        %4323 = vmatpush1.msra.mxu0 %v3399
        %4324 = vmatprep.subr.mxu0 0.0
        %4325 = vmatpush1.msra.mxu0 %v3400
        %4326 = vmatprep.subr.mxu0 0.0
        %4327 = vmatpush1.msra.mxu0 %v3401
        %4328 = vmatprep.subr.mxu0 0.0
        %4329 = vmatpush1.msra.mxu0 %v3402
        %4330 = vmatprep.subr.mxu0 0.0
        %4331 = vmatpush1.msra.mxu0 %v3403
        %4332 = vmatprep.subr.mxu0 0.0
        %4333 = vmatpush1.msra.mxu0 %v3404
        %4334 = vmatprep.subr.mxu0 0.0
        %4335 = vmatpush1.msra.mxu0 %v3405
        %4336 = vmatprep.subr.mxu0 0.0
        %4337 = vmatpush1.msra.mxu0 %v3406
        %4338 = vmatprep.subr.mxu0 0.0
        %4339 = vmatpush1.msra.mxu0 %v3407
        %4340 = vmatprep.subr.mxu0 0.0
        %4341 = vmatpush1.msra.mxu0 %v3408
        %4342 = vmatprep.subr.mxu0 0.0
        %4343 = vmatpush1.msra.mxu0 %v3409
        %4344 = vmatprep.subr.mxu0 0.0
        %4345 = vmatpush1.msra.mxu0 %v3410
        %4346 = vmatprep.mubr.f32.mxu0 %v4207
        %4347 = vmatmul.mubr.f32.gmra.mrb[0].mxu0 %v4206
        %v4348 = vpop.f32.mrb[0].mxu0
        %v4349 = vadd.f32 %v4279, %v4348
        %v4350 = vpop.f32.mrb[0].mxu0
        %4351 = vdwg.mxu0
        %v4384 = vlaneseq
        %v4385 = vshrl.u32 %v4384, 7
        %v4386 = vsub.s32 %v3540, %v4385
        %v4387 = vrot.slane %v1889, %v4386
        %v4388 = vlaneseq
        %v4389 = vshrl.u32 %v4388, 7
        %v4390 = vsub.s32 %v3545, %v4389
        %v4391 = vrot.slane %v1890, %v4390
        %v4392 = vsel %vm3550, %v4391, %v4387
        %v4393 = vlaneseq
        %v4394 = vshrl.u32 %v4393, 7
        %v4395 = vsub.s32 %v3552, %v4394
        %v4396 = vrot.slane %v1891, %v4395
        %v4397 = vsel %vm3557, %v4396, %v4392
        %v4398 = vlaneseq
        %v4399 = vshrl.u32 %v4398, 7
        %v4400 = vsub.s32 %v3559, %v4399
        %v4401 = vrot.slane %v1892, %v4400
        %v4402 = vsel %vm3564, %v4401, %v4397
        %v4403 = vlaneseq
        %v4404 = vshrl.u32 %v4403, 7
        %v4405 = vsub.s32 %v3566, %v4404
        %v4406 = vrot.slane %v1893, %v4405
        %v4407 = vsel %vm3571, %v4406, %v4402
        %v4408 = vlaneseq
        %v4409 = vshrl.u32 %v4408, 7
        %v4410 = vsub.s32 %v3573, %v4409
        %v4411 = vrot.slane %v1894, %v4410
        %v4412 = vsel %vm3578, %v4411, %v4407
        %v4413 = vlaneseq
        %v4414 = vshrl.u32 %v4413, 7
        %v4415 = vsub.s32 %v3580, %v4414
        %v4416 = vrot.slane %v1895, %v4415
        %v4417 = vsel %vm3585, %v4416, %v4412
        %v4418 = vlaneseq
        %v4419 = vshrl.u32 %v4418, 7
        %v4420 = vsub.s32 %v3587, %v4419
        %v4421 = vrot.slane %v1896, %v4420
        %v4422 = vsel %vm3592, %v4421, %v4417
        %v4423 = vlaneseq
        %v4424 = vshrl.u32 %v4423, 7
        %v4425 = vsub.s32 %v3594, %v4424
        %v4426 = vrot.slane %v1897, %v4425
        %v4427 = vsel %vm3599, %v4426, %v4422
        %v4428 = vlaneseq
        %v4429 = vshrl.u32 %v4428, 7
        %v4430 = vsub.s32 %v3601, %v4429
        %v4431 = vrot.slane %v1898, %v4430
        %v4432 = vsel %vm3606, %v4431, %v4427
        %v4433 = vlaneseq
        %v4434 = vshrl.u32 %v4433, 7
        %v4435 = vsub.s32 %v3608, %v4434
        %v4436 = vrot.slane %v1899, %v4435
        %v4437 = vsel %vm3613, %v4436, %v4432
        %v4438 = vlaneseq
        %v4439 = vshrl.u32 %v4438, 7
        %v4440 = vsub.s32 %v3615, %v4439
        %v4441 = vrot.slane %v1900, %v4440
        %v4442 = vsel %vm3620, %v4441, %v4437
        %v4443 = vlaneseq
        %v4444 = vshrl.u32 %v4443, 7
        %v4445 = vsub.s32 %v3622, %v4444
        %v4446 = vrot.slane %v1901, %v4445
        %v4447 = vsel %vm3627, %v4446, %v4442
        %v4448 = vlaneseq
        %v4449 = vshrl.u32 %v4448, 7
        %v4450 = vsub.s32 %v3629, %v4449
        %v4451 = vrot.slane %v1902, %v4450
        %v4452 = vsel %vm3634, %v4451, %v4447
        %v4453 = vlaneseq
        %v4454 = vshrl.u32 %v4453, 7
        %v4455 = vsub.s32 %v3636, %v4454
        %v4456 = vrot.slane %v1903, %v4455
        %v4457 = vsel %vm3641, %v4456, %v4452
        %v4458 = vlaneseq
        %v4459 = vshrl.u32 %v4458, 7
        %v4460 = vsub.s32 %v3643, %v4459
        %v4461 = vrot.slane %v1904, %v4460
        %v4462 = vsel %vm3648, %v4461, %v4457
        %v4463 = vlaneseq
        %v4464 = vshrl.u32 %v4463, 7
        %v4465 = vsub.s32 %v3540, %v4464
        %v4466 = vrot.slane %v1905, %v4465
        %v4467 = vlaneseq
        %v4468 = vshrl.u32 %v4467, 7
        %v4469 = vsub.s32 %v3545, %v4468
        %v4470 = vrot.slane %v1906, %v4469
        %v4471 = vsel %vm3550, %v4470, %v4466
        %v4472 = vlaneseq
        %v4473 = vshrl.u32 %v4472, 7
        %v4474 = vsub.s32 %v3552, %v4473
        %v4475 = vrot.slane %v1907, %v4474
        %v4476 = vsel %vm3557, %v4475, %v4471
        %v4477 = vlaneseq
        %v4478 = vshrl.u32 %v4477, 7
        %v4479 = vsub.s32 %v3559, %v4478
        %v4480 = vrot.slane %v1908, %v4479
        %v4481 = vsel %vm3564, %v4480, %v4476
        %v4482 = vlaneseq
        %v4483 = vshrl.u32 %v4482, 7
        %v4484 = vsub.s32 %v3566, %v4483
        %v4485 = vrot.slane %v1909, %v4484
        %v4486 = vsel %vm3571, %v4485, %v4481
        %v4487 = vlaneseq
        %v4488 = vshrl.u32 %v4487, 7
        %v4489 = vsub.s32 %v3573, %v4488
        %v4490 = vrot.slane %v1910, %v4489
        %v4491 = vsel %vm3578, %v4490, %v4486
        %v4492 = vlaneseq
        %v4493 = vshrl.u32 %v4492, 7
        %v4494 = vsub.s32 %v3580, %v4493
        %v4495 = vrot.slane %v1911, %v4494
        %v4496 = vsel %vm3585, %v4495, %v4491
        %v4497 = vlaneseq
        %v4498 = vshrl.u32 %v4497, 7
        %v4499 = vsub.s32 %v3587, %v4498
        %v4500 = vrot.slane %v1912, %v4499
        %v4501 = vsel %vm3592, %v4500, %v4496
        %v4502 = vlaneseq
        %v4503 = vshrl.u32 %v4502, 7
        %v4504 = vsub.s32 %v3594, %v4503
        %v4505 = vrot.slane %v1913, %v4504
        %v4506 = vsel %vm3599, %v4505, %v4501
        %v4507 = vlaneseq
        %v4508 = vshrl.u32 %v4507, 7
        %v4509 = vsub.s32 %v3601, %v4508
        %v4510 = vrot.slane %v1914, %v4509
        %v4511 = vsel %vm3606, %v4510, %v4506
        %v4512 = vlaneseq
        %v4513 = vshrl.u32 %v4512, 7
        %v4514 = vsub.s32 %v3608, %v4513
        %v4515 = vrot.slane %v1915, %v4514
        %v4516 = vsel %vm3613, %v4515, %v4511
        %v4517 = vlaneseq
        %v4518 = vshrl.u32 %v4517, 7
        %v4519 = vsub.s32 %v3615, %v4518
        %v4520 = vrot.slane %v1916, %v4519
        %v4521 = vsel %vm3620, %v4520, %v4516
        %v4522 = vlaneseq
        %v4523 = vshrl.u32 %v4522, 7
        %v4524 = vsub.s32 %v3622, %v4523
        %v4525 = vrot.slane %v1917, %v4524
        %v4526 = vsel %vm3627, %v4525, %v4521
        %v4527 = vlaneseq
        %v4528 = vshrl.u32 %v4527, 7
        %v4529 = vsub.s32 %v3629, %v4528
        %v4530 = vrot.slane %v1918, %v4529
        %v4531 = vsel %vm3634, %v4530, %v4526
        %v4532 = vlaneseq
        %v4533 = vshrl.u32 %v4532, 7
        %v4534 = vsub.s32 %v3636, %v4533
        %v4535 = vrot.slane %v1919, %v4534
        %v4536 = vsel %vm3641, %v4535, %v4531
        %v4537 = vlaneseq
        %v4538 = vshrl.u32 %v4537, 7
        %v4539 = vsub.s32 %v3643, %v4538
        %v4540 = vrot.slane %v1920, %v4539
        %v4541 = vsel %vm3648, %v4540, %v4536
        %v4542 = vsel %vm4203, %v4541, %v4462
        %4544 = vmatprep.subr.mxu0 0.0
        %4545 = vmatpush1.msra.mxu0 %v3331
        %4546 = vmatprep.subr.mxu0 0.0
        %4547 = vmatpush1.msra.mxu0 %v3332
        %4548 = vmatprep.subr.mxu0 0.0
        %4549 = vmatpush1.msra.mxu0 %v3333
        %4550 = vmatprep.subr.mxu0 0.0
        %4551 = vmatpush1.msra.mxu0 %v3334
        %4552 = vmatprep.subr.mxu0 0.0
        %4553 = vmatpush1.msra.mxu0 %v3335
        %4554 = vmatprep.subr.mxu0 0.0
        %4555 = vmatpush1.msra.mxu0 %v3336
        %4556 = vmatprep.subr.mxu0 0.0
        %4557 = vmatpush1.msra.mxu0 %v3337
        %4558 = vmatprep.subr.mxu0 0.0
        %4559 = vmatpush1.msra.mxu0 %v3338
        %4560 = vmatprep.subr.mxu0 0.0
        %4561 = vmatpush1.msra.mxu0 %v3339
        %4562 = vmatprep.subr.mxu0 0.0
        %4563 = vmatpush1.msra.mxu0 %v3340
        %4564 = vmatprep.subr.mxu0 0.0
        %4565 = vmatpush1.msra.mxu0 %v3341
        %4566 = vmatprep.subr.mxu0 0.0
        %4567 = vmatpush1.msra.mxu0 %v3342
        %4568 = vmatprep.subr.mxu0 0.0
        %4569 = vmatpush1.msra.mxu0 %v3343
        %4570 = vmatprep.subr.mxu0 0.0
        %4571 = vmatpush1.msra.mxu0 %v3344
        %4572 = vmatprep.subr.mxu0 0.0
        %4573 = vmatpush1.msra.mxu0 %v3345
        %4574 = vmatprep.subr.mxu0 0.0
        %4575 = vmatpush1.msra.mxu0 %v3346
        %4576 = vmatprep.subr.mxu0 0.0
        %4577 = vmatpush1.msra.mxu0 0.0
        %4578 = vmatprep.subr.mxu0 0.0
        %4579 = vmatpush1.msra.mxu0 0.0
        %4580 = vmatprep.subr.mxu0 0.0
        %4581 = vmatpush1.msra.mxu0 0.0
        %4582 = vmatprep.subr.mxu0 0.0
        %4583 = vmatpush1.msra.mxu0 0.0
        %4584 = vmatprep.subr.mxu0 0.0
        %4585 = vmatpush1.msra.mxu0 0.0
        %4586 = vmatprep.subr.mxu0 0.0
        %4587 = vmatpush1.msra.mxu0 0.0
        %4588 = vmatprep.subr.mxu0 0.0
        %4589 = vmatpush1.msra.mxu0 0.0
        %4590 = vmatprep.subr.mxu0 0.0
        %4591 = vmatpush1.msra.mxu0 0.0
        %4592 = vmatprep.subr.mxu0 0.0
        %4593 = vmatpush1.msra.mxu0 0.0
        %4594 = vmatprep.subr.mxu0 0.0
        %4595 = vmatpush1.msra.mxu0 0.0
        %4596 = vmatprep.subr.mxu0 0.0
        %4597 = vmatpush1.msra.mxu0 0.0
        %4598 = vmatprep.subr.mxu0 0.0
        %4599 = vmatpush1.msra.mxu0 0.0
        %4600 = vmatprep.subr.mxu0 0.0
        %4601 = vmatpush1.msra.mxu0 0.0
        %4602 = vmatprep.subr.mxu0 0.0
        %4603 = vmatpush1.msra.mxu0 0.0
        %4604 = vmatprep.subr.mxu0 0.0
        %4605 = vmatpush1.msra.mxu0 0.0
        %4606 = vmatprep.subr.mxu0 0.0
        %4607 = vmatpush1.msra.mxu0 0.0
        %4608 = vmatprep.mubr.f32.mxu0 0.0
        %4609 = vmatmul.mubr.f32.gmra.mrb[0].mxu0 %v4542
        %v4610 = vpop.f32.mrb[0].mxu0
        %v4611 = vadd.f32 %v4349, %v4610
        %v4612 = vpop.f32.mrb[0].mxu0
        %4613 = vdwg.mxu0
        %v4614 = vadd.f32 %v3330, %v4611
        %vm4615 = vcmask 123904
        %4616 = vst.msk [vmem:[#allocation2] sm:$0x3] %vm4615, %v4614
        %p4617 = scmp.eq.s32.totalorder %s17, 3
        // Predicated region
        $region91: #{tpu_custom_call.1} parent=77 // pred_check
          %p4618 = pneg %p4617
        $region92: #{tpu_custom_call.1} parent=77 // pred_check_branch
          %4620 = sbr.rel (%p4618) target = $region94
        $region93: #{tpu_custom_call.1} parent=77 // pred_region
          %v4621 = vld [vmem:[#allocation2] sm:$0x3]
          %v4622 = vld [vmem:[%s4] sm:$0x1]
          %v4624 = vlaneseq
          %v4625 = vshrl.u32 %v4624, 7
          %v4626 = vsub.s32 0, %v4625
          %v4627 = vrot.slane %v4622, %v4626
          %v4629 = vadd.f32 %v4621, %v4627
          %4630 = vst.msk [vmem:[#allocation5] sm:$0x3] %vm4615, %v4629
        $region94: #{tpu_custom_call.1} parent=77 // pred_fallthru
          _
        // Predicated region
        $region95: #{tpu_custom_call.1} parent=77 // pred_check
          %p4631 = pneg %p155
        $region96: #{tpu_custom_call.1} parent=77 // pred_check_branch
          %4633 = sbr.rel (%p4631) target = $region98
        $region97: #{tpu_custom_call.1} parent=77 // pred_region
          %s4635 = ssub.s32 32, 32
          %4636 = vsyncadd [#allocation6], %s4635
          %s4638 = sshll.u32 [#allocation5], 4
          %s4639 = int_to_ptr.vmem [resolvable:$true] %s4638
          %4641 = dma.vmem_to_hbm [thread:$0]  %s4639, 32, %s5, [#allocation6]
        $region98: #{tpu_custom_call.1} parent=77 // pred_fallthru
          _
        // Predicated region
        $region99: #{tpu_custom_call.1} parent=77 // pred_check
          %p4642 = pneg %p155
        $region100: #{tpu_custom_call.1} parent=77 // pred_check_branch
          %4644 = sbr.rel (%p4642) target = $region102
        $region101: #{tpu_custom_call.1} parent=77 // pred_region
          %4645 = dma.done [#allocation6], 32
        $region102: #{tpu_custom_call.1} parent=77 // pred_fallthru
          _
      $region78: #{tpu_custom_call.1} parent=5 // pred_fallthru
        _
      %p4646 = scmp.le.s32.totalorder 2, %s12
      // Predicated region
      $region103: #{tpu_custom_call.1} parent=5 // pred_check
        %p4647 = pneg %p4646
      $region104: #{tpu_custom_call.1} parent=5 // pred_check_branch
        %4649 = sbr.rel (%p4647) target = $region106
      $region105: #{tpu_custom_call.1} parent=5 // pred_region
        %s4650 = ssub.s32 %s12, 2
      $region106: #{tpu_custom_call.1} parent=5 // pred_fallthru
        _
    $region6: #{tpu_custom_call.1} parent=1 // loop_footer
      %s16 = sadd.s32 1, %s12
    $region7: #{tpu_custom_call.1} parent=1 // loop_footer_branch
      %11 = sbr.rel target = $region3
    $region8: #{tpu_custom_call.1} parent=1 // loop_exit
      _
    %4651 = vsyncpa [#allocation6], 1
    %s4652 = scalar_lea.sflag [#allocation6], 1
    %4653 = vsyncpa %s4652, 1

</llo_original>
